<compile_context>
chip_gen: v5e
topology: v5e:2x2
jax: 0.10.0
libtpu: 0.0.40
codegen_flags: <defaults>
</compile_context>

<pallas_src>
import numpy as np
import jax
import jax.numpy as jnp
from jax.experimental import pallas as pl
from jax.experimental.pallas import tpu as pltpu


# --------------------------- weight folding (one-time) ------------------------

def _fold_conv_coarse(w, stride, pad):
    """Conv2d(k, s, p) weight (Co, Ci, k, k) -> (9*Ci*s*s, Co).

    In the space-to-depth basis the s-strided conv is a 3x3/stride-1 conv on
    the coarse grid with Ci*s*s input channels.  Rows ordered
    (tap t=(qy+1)*3+(qx+1), ci, py, px); cols ordered co."""
    co, ci, k, _ = w.shape
    s = stride
    q = np.arange(-1, 2)
    d = s * q[:, None] + np.arange(s)[None, :] + pad            # (3, s) kernel index
    valid = (d >= 0) & (d < k)
    dc = np.clip(d, 0, k - 1)
    g = w[:, :, dc[:, :, None, None], dc[None, None, :, :]]     # (Co,Ci,qy,py,qx,px)
    g = g * jnp.asarray(valid[:, :, None, None] & valid[None, None, :, :], w.dtype)
    g = jnp.transpose(g, (2, 4, 1, 3, 5, 0))                    # (qy,qx,Ci,py,px,Co)
    return g.reshape(9 * ci * s * s, co)


def _fold_deconv_coarse(wt, stride, pad):
    """ConvTranspose2d(k, s, p) weight (Ci, Co, k, k) -> (9*Ci, Co*s*s).

    Sub-pixel decomposition: the s-strided deconv is a 3x3/stride-1 conv on
    the coarse grid producing Co*s*s s2d output channels.  Rows ordered
    (tap, ci); cols ordered (co, py, px)."""
    ci, co, k, _ = wt.shape
    s = stride
    q = np.arange(-1, 2)
    d = np.arange(s)[None, :] + pad - s * q[:, None]            # (3, s) kernel index
    valid = (d >= 0) & (d < k)
    dc = np.clip(d, 0, k - 1)
    g = wt[:, :, dc[:, :, None, None], dc[None, None, :, :]]    # (Ci,Co,qy,py,qx,px)
    g = g * jnp.asarray(valid[:, :, None, None] & valid[None, None, :, :], wt.dtype)
    g = jnp.transpose(g, (2, 4, 0, 1, 3, 5))                    # (qy,qx,Ci,Co,py,px)
    return g.reshape(9 * ci, co * s * s)


def prepare_params(params, kernel=8, stride=4, pad=2, compute_dtype=jnp.bfloat16):
    """One-time folding of PyTorch-layout parameters into matmul-ready,
    coarse-grid (space-to-depth) weights.  Called once, outside jit."""
    assert kernel == stride + 2 * pad and pad <= stride, (kernel, stride, pad)
    f, c0 = params["conv_w"].shape[:2]
    s2 = stride * stride
    w1 = params["conv_w"].reshape(f, c0)
    return {
        # 1x1 conv acts per s2d phase -> Kronecker-folded dense matmul weight
        "w1":  jnp.kron(w1.T, jnp.eye(s2, dtype=w1.dtype)).astype(compute_dtype),
        "b1":  jnp.repeat(params["conv_b"], s2).reshape(1, f * s2).astype(jnp.float32),
        "wd1": _fold_conv_coarse(params["d1_w"], stride, pad).astype(compute_dtype),
        "bd1": params["d1_b"].reshape(1, f).astype(jnp.float32),
        "wd2": _fold_deconv_coarse(params["d2_w"], stride, pad).astype(compute_dtype),
        "b2":  jnp.repeat(params["d2_b"], s2).reshape(1, f * s2).astype(jnp.float32),
        "wd3": _fold_conv_coarse(params["d3_w"], stride, pad).astype(compute_dtype),
        "bd3": params["d3_b"].reshape(1, f).astype(jnp.float32),
        "slopes": jnp.stack([params["conv_p"], params["d1_p"],
                             params["d2_p"], params["d3_p"]]).astype(jnp.float32),
    }


# ------------------------------- Pallas kernel --------------------------------

def _shift_rows(a, s):
    """out[j, :] = a[j + s, :]  (zero-filled past the ends); s is a static int."""
    if s == 0:
        return a
    z = jnp.zeros((abs(s), a.shape[1]), a.dtype)
    if s > 0:
        return jnp.concatenate([a[s:, :], z], axis=0)
    return jnp.concatenate([z, a[:s, :]], axis=0)


def _coarse_conv3x3(a, w_ref, bias, slope, wcp, cdt):
    """3x3/stride-1 conv on the flattened, zero-ringed coarse grid:
    9 shifted matmuls (bf16 in, f32 accumulate), + bias + PReLU.

    a     : (Mb, Cin)  f32 activations (ring rows are zero)
    w_ref : (9*Cin, Cout) VMEM ref, rows grouped per tap
    bias  : (1, Cout) f32
    """
    cin = w_ref.shape[0] // 9
    acc = None
    t = 0
    for qy in (-1, 0, 1):
        for qx in (-1, 0, 1):
            at = _shift_rows(a, qy * wcp + qx).astype(cdt)
            y = jnp.dot(at, w_ref[t * cin:(t + 1) * cin, :],
                        preferred_element_type=jnp.float32)
            acc = y if acc is None else acc + y
            t += 1
    acc = acc + bias
    return jnp.where(acc >= 0.0, acc, slope * acc)


def _make_kernel(wcp):
    def kernel(mask_ref, x_ref, w1_ref, b1_ref, wd1_ref, bd1_ref,
               wd2_ref, b2_ref, wd3_ref, bd3_ref, slopes_ref, o_ref):
        cdt = w1_ref.dtype
        mask = mask_ref[...]                                            # (Mb, 1) f32

        # x = PReLU(conv1x1(x))   (pointwise -> one dense matmul in the s2d basis)
        xc = jnp.dot(x_ref[...], w1_ref[...], preferred_element_type=jnp.float32)
        xc = xc + b1_ref[...]
        xc = jnp.where(xc >= 0.0, xc, slopes_ref[0] * xc) * mask        # (Mb, F*s2)

        # l0 = PReLU(down_conv1(x))        (8x8/s4 conv == coarse 3x3/s1 conv)
        l0 = _coarse_conv3x3(xc, wd1_ref, bd1_ref[...], slopes_ref[1], wcp, cdt)
        l0 = l0 * mask                                                  # (Mb, F)

        # h0 = PReLU(down_conv2(l0));  fused residual (h0 - x)
        h0 = _coarse_conv3x3(l0, wd2_ref, b2_ref[...], slopes_ref[2], wcp, cdt)
        diff = (h0 - xc) * mask                                         # (Mb, F*s2)

        # l1 = PReLU(down_conv3(h0 - x));  fused residual (l1 + l0)
        l1 = _coarse_conv3x3(diff, wd3_ref, bd3_ref[...], slopes_ref[3], wcp, cdt)
        o_ref[...] = (l1 + l0).astype(o_ref.dtype)
    return kernel


# ------------------------------ fused forward ---------------------------------

def d_down_block_dbpn(x, prep, kernel=8, stride=4, pad=2):
    n, c0, h, w = x.shape
    s = stride
    s2 = s * s
    assert h % s == 0 and w % s == 0
    f = prep["bd1"].shape[1]
    cdt = prep["w1"].dtype
    hc, wc = h // s, w // s
    hcp, wcp = hc + 2, wc + 2        # coarse grid + zero ring (conv zero padding)
    mb = hcp * wcp
    cin = c0 * s2
    assert prep["w1"].shape == (cin, f * s2)

    # input-side layout glue only: space-to-depth + zero ring, channels last.
    xb = x.reshape(n, c0, hc, s, wc, s).transpose(0, 2, 4, 1, 3, 5)     # (N,Hc,Wc,C0,s,s)
    xb = xb.reshape(n, hc, wc, cin)
    xb = jnp.pad(xb, ((0, 0), (1, 1), (1, 1), (0, 0)))                  # (N,Hcp,Wcp,Cin)
    xb = xb.reshape(n, mb, cin).astype(cdt)

    # interior mask: keeps the ring at zero after bias/PReLU (emulates padding).
    m = np.zeros((hcp, wcp, 1), np.float32)
    m[1:1 + hc, 1:1 + wc, 0] = 1.0
    mask = jnp.asarray(m.reshape(mb, 1))

    inv = lambda i: (0, 0)
    out = pl.pallas_call(
        _make_kernel(wcp),
        out_shape=jax.ShapeDtypeStruct((n, mb, f), jnp.float32),
        grid=(n,),
        in_specs=[
            pl.BlockSpec((mb, 1), inv),                           # interior mask
            pl.BlockSpec((None, mb, cin), lambda i: (i, 0, 0)),   # one image / step
            pl.BlockSpec(prep["w1"].shape, inv),
            pl.BlockSpec(prep["b1"].shape, inv),
            pl.BlockSpec(prep["wd1"].shape, inv),
            pl.BlockSpec(prep["bd1"].shape, inv),
            pl.BlockSpec(prep["wd2"].shape, inv),
            pl.BlockSpec(prep["b2"].shape, inv),
            pl.BlockSpec(prep["wd3"].shape, inv),
            pl.BlockSpec(prep["bd3"].shape, inv),
            pl.BlockSpec(memory_space=pltpu.MemorySpace.SMEM),    # PReLU slopes
        ],
        out_specs=pl.BlockSpec((None, mb, f), lambda i: (i, 0, 0)),
        compiler_params=pltpu.CompilerParams(
            dimension_semantics=("parallel",),        # v7x: one image per TC
            vmem_limit_bytes=32 * 1024 * 1024),
    )(mask, xb, prep["w1"], prep["b1"], prep["wd1"], prep["bd1"],
      prep["wd2"], prep["b2"], prep["wd3"], prep["bd3"], prep["slopes"])

    # epilogue: drop the coarse ring, back to NCHW.
    out = out.reshape(n, hcp, wcp, f)[:, 1:1 + hc, 1:1 + wc, :]
    return out.transpose(0, 3, 1, 2)


# ------------------------------ pure-JAX reference ----------------------------

def _prelu(y, p):
    return jnp.where(y >= 0, y, p * y)


def _ref_conv(x, w, b, stride, pad):
    y = jax.lax.conv_general_dilated(
        x, w, (stride, stride), [(pad, pad), (pad, pad)],
        dimension_numbers=("NCHW", "OIHW", "NCHW"))
    return y + b.reshape(1, -1, 1, 1)


def _ref_deconv(x, w_t, b, stride, pad, kernel):
    w_eq = jnp.flip(w_t, axis=(2, 3)).transpose(1, 0, 2, 3)
    y = jax.lax.conv_general_dilated(
        x, w_eq, (1, 1), [(kernel - 1 - pad,) * 2] * 2,
        lhs_dilation=(stride, stride),
        dimension_numbers=("NCHW", "OIHW", "NCHW"))
    return y + b.reshape(1, -1, 1, 1)


def d_down_block_ref(x, p, kernel=8, stride=4, pad=2):
    xc = _prelu(_ref_conv(x, p["conv_w"], p["conv_b"], 1, 0), p["conv_p"])
    l0 = _prelu(_ref_conv(xc, p["d1_w"], p["d1_b"], stride, pad), p["d1_p"])
    h0 = _prelu(_ref_deconv(l0, p["d2_w"], p["d2_b"], stride, pad, kernel), p["d2_p"])
    l1 = _prelu(_ref_conv(h0 - xc, p["d3_w"], p["d3_b"], stride, pad), p["d3_p"])
    return l1 + l0


# ----------------------------------- main --------------------------------------

if __name__ == "__main__":
    F = 8            # num_filter
    NUM_STAGES = 1
    N, H, W = 2, 16, 16
    K, S, P = 8, 4, 2

    key = jax.random.PRNGKey(0)
    ks = jax.random.split(key, 9)

    def winit(k, shape, scale=0.05):
        return (scale * jax.random.normal(k, shape)).astype(jnp.float32)

    params = {
        # ConvBlock(num_filter*num_stages, num_filter, 1, 1, 0)
        "conv_w": winit(ks[0], (F, F * NUM_STAGES, 1, 1)),
        "conv_b": winit(ks[1], (F,)),
        "conv_p": jnp.float32(0.25),
        # ConvBlock(F, F, 8, 4, 2)
        "d1_w": winit(ks[2], (F, F, K, K)),
        "d1_b": winit(ks[3], (F,)),
        "d1_p": jnp.float32(0.25),
        # DeconvBlock(F, F, 8, 4, 2) -> ConvTranspose2d weight is (Cin, Cout, kh, kw)
        "d2_w": winit(ks[4], (F, F, K, K)),
        "d2_b": winit(ks[5], (F,)),
        "d2_p": jnp.float32(0.25),
        # ConvBlock(F, F, 8, 4, 2)
        "d3_w": winit(ks[6], (F, F, K, K)),
        "d3_b": winit(ks[7], (F,)),
        "d3_p": jnp.float32(0.25),
    }

    x = jax.random.normal(ks[8], (N, F * NUM_STAGES, H, W), dtype=jnp.float32)

    # one-time weight folding (outside the jitted forward), bf16 MXU inputs.
    prep = prepare_params(params, K, S, P, compute_dtype=jnp.bfloat16)

    fwd = jax.jit(lambda xx: d_down_block_dbpn(xx, prep, K, S, P))
    out = jax.block_until_ready(fwd(x))

    ref = jax.block_until_ready(d_down_block_ref(x, params, K, S, P))

    assert out.shape == (N, F, H // S, W // S), out.shape
    # bf16 MXU inputs with f32 accumulation -> slightly looser tolerance than f32.
    np.testing.assert_allclose(np.asarray(out), np.asarray(ref), rtol=2e-2, atol=5e-3)

    print("KERNEL_OK")
</pallas_src>

<mosaic_0001>
module attributes {stable_mosaic.version = 11 : i64} {
  func.func @kernel(%arg0: i32, %arg1: memref<36x1xf32, #tpu.memory_space<vmem>>, %arg2: memref<1x36x128xbf16, #tpu.memory_space<vmem>>, %arg3: memref<128x128xbf16, #tpu.memory_space<vmem>>, %arg4: memref<1x128xf32, #tpu.memory_space<vmem>>, %arg5: memref<1152x8xbf16, #tpu.memory_space<vmem>>, %arg6: memref<1x8xf32, #tpu.memory_space<vmem>>, %arg7: memref<72x128xbf16, #tpu.memory_space<vmem>>, %arg8: memref<1x128xf32, #tpu.memory_space<vmem>>, %arg9: memref<1152x8xbf16, #tpu.memory_space<vmem>>, %arg10: memref<1x8xf32, #tpu.memory_space<vmem>>, %arg11: memref<4xf32, #tpu.memory_space<smem>>, %arg12: memref<1x36x8xf32, #tpu.memory_space<vmem>>) attributes {dimension_semantics = [#tpu.dimension_semantics<parallel>], iteration_bounds = array<i64: 2>, scalar_prefetch = 0 : i64, scratch_operands = 0 : i64, tpu.core_type = #tpu.core_type<tc>, window_params = [{pipeline_mode = #tpu.pipeline_mode<synchronous>, transform_indices = @transform_0, window_bounds = array<i64: 36, 1>}, {transform_indices = @transform_1, window_bounds = array<i64: 1, 36, 128>}, {pipeline_mode = #tpu.pipeline_mode<synchronous>, transform_indices = @transform_2, window_bounds = array<i64: 128, 128>}, {pipeline_mode = #tpu.pipeline_mode<synchronous>, transform_indices = @transform_3, window_bounds = array<i64: 1, 128>}, {pipeline_mode = #tpu.pipeline_mode<synchronous>, transform_indices = @transform_4, window_bounds = array<i64: 1152, 8>}, {pipeline_mode = #tpu.pipeline_mode<synchronous>, transform_indices = @transform_5, window_bounds = array<i64: 1, 8>}, {pipeline_mode = #tpu.pipeline_mode<synchronous>, transform_indices = @transform_6, window_bounds = array<i64: 72, 128>}, {pipeline_mode = #tpu.pipeline_mode<synchronous>, transform_indices = @transform_7, window_bounds = array<i64: 1, 128>}, {pipeline_mode = #tpu.pipeline_mode<synchronous>, transform_indices = @transform_8, window_bounds = array<i64: 1152, 8>}, {pipeline_mode = #tpu.pipeline_mode<synchronous>, transform_indices = @transform_9, window_bounds = array<i64: 1, 8>}, {transform_indices = @transform_10, window_bounds = array<i64: 4>}, {transform_indices = @transform_11, window_bounds = array<i64: 1, 36, 8>}]} {
    %c0 = arith.constant 0 : index
    %c0_0 = arith.constant 0 : index
    %0 = vector.load %arg1[%c0, %c0_0] : memref<36x1xf32, #tpu.memory_space<vmem>>, vector<36x1xf32>
    %c0_1 = arith.constant 0 : index
    %c0_2 = arith.constant 0 : index
    %c0_3 = arith.constant 0 : index
    %1 = vector.load %arg2[%c0_1, %c0_2, %c0_3] : memref<1x36x128xbf16, #tpu.memory_space<vmem>>, vector<1x36x128xbf16>
    %2 = vector.shape_cast %1 : vector<1x36x128xbf16> to vector<36x128xbf16>
    %c0_4 = arith.constant 0 : index
    %c0_5 = arith.constant 0 : index
    %3 = vector.load %arg3[%c0_4, %c0_5] : memref<128x128xbf16, #tpu.memory_space<vmem>>, vector<128x128xbf16>
    %cst = arith.constant dense<0.000000e+00> : vector<36x128xf32>
    %4 = tpu.matmul %2, %3, %cst {dimension_numbers = #tpu.dot_dimension_numbers<[1], [0], [0], [1], [0, 0, 1, 1], [], []>} : vector<36x128xbf16>, vector<128x128xbf16>, vector<36x128xf32> -> vector<36x128xf32>
    %c0_6 = arith.constant 0 : index
    %c0_7 = arith.constant 0 : index
    %5 = vector.load %arg4[%c0_6, %c0_7] : memref<1x128xf32, #tpu.memory_space<vmem>>, vector<1x128xf32>
    %6 = vector.broadcast %5 : vector<1x128xf32> to vector<36x128xf32>
    %7 = arith.addf %4, %6 : vector<36x128xf32>
    %cst_8 = arith.constant 0.000000e+00 : f32
    %8 = vector.broadcast %cst_8 : f32 to vector<36x128xf32>
    %9 = arith.cmpf oge, %7, %8 : vector<36x128xf32>
    %c0_9 = arith.constant 0 : index
    %10 = memref.load %arg11[%c0_9] : memref<4xf32, #tpu.memory_space<smem>>
    %11 = vector.broadcast %10 : f32 to vector<36x128xf32>
    %12 = arith.mulf %11, %7 : vector<36x128xf32>
    %13 = arith.select %9, %7, %12 : vector<36x128xi1>, vector<36x128xf32>
    %14 = vector.broadcast %0 : vector<36x1xf32> to vector<36x128xf32>
    %15 = arith.mulf %13, %14 : vector<36x128xf32>
    %c0_10 = arith.constant 0 : index
    %c0_11 = arith.constant 0 : index
    %16 = vector.load %arg6[%c0_10, %c0_11] : memref<1x8xf32, #tpu.memory_space<vmem>>, vector<1x8xf32>
    %c1 = arith.constant 1 : index
    %17 = memref.load %arg11[%c1] : memref<4xf32, #tpu.memory_space<smem>>
    %cst_12 = arith.constant 0.000000e+00 : f32
    %18 = vector.broadcast %cst_12 : f32 to vector<7x128xf32>
    %19 = vector.extract_strided_slice %15 {offsets = [0, 0], sizes = [29, 128], strides = [1, 1]} : vector<36x128xf32> to vector<29x128xf32>
    %20 = tpu.concatenate %18, %19 in 0 : vector<7x128xf32>, vector<29x128xf32> -> vector<36x128xf32>
    %21 = arith.truncf %20 : vector<36x128xf32> to vector<36x128xbf16>
    %c0_13 = arith.constant 0 : index
    %c0_14 = arith.constant 0 : index
    %22 = vector.load %arg5[%c0_13, %c0_14] : memref<1152x8xbf16, #tpu.memory_space<vmem>>, vector<128x8xbf16>
    %cst_15 = arith.constant dense<0.000000e+00> : vector<36x8xf32>
    %23 = tpu.matmul %21, %22, %cst_15 {dimension_numbers = #tpu.dot_dimension_numbers<[1], [0], [0], [1], [0, 0, 1, 1], [], []>} : vector<36x128xbf16>, vector<128x8xbf16>, vector<36x8xf32> -> vector<36x8xf32>
    %cst_16 = arith.constant 0.000000e+00 : f32
    %24 = vector.broadcast %cst_16 : f32 to vector<6x128xf32>
    %25 = vector.extract_strided_slice %15 {offsets = [0, 0], sizes = [30, 128], strides = [1, 1]} : vector<36x128xf32> to vector<30x128xf32>
    %26 = tpu.concatenate %24, %25 in 0 : vector<6x128xf32>, vector<30x128xf32> -> vector<36x128xf32>
    %27 = arith.truncf %26 : vector<36x128xf32> to vector<36x128xbf16>
    %c128 = arith.constant 128 : index
    %c0_17 = arith.constant 0 : index
    %28 = vector.load %arg5[%c128, %c0_17] : memref<1152x8xbf16, #tpu.memory_space<vmem>>, vector<128x8xbf16>
    %cst_18 = arith.constant dense<0.000000e+00> : vector<36x8xf32>
    %29 = tpu.matmul %27, %28, %cst_18 {dimension_numbers = #tpu.dot_dimension_numbers<[1], [0], [0], [1], [0, 0, 1, 1], [], []>} : vector<36x128xbf16>, vector<128x8xbf16>, vector<36x8xf32> -> vector<36x8xf32>
    %30 = arith.addf %23, %29 : vector<36x8xf32>
    %cst_19 = arith.constant 0.000000e+00 : f32
    %31 = vector.broadcast %cst_19 : f32 to vector<5x128xf32>
    %32 = vector.extract_strided_slice %15 {offsets = [0, 0], sizes = [31, 128], strides = [1, 1]} : vector<36x128xf32> to vector<31x128xf32>
    %33 = tpu.concatenate %31, %32 in 0 : vector<5x128xf32>, vector<31x128xf32> -> vector<36x128xf32>
    %34 = arith.truncf %33 : vector<36x128xf32> to vector<36x128xbf16>
    %c256 = arith.constant 256 : index
    %c0_20 = arith.constant 0 : index
    %35 = vector.load %arg5[%c256, %c0_20] : memref<1152x8xbf16, #tpu.memory_space<vmem>>, vector<128x8xbf16>
    %cst_21 = arith.constant dense<0.000000e+00> : vector<36x8xf32>
    %36 = tpu.matmul %34, %35, %cst_21 {dimension_numbers = #tpu.dot_dimension_numbers<[1], [0], [0], [1], [0, 0, 1, 1], [], []>} : vector<36x128xbf16>, vector<128x8xbf16>, vector<36x8xf32> -> vector<36x8xf32>
    %37 = arith.addf %30, %36 : vector<36x8xf32>
    %cst_22 = arith.constant 0.000000e+00 : f32
    %38 = vector.broadcast %cst_22 : f32 to vector<1x128xf32>
    %39 = vector.extract_strided_slice %15 {offsets = [0, 0], sizes = [35, 128], strides = [1, 1]} : vector<36x128xf32> to vector<35x128xf32>
    %40 = tpu.concatenate %38, %39 in 0 : vector<1x128xf32>, vector<35x128xf32> -> vector<36x128xf32>
    %41 = arith.truncf %40 : vector<36x128xf32> to vector<36x128xbf16>
    %c384 = arith.constant 384 : index
    %c0_23 = arith.constant 0 : index
    %42 = vector.load %arg5[%c384, %c0_23] : memref<1152x8xbf16, #tpu.memory_space<vmem>>, vector<128x8xbf16>
    %cst_24 = arith.constant dense<0.000000e+00> : vector<36x8xf32>
    %43 = tpu.matmul %41, %42, %cst_24 {dimension_numbers = #tpu.dot_dimension_numbers<[1], [0], [0], [1], [0, 0, 1, 1], [], []>} : vector<36x128xbf16>, vector<128x8xbf16>, vector<36x8xf32> -> vector<36x8xf32>
    %44 = arith.addf %37, %43 : vector<36x8xf32>
    %45 = arith.truncf %15 : vector<36x128xf32> to vector<36x128xbf16>
    %c512 = arith.constant 512 : index
    %c0_25 = arith.constant 0 : index
    %46 = vector.load %arg5[%c512, %c0_25] : memref<1152x8xbf16, #tpu.memory_space<vmem>>, vector<128x8xbf16>
    %cst_26 = arith.constant dense<0.000000e+00> : vector<36x8xf32>
    %47 = tpu.matmul %45, %46, %cst_26 {dimension_numbers = #tpu.dot_dimension_numbers<[1], [0], [0], [1], [0, 0, 1, 1], [], []>} : vector<36x128xbf16>, vector<128x8xbf16>, vector<36x8xf32> -> vector<36x8xf32>
    %48 = arith.addf %44, %47 : vector<36x8xf32>
    %cst_27 = arith.constant 0.000000e+00 : f32
    %49 = vector.broadcast %cst_27 : f32 to vector<1x128xf32>
    %50 = vector.extract_strided_slice %15 {offsets = [1, 0], sizes = [35, 128], strides = [1, 1]} : vector<36x128xf32> to vector<35x128xf32>
    %51 = tpu.concatenate %50, %49 in 0 : vector<35x128xf32>, vector<1x128xf32> -> vector<36x128xf32>
    %52 = arith.truncf %51 : vector<36x128xf32> to vector<36x128xbf16>
    %c640 = arith.constant 640 : index
    %c0_28 = arith.constant 0 : index
    %53 = vector.load %arg5[%c640, %c0_28] : memref<1152x8xbf16, #tpu.memory_space<vmem>>, vector<128x8xbf16>
    %cst_29 = arith.constant dense<0.000000e+00> : vector<36x8xf32>
    %54 = tpu.matmul %52, %53, %cst_29 {dimension_numbers = #tpu.dot_dimension_numbers<[1], [0], [0], [1], [0, 0, 1, 1], [], []>} : vector<36x128xbf16>, vector<128x8xbf16>, vector<36x8xf32> -> vector<36x8xf32>
    %55 = arith.addf %48, %54 : vector<36x8xf32>
    %cst_30 = arith.constant 0.000000e+00 : f32
    %56 = vector.broadcast %cst_30 : f32 to vector<5x128xf32>
    %57 = vector.extract_strided_slice %15 {offsets = [5, 0], sizes = [31, 128], strides = [1, 1]} : vector<36x128xf32> to vector<31x128xf32>
    %58 = tpu.concatenate %57, %56 in 0 : vector<31x128xf32>, vector<5x128xf32> -> vector<36x128xf32>
    %59 = arith.truncf %58 : vector<36x128xf32> to vector<36x128xbf16>
    %c768 = arith.constant 768 : index
    %c0_31 = arith.constant 0 : index
    %60 = vector.load %arg5[%c768, %c0_31] : memref<1152x8xbf16, #tpu.memory_space<vmem>>, vector<128x8xbf16>
    %cst_32 = arith.constant dense<0.000000e+00> : vector<36x8xf32>
    %61 = tpu.matmul %59, %60, %cst_32 {dimension_numbers = #tpu.dot_dimension_numbers<[1], [0], [0], [1], [0, 0, 1, 1], [], []>} : vector<36x128xbf16>, vector<128x8xbf16>, vector<36x8xf32> -> vector<36x8xf32>
    %62 = arith.addf %55, %61 : vector<36x8xf32>
    %cst_33 = arith.constant 0.000000e+00 : f32
    %63 = vector.broadcast %cst_33 : f32 to vector<6x128xf32>
    %64 = vector.extract_strided_slice %15 {offsets = [6, 0], sizes = [30, 128], strides = [1, 1]} : vector<36x128xf32> to vector<30x128xf32>
    %65 = tpu.concatenate %64, %63 in 0 : vector<30x128xf32>, vector<6x128xf32> -> vector<36x128xf32>
    %66 = arith.truncf %65 : vector<36x128xf32> to vector<36x128xbf16>
    %c896 = arith.constant 896 : index
    %c0_34 = arith.constant 0 : index
    %67 = vector.load %arg5[%c896, %c0_34] : memref<1152x8xbf16, #tpu.memory_space<vmem>>, vector<128x8xbf16>
    %cst_35 = arith.constant dense<0.000000e+00> : vector<36x8xf32>
    %68 = tpu.matmul %66, %67, %cst_35 {dimension_numbers = #tpu.dot_dimension_numbers<[1], [0], [0], [1], [0, 0, 1, 1], [], []>} : vector<36x128xbf16>, vector<128x8xbf16>, vector<36x8xf32> -> vector<36x8xf32>
    %69 = arith.addf %62, %68 : vector<36x8xf32>
    %cst_36 = arith.constant 0.000000e+00 : f32
    %70 = vector.broadcast %cst_36 : f32 to vector<7x128xf32>
    %71 = vector.extract_strided_slice %15 {offsets = [7, 0], sizes = [29, 128], strides = [1, 1]} : vector<36x128xf32> to vector<29x128xf32>
    %72 = tpu.concatenate %71, %70 in 0 : vector<29x128xf32>, vector<7x128xf32> -> vector<36x128xf32>
    %73 = arith.truncf %72 : vector<36x128xf32> to vector<36x128xbf16>
    %c1024 = arith.constant 1024 : index
    %c0_37 = arith.constant 0 : index
    %74 = vector.load %arg5[%c1024, %c0_37] : memref<1152x8xbf16, #tpu.memory_space<vmem>>, vector<128x8xbf16>
    %cst_38 = arith.constant dense<0.000000e+00> : vector<36x8xf32>
    %75 = tpu.matmul %73, %74, %cst_38 {dimension_numbers = #tpu.dot_dimension_numbers<[1], [0], [0], [1], [0, 0, 1, 1], [], []>} : vector<36x128xbf16>, vector<128x8xbf16>, vector<36x8xf32> -> vector<36x8xf32>
    %76 = arith.addf %69, %75 : vector<36x8xf32>
    %77 = vector.broadcast %16 : vector<1x8xf32> to vector<36x8xf32>
    %78 = arith.addf %76, %77 : vector<36x8xf32>
    %cst_39 = arith.constant 0.000000e+00 : f32
    %79 = vector.broadcast %cst_39 : f32 to vector<36x8xf32>
    %80 = arith.cmpf oge, %78, %79 : vector<36x8xf32>
    %81 = vector.broadcast %17 : f32 to vector<36x8xf32>
    %82 = arith.mulf %81, %78 : vector<36x8xf32>
    %83 = arith.select %80, %78, %82 : vector<36x8xi1>, vector<36x8xf32>
    %84 = vector.broadcast %0 : vector<36x1xf32> to vector<36x8xf32>
    %85 = arith.mulf %83, %84 : vector<36x8xf32>
    %c0_40 = arith.constant 0 : index
    %c0_41 = arith.constant 0 : index
    %86 = vector.load %arg8[%c0_40, %c0_41] : memref<1x128xf32, #tpu.memory_space<vmem>>, vector<1x128xf32>
    %c2 = arith.constant 2 : index
    %87 = memref.load %arg11[%c2] : memref<4xf32, #tpu.memory_space<smem>>
    %cst_42 = arith.constant 0.000000e+00 : f32
    %88 = vector.broadcast %cst_42 : f32 to vector<7x8xf32>
    %89 = vector.extract_strided_slice %85 {offsets = [0, 0], sizes = [29, 8], strides = [1, 1]} : vector<36x8xf32> to vector<29x8xf32>
    %90 = tpu.concatenate %88, %89 in 0 : vector<7x8xf32>, vector<29x8xf32> -> vector<36x8xf32>
    %91 = arith.truncf %90 : vector<36x8xf32> to vector<36x8xbf16>
    %c0_43 = arith.constant 0 : index
    %c0_44 = arith.constant 0 : index
    %92 = vector.load %arg7[%c0_43, %c0_44] : memref<72x128xbf16, #tpu.memory_space<vmem>>, vector<8x128xbf16>
    %cst_45 = arith.constant dense<0.000000e+00> : vector<36x128xf32>
    %93 = tpu.matmul %91, %92, %cst_45 {dimension_numbers = #tpu.dot_dimension_numbers<[1], [0], [0], [1], [0, 0, 1, 1], [], []>} : vector<36x8xbf16>, vector<8x128xbf16>, vector<36x128xf32> -> vector<36x128xf32>
    %cst_46 = arith.constant 0.000000e+00 : f32
    %94 = vector.broadcast %cst_46 : f32 to vector<6x8xf32>
    %95 = vector.extract_strided_slice %85 {offsets = [0, 0], sizes = [30, 8], strides = [1, 1]} : vector<36x8xf32> to vector<30x8xf32>
    %96 = tpu.concatenate %94, %95 in 0 : vector<6x8xf32>, vector<30x8xf32> -> vector<36x8xf32>
    %97 = arith.truncf %96 : vector<36x8xf32> to vector<36x8xbf16>
    %c8 = arith.constant 8 : index
    %c0_47 = arith.constant 0 : index
    %98 = vector.load %arg7[%c8, %c0_47] : memref<72x128xbf16, #tpu.memory_space<vmem>>, vector<8x128xbf16>
    %cst_48 = arith.constant dense<0.000000e+00> : vector<36x128xf32>
    %99 = tpu.matmul %97, %98, %cst_48 {dimension_numbers = #tpu.dot_dimension_numbers<[1], [0], [0], [1], [0, 0, 1, 1], [], []>} : vector<36x8xbf16>, vector<8x128xbf16>, vector<36x128xf32> -> vector<36x128xf32>
    %100 = arith.addf %93, %99 : vector<36x128xf32>
    %cst_49 = arith.constant 0.000000e+00 : f32
    %101 = vector.broadcast %cst_49 : f32 to vector<5x8xf32>
    %102 = vector.extract_strided_slice %85 {offsets = [0, 0], sizes = [31, 8], strides = [1, 1]} : vector<36x8xf32> to vector<31x8xf32>
    %103 = tpu.concatenate %101, %102 in 0 : vector<5x8xf32>, vector<31x8xf32> -> vector<36x8xf32>
    %104 = arith.truncf %103 : vector<36x8xf32> to vector<36x8xbf16>
    %c16 = arith.constant 16 : index
    %c0_50 = arith.constant 0 : index
    %105 = vector.load %arg7[%c16, %c0_50] : memref<72x128xbf16, #tpu.memory_space<vmem>>, vector<8x128xbf16>
    %cst_51 = arith.constant dense<0.000000e+00> : vector<36x128xf32>
    %106 = tpu.matmul %104, %105, %cst_51 {dimension_numbers = #tpu.dot_dimension_numbers<[1], [0], [0], [1], [0, 0, 1, 1], [], []>} : vector<36x8xbf16>, vector<8x128xbf16>, vector<36x128xf32> -> vector<36x128xf32>
    %107 = arith.addf %100, %106 : vector<36x128xf32>
    %cst_52 = arith.constant 0.000000e+00 : f32
    %108 = vector.broadcast %cst_52 : f32 to vector<1x8xf32>
    %109 = vector.extract_strided_slice %85 {offsets = [0, 0], sizes = [35, 8], strides = [1, 1]} : vector<36x8xf32> to vector<35x8xf32>
    %110 = tpu.concatenate %108, %109 in 0 : vector<1x8xf32>, vector<35x8xf32> -> vector<36x8xf32>
    %111 = arith.truncf %110 : vector<36x8xf32> to vector<36x8xbf16>
    %c24 = arith.constant 24 : index
    %c0_53 = arith.constant 0 : index
    %112 = vector.load %arg7[%c24, %c0_53] : memref<72x128xbf16, #tpu.memory_space<vmem>>, vector<8x128xbf16>
    %cst_54 = arith.constant dense<0.000000e+00> : vector<36x128xf32>
    %113 = tpu.matmul %111, %112, %cst_54 {dimension_numbers = #tpu.dot_dimension_numbers<[1], [0], [0], [1], [0, 0, 1, 1], [], []>} : vector<36x8xbf16>, vector<8x128xbf16>, vector<36x128xf32> -> vector<36x128xf32>
    %114 = arith.addf %107, %113 : vector<36x128xf32>
    %115 = arith.truncf %85 : vector<36x8xf32> to vector<36x8xbf16>
    %c32 = arith.constant 32 : index
    %c0_55 = arith.constant 0 : index
    %116 = vector.load %arg7[%c32, %c0_55] : memref<72x128xbf16, #tpu.memory_space<vmem>>, vector<8x128xbf16>
    %cst_56 = arith.constant dense<0.000000e+00> : vector<36x128xf32>
    %117 = tpu.matmul %115, %116, %cst_56 {dimension_numbers = #tpu.dot_dimension_numbers<[1], [0], [0], [1], [0, 0, 1, 1], [], []>} : vector<36x8xbf16>, vector<8x128xbf16>, vector<36x128xf32> -> vector<36x128xf32>
    %118 = arith.addf %114, %117 : vector<36x128xf32>
    %cst_57 = arith.constant 0.000000e+00 : f32
    %119 = vector.broadcast %cst_57 : f32 to vector<1x8xf32>
    %120 = vector.extract_strided_slice %85 {offsets = [1, 0], sizes = [35, 8], strides = [1, 1]} : vector<36x8xf32> to vector<35x8xf32>
    %121 = tpu.concatenate %120, %119 in 0 : vector<35x8xf32>, vector<1x8xf32> -> vector<36x8xf32>
    %122 = arith.truncf %121 : vector<36x8xf32> to vector<36x8xbf16>
    %c40 = arith.constant 40 : index
    %c0_58 = arith.constant 0 : index
    %123 = vector.load %arg7[%c40, %c0_58] : memref<72x128xbf16, #tpu.memory_space<vmem>>, vector<8x128xbf16>
    %cst_59 = arith.constant dense<0.000000e+00> : vector<36x128xf32>
    %124 = tpu.matmul %122, %123, %cst_59 {dimension_numbers = #tpu.dot_dimension_numbers<[1], [0], [0], [1], [0, 0, 1, 1], [], []>} : vector<36x8xbf16>, vector<8x128xbf16>, vector<36x128xf32> -> vector<36x128xf32>
    %125 = arith.addf %118, %124 : vector<36x128xf32>
    %cst_60 = arith.constant 0.000000e+00 : f32
    %126 = vector.broadcast %cst_60 : f32 to vector<5x8xf32>
    %127 = vector.extract_strided_slice %85 {offsets = [5, 0], sizes = [31, 8], strides = [1, 1]} : vector<36x8xf32> to vector<31x8xf32>
    %128 = tpu.concatenate %127, %126 in 0 : vector<31x8xf32>, vector<5x8xf32> -> vector<36x8xf32>
    %129 = arith.truncf %128 : vector<36x8xf32> to vector<36x8xbf16>
    %c48 = arith.constant 48 : index
    %c0_61 = arith.constant 0 : index
    %130 = vector.load %arg7[%c48, %c0_61] : memref<72x128xbf16, #tpu.memory_space<vmem>>, vector<8x128xbf16>
    %cst_62 = arith.constant dense<0.000000e+00> : vector<36x128xf32>
    %131 = tpu.matmul %129, %130, %cst_62 {dimension_numbers = #tpu.dot_dimension_numbers<[1], [0], [0], [1], [0, 0, 1, 1], [], []>} : vector<36x8xbf16>, vector<8x128xbf16>, vector<36x128xf32> -> vector<36x128xf32>
    %132 = arith.addf %125, %131 : vector<36x128xf32>
    %cst_63 = arith.constant 0.000000e+00 : f32
    %133 = vector.broadcast %cst_63 : f32 to vector<6x8xf32>
    %134 = vector.extract_strided_slice %85 {offsets = [6, 0], sizes = [30, 8], strides = [1, 1]} : vector<36x8xf32> to vector<30x8xf32>
    %135 = tpu.concatenate %134, %133 in 0 : vector<30x8xf32>, vector<6x8xf32> -> vector<36x8xf32>
    %136 = arith.truncf %135 : vector<36x8xf32> to vector<36x8xbf16>
    %c56 = arith.constant 56 : index
    %c0_64 = arith.constant 0 : index
    %137 = vector.load %arg7[%c56, %c0_64] : memref<72x128xbf16, #tpu.memory_space<vmem>>, vector<8x128xbf16>
    %cst_65 = arith.constant dense<0.000000e+00> : vector<36x128xf32>
    %138 = tpu.matmul %136, %137, %cst_65 {dimension_numbers = #tpu.dot_dimension_numbers<[1], [0], [0], [1], [0, 0, 1, 1], [], []>} : vector<36x8xbf16>, vector<8x128xbf16>, vector<36x128xf32> -> vector<36x128xf32>
    %139 = arith.addf %132, %138 : vector<36x128xf32>
    %cst_66 = arith.constant 0.000000e+00 : f32
    %140 = vector.broadcast %cst_66 : f32 to vector<7x8xf32>
    %141 = vector.extract_strided_slice %85 {offsets = [7, 0], sizes = [29, 8], strides = [1, 1]} : vector<36x8xf32> to vector<29x8xf32>
    %142 = tpu.concatenate %141, %140 in 0 : vector<29x8xf32>, vector<7x8xf32> -> vector<36x8xf32>
    %143 = arith.truncf %142 : vector<36x8xf32> to vector<36x8xbf16>
    %c64 = arith.constant 64 : index
    %c0_67 = arith.constant 0 : index
    %144 = vector.load %arg7[%c64, %c0_67] : memref<72x128xbf16, #tpu.memory_space<vmem>>, vector<8x128xbf16>
    %cst_68 = arith.constant dense<0.000000e+00> : vector<36x128xf32>
    %145 = tpu.matmul %143, %144, %cst_68 {dimension_numbers = #tpu.dot_dimension_numbers<[1], [0], [0], [1], [0, 0, 1, 1], [], []>} : vector<36x8xbf16>, vector<8x128xbf16>, vector<36x128xf32> -> vector<36x128xf32>
    %146 = arith.addf %139, %145 : vector<36x128xf32>
    %147 = vector.broadcast %86 : vector<1x128xf32> to vector<36x128xf32>
    %148 = arith.addf %146, %147 : vector<36x128xf32>
    %cst_69 = arith.constant 0.000000e+00 : f32
    %149 = vector.broadcast %cst_69 : f32 to vector<36x128xf32>
    %150 = arith.cmpf oge, %148, %149 : vector<36x128xf32>
    %151 = vector.broadcast %87 : f32 to vector<36x128xf32>
    %152 = arith.mulf %151, %148 : vector<36x128xf32>
    %153 = arith.select %150, %148, %152 : vector<36x128xi1>, vector<36x128xf32>
    %154 = arith.subf %153, %15 : vector<36x128xf32>
    %155 = vector.broadcast %0 : vector<36x1xf32> to vector<36x128xf32>
    %156 = arith.mulf %154, %155 : vector<36x128xf32>
    %c0_70 = arith.constant 0 : index
    %c0_71 = arith.constant 0 : index
    %157 = vector.load %arg10[%c0_70, %c0_71] : memref<1x8xf32, #tpu.memory_space<vmem>>, vector<1x8xf32>
    %c3 = arith.constant 3 : index
    %158 = memref.load %arg11[%c3] : memref<4xf32, #tpu.memory_space<smem>>
    %cst_72 = arith.constant 0.000000e+00 : f32
    %159 = vector.broadcast %cst_72 : f32 to vector<7x128xf32>
    %160 = vector.extract_strided_slice %156 {offsets = [0, 0], sizes = [29, 128], strides = [1, 1]} : vector<36x128xf32> to vector<29x128xf32>
    %161 = tpu.concatenate %159, %160 in 0 : vector<7x128xf32>, vector<29x128xf32> -> vector<36x128xf32>
    %162 = arith.truncf %161 : vector<36x128xf32> to vector<36x128xbf16>
    %c0_73 = arith.constant 0 : index
    %c0_74 = arith.constant 0 : index
    %163 = vector.load %arg9[%c0_73, %c0_74] : memref<1152x8xbf16, #tpu.memory_space<vmem>>, vector<128x8xbf16>
    %cst_75 = arith.constant dense<0.000000e+00> : vector<36x8xf32>
    %164 = tpu.matmul %162, %163, %cst_75 {dimension_numbers = #tpu.dot_dimension_numbers<[1], [0], [0], [1], [0, 0, 1, 1], [], []>} : vector<36x128xbf16>, vector<128x8xbf16>, vector<36x8xf32> -> vector<36x8xf32>
    %cst_76 = arith.constant 0.000000e+00 : f32
    %165 = vector.broadcast %cst_76 : f32 to vector<6x128xf32>
    %166 = vector.extract_strided_slice %156 {offsets = [0, 0], sizes = [30, 128], strides = [1, 1]} : vector<36x128xf32> to vector<30x128xf32>
    %167 = tpu.concatenate %165, %166 in 0 : vector<6x128xf32>, vector<30x128xf32> -> vector<36x128xf32>
    %168 = arith.truncf %167 : vector<36x128xf32> to vector<36x128xbf16>
    %c128_77 = arith.constant 128 : index
    %c0_78 = arith.constant 0 : index
    %169 = vector.load %arg9[%c128_77, %c0_78] : memref<1152x8xbf16, #tpu.memory_space<vmem>>, vector<128x8xbf16>
    %cst_79 = arith.constant dense<0.000000e+00> : vector<36x8xf32>
    %170 = tpu.matmul %168, %169, %cst_79 {dimension_numbers = #tpu.dot_dimension_numbers<[1], [0], [0], [1], [0, 0, 1, 1], [], []>} : vector<36x128xbf16>, vector<128x8xbf16>, vector<36x8xf32> -> vector<36x8xf32>
    %171 = arith.addf %164, %170 : vector<36x8xf32>
    %cst_80 = arith.constant 0.000000e+00 : f32
    %172 = vector.broadcast %cst_80 : f32 to vector<5x128xf32>
    %173 = vector.extract_strided_slice %156 {offsets = [0, 0], sizes = [31, 128], strides = [1, 1]} : vector<36x128xf32> to vector<31x128xf32>
    %174 = tpu.concatenate %172, %173 in 0 : vector<5x128xf32>, vector<31x128xf32> -> vector<36x128xf32>
    %175 = arith.truncf %174 : vector<36x128xf32> to vector<36x128xbf16>
    %c256_81 = arith.constant 256 : index
    %c0_82 = arith.constant 0 : index
    %176 = vector.load %arg9[%c256_81, %c0_82] : memref<1152x8xbf16, #tpu.memory_space<vmem>>, vector<128x8xbf16>
    %cst_83 = arith.constant dense<0.000000e+00> : vector<36x8xf32>
    %177 = tpu.matmul %175, %176, %cst_83 {dimension_numbers = #tpu.dot_dimension_numbers<[1], [0], [0], [1], [0, 0, 1, 1], [], []>} : vector<36x128xbf16>, vector<128x8xbf16>, vector<36x8xf32> -> vector<36x8xf32>
    %178 = arith.addf %171, %177 : vector<36x8xf32>
    %cst_84 = arith.constant 0.000000e+00 : f32
    %179 = vector.broadcast %cst_84 : f32 to vector<1x128xf32>
    %180 = vector.extract_strided_slice %156 {offsets = [0, 0], sizes = [35, 128], strides = [1, 1]} : vector<36x128xf32> to vector<35x128xf32>
    %181 = tpu.concatenate %179, %180 in 0 : vector<1x128xf32>, vector<35x128xf32> -> vector<36x128xf32>
    %182 = arith.truncf %181 : vector<36x128xf32> to vector<36x128xbf16>
    %c384_85 = arith.constant 384 : index
    %c0_86 = arith.constant 0 : index
    %183 = vector.load %arg9[%c384_85, %c0_86] : memref<1152x8xbf16, #tpu.memory_space<vmem>>, vector<128x8xbf16>
    %cst_87 = arith.constant dense<0.000000e+00> : vector<36x8xf32>
    %184 = tpu.matmul %182, %183, %cst_87 {dimension_numbers = #tpu.dot_dimension_numbers<[1], [0], [0], [1], [0, 0, 1, 1], [], []>} : vector<36x128xbf16>, vector<128x8xbf16>, vector<36x8xf32> -> vector<36x8xf32>
    %185 = arith.addf %178, %184 : vector<36x8xf32>
    %186 = arith.truncf %156 : vector<36x128xf32> to vector<36x128xbf16>
    %c512_88 = arith.constant 512 : index
    %c0_89 = arith.constant 0 : index
    %187 = vector.load %arg9[%c512_88, %c0_89] : memref<1152x8xbf16, #tpu.memory_space<vmem>>, vector<128x8xbf16>
    %cst_90 = arith.constant dense<0.000000e+00> : vector<36x8xf32>
    %188 = tpu.matmul %186, %187, %cst_90 {dimension_numbers = #tpu.dot_dimension_numbers<[1], [0], [0], [1], [0, 0, 1, 1], [], []>} : vector<36x128xbf16>, vector<128x8xbf16>, vector<36x8xf32> -> vector<36x8xf32>
    %189 = arith.addf %185, %188 : vector<36x8xf32>
    %cst_91 = arith.constant 0.000000e+00 : f32
    %190 = vector.broadcast %cst_91 : f32 to vector<1x128xf32>
    %191 = vector.extract_strided_slice %156 {offsets = [1, 0], sizes = [35, 128], strides = [1, 1]} : vector<36x128xf32> to vector<35x128xf32>
    %192 = tpu.concatenate %191, %190 in 0 : vector<35x128xf32>, vector<1x128xf32> -> vector<36x128xf32>
    %193 = arith.truncf %192 : vector<36x128xf32> to vector<36x128xbf16>
    %c640_92 = arith.constant 640 : index
    %c0_93 = arith.constant 0 : index
    %194 = vector.load %arg9[%c640_92, %c0_93] : memref<1152x8xbf16, #tpu.memory_space<vmem>>, vector<128x8xbf16>
    %cst_94 = arith.constant dense<0.000000e+00> : vector<36x8xf32>
    %195 = tpu.matmul %193, %194, %cst_94 {dimension_numbers = #tpu.dot_dimension_numbers<[1], [0], [0], [1], [0, 0, 1, 1], [], []>} : vector<36x128xbf16>, vector<128x8xbf16>, vector<36x8xf32> -> vector<36x8xf32>
    %196 = arith.addf %189, %195 : vector<36x8xf32>
    %cst_95 = arith.constant 0.000000e+00 : f32
    %197 = vector.broadcast %cst_95 : f32 to vector<5x128xf32>
    %198 = vector.extract_strided_slice %156 {offsets = [5, 0], sizes = [31, 128], strides = [1, 1]} : vector<36x128xf32> to vector<31x128xf32>
    %199 = tpu.concatenate %198, %197 in 0 : vector<31x128xf32>, vector<5x128xf32> -> vector<36x128xf32>
    %200 = arith.truncf %199 : vector<36x128xf32> to vector<36x128xbf16>
    %c768_96 = arith.constant 768 : index
    %c0_97 = arith.constant 0 : index
    %201 = vector.load %arg9[%c768_96, %c0_97] : memref<1152x8xbf16, #tpu.memory_space<vmem>>, vector<128x8xbf16>
    %cst_98 = arith.constant dense<0.000000e+00> : vector<36x8xf32>
    %202 = tpu.matmul %200, %201, %cst_98 {dimension_numbers = #tpu.dot_dimension_numbers<[1], [0], [0], [1], [0, 0, 1, 1], [], []>} : vector<36x128xbf16>, vector<128x8xbf16>, vector<36x8xf32> -> vector<36x8xf32>
    %203 = arith.addf %196, %202 : vector<36x8xf32>
    %cst_99 = arith.constant 0.000000e+00 : f32
    %204 = vector.broadcast %cst_99 : f32 to vector<6x128xf32>
    %205 = vector.extract_strided_slice %156 {offsets = [6, 0], sizes = [30, 128], strides = [1, 1]} : vector<36x128xf32> to vector<30x128xf32>
    %206 = tpu.concatenate %205, %204 in 0 : vector<30x128xf32>, vector<6x128xf32> -> vector<36x128xf32>
    %207 = arith.truncf %206 : vector<36x128xf32> to vector<36x128xbf16>
    %c896_100 = arith.constant 896 : index
    %c0_101 = arith.constant 0 : index
    %208 = vector.load %arg9[%c896_100, %c0_101] : memref<1152x8xbf16, #tpu.memory_space<vmem>>, vector<128x8xbf16>
    %cst_102 = arith.constant dense<0.000000e+00> : vector<36x8xf32>
    %209 = tpu.matmul %207, %208, %cst_102 {dimension_numbers = #tpu.dot_dimension_numbers<[1], [0], [0], [1], [0, 0, 1, 1], [], []>} : vector<36x128xbf16>, vector<128x8xbf16>, vector<36x8xf32> -> vector<36x8xf32>
    %210 = arith.addf %203, %209 : vector<36x8xf32>
    %cst_103 = arith.constant 0.000000e+00 : f32
    %211 = vector.broadcast %cst_103 : f32 to vector<7x128xf32>
    %212 = vector.extract_strided_slice %156 {offsets = [7, 0], sizes = [29, 128], strides = [1, 1]} : vector<36x128xf32> to vector<29x128xf32>
    %213 = tpu.concatenate %212, %211 in 0 : vector<29x128xf32>, vector<7x128xf32> -> vector<36x128xf32>
    %214 = arith.truncf %213 : vector<36x128xf32> to vector<36x128xbf16>
    %c1024_104 = arith.constant 1024 : index
    %c0_105 = arith.constant 0 : index
    %215 = vector.load %arg9[%c1024_104, %c0_105] : memref<1152x8xbf16, #tpu.memory_space<vmem>>, vector<128x8xbf16>
    %cst_106 = arith.constant dense<0.000000e+00> : vector<36x8xf32>
    %216 = tpu.matmul %214, %215, %cst_106 {dimension_numbers = #tpu.dot_dimension_numbers<[1], [0], [0], [1], [0, 0, 1, 1], [], []>} : vector<36x128xbf16>, vector<128x8xbf16>, vector<36x8xf32> -> vector<36x8xf32>
    %217 = arith.addf %210, %216 : vector<36x8xf32>
    %218 = vector.broadcast %157 : vector<1x8xf32> to vector<36x8xf32>
    %219 = arith.addf %217, %218 : vector<36x8xf32>
    %cst_107 = arith.constant 0.000000e+00 : f32
    %220 = vector.broadcast %cst_107 : f32 to vector<36x8xf32>
    %221 = arith.cmpf oge, %219, %220 : vector<36x8xf32>
    %222 = vector.broadcast %158 : f32 to vector<36x8xf32>
    %223 = arith.mulf %222, %219 : vector<36x8xf32>
    %224 = arith.select %221, %219, %223 : vector<36x8xi1>, vector<36x8xf32>
    %225 = arith.addf %224, %85 : vector<36x8xf32>
    %c0_108 = arith.constant 0 : index
    %c0_109 = arith.constant 0 : index
    %c0_110 = arith.constant 0 : index
    %226 = vector.load %arg12[%c0_108, %c0_109, %c0_110] : memref<1x36x8xf32, #tpu.memory_space<vmem>>, vector<1x36x8xf32>
    %227 = vector.shape_cast %226 : vector<1x36x8xf32> to vector<36x8xf32>
    %228 = vector.shape_cast %225 : vector<36x8xf32> to vector<1x36x8xf32>
    tpu.vector_store %arg12[%c0_108, %c0_109, %c0_110], %228 {strides = array<i32>} : memref<1x36x8xf32, #tpu.memory_space<vmem>>, vector<1x36x8xf32>,
    return
  }
  func.func @transform_0(%arg0: i32) -> (i32, i32) {
    %c0_i32 = arith.constant 0 : i32
    %c0_i32_0 = arith.constant 0 : i32
    %c0_i32_1 = arith.constant 0 : i32
    return %c0_i32, %c0_i32_0 : i32, i32
  }
  func.func @transform_1(%arg0: i32) -> (i32, i32, i32) {
    %c0_i32 = arith.constant 0 : i32
    %c0_i32_0 = arith.constant 0 : i32
    %c0_i32_1 = arith.constant 0 : i32
    return %arg0, %c0_i32, %c0_i32_0 : i32, i32, i32
  }
  func.func @transform_2(%arg0: i32) -> (i32, i32) {
    %c0_i32 = arith.constant 0 : i32
    %c0_i32_0 = arith.constant 0 : i32
    %c0_i32_1 = arith.constant 0 : i32
    return %c0_i32, %c0_i32_0 : i32, i32
  }
  func.func @transform_3(%arg0: i32) -> (i32, i32) {
    %c0_i32 = arith.constant 0 : i32
    %c0_i32_0 = arith.constant 0 : i32
    %c0_i32_1 = arith.constant 0 : i32
    return %c0_i32, %c0_i32_0 : i32, i32
  }
  func.func @transform_4(%arg0: i32) -> (i32, i32) {
    %c0_i32 = arith.constant 0 : i32
    %c0_i32_0 = arith.constant 0 : i32
    %c0_i32_1 = arith.constant 0 : i32
    return %c0_i32, %c0_i32_0 : i32, i32
  }
  func.func @transform_5(%arg0: i32) -> (i32, i32) {
    %c0_i32 = arith.constant 0 : i32
    %c0_i32_0 = arith.constant 0 : i32
    %c0_i32_1 = arith.constant 0 : i32
    return %c0_i32, %c0_i32_0 : i32, i32
  }
  func.func @transform_6(%arg0: i32) -> (i32, i32) {
    %c0_i32 = arith.constant 0 : i32
    %c0_i32_0 = arith.constant 0 : i32
    %c0_i32_1 = arith.constant 0 : i32
    return %c0_i32, %c0_i32_0 : i32, i32
  }
  func.func @transform_7(%arg0: i32) -> (i32, i32) {
    %c0_i32 = arith.constant 0 : i32
    %c0_i32_0 = arith.constant 0 : i32
    %c0_i32_1 = arith.constant 0 : i32
    return %c0_i32, %c0_i32_0 : i32, i32
  }
  func.func @transform_8(%arg0: i32) -> (i32, i32) {
    %c0_i32 = arith.constant 0 : i32
    %c0_i32_0 = arith.constant 0 : i32
    %c0_i32_1 = arith.constant 0 : i32
    return %c0_i32, %c0_i32_0 : i32, i32
  }
  func.func @transform_9(%arg0: i32) -> (i32, i32) {
    %c0_i32 = arith.constant 0 : i32
    %c0_i32_0 = arith.constant 0 : i32
    %c0_i32_1 = arith.constant 0 : i32
    return %c0_i32, %c0_i32_0 : i32, i32
  }
  func.func @transform_10(%arg0: i32) -> i32 {
    %c0_i32 = arith.constant 0 : i32
    %c0_i32_0 = arith.constant 0 : i32
    return %c0_i32 : i32
  }
  func.func @transform_11(%arg0: i32) -> (i32, i32, i32) {
    %c0_i32 = arith.constant 0 : i32
    %c0_i32_0 = arith.constant 0 : i32
    %c0_i32_1 = arith.constant 0 : i32
    return %arg0, %c0_i32, %c0_i32_0 : i32, i32, i32
  }
}

</mosaic_0001>

<llo_original>
// kernel: _lambda_.1
$region0: #{_lambda_.1}
  #allocation0 [shape = 'u32[]', space=smem, size = 0x4, offset = 0x4, fixed_abs, tag = 'smem constant byte address 0x4 - core index']
  #allocation1 [shape = 'u32[72,128]{1,0:T(1,128)}', space=vmem, size = 0x9000, scoped, tag = 'internal scratch']
  %s0 = inlined_call_operand.vmem [shape: f32[36,1], index: 0, kind: input, shape index: {}]
  %s1 = inlined_call_operand.vmem [shape: bf16[2,36,128], index: 1, kind: input, shape index: {}]
  %s2 = inlined_call_operand.vmem [shape: bf16[128,128], index: 2, kind: input, shape index: {}]
  %s3 = inlined_call_operand.vmem [shape: f32[1,128], index: 3, kind: input, shape index: {}]
  %s4 = inlined_call_operand.vmem [shape: bf16[1152,8], index: 4, kind: input, shape index: {}]
  %s5 = inlined_call_operand.vmem [shape: f32[1,8], index: 5, kind: input, shape index: {}]
  %s6 = inlined_call_operand.vmem [shape: bf16[72,128], index: 6, kind: input, shape index: {}]
  %s7 = inlined_call_operand.vmem [shape: f32[1,128], index: 7, kind: input, shape index: {}]
  %s8 = inlined_call_operand.vmem [shape: bf16[1152,8], index: 8, kind: input, shape index: {}]
  %s9 = inlined_call_operand.vmem [shape: f32[1,8], index: 9, kind: input, shape index: {}]
  %s10 = inlined_call_operand.vmem [shape: f32[4], index: 10, kind: input, shape index: {}]
  %s11 = inlined_call_operand.vmem [shape: f32[2,36,8], index: 11, kind: output, shape index: {}]
  %s12 = sld [smem:[#allocation0]]
  $region81: #{_lambda_.1} parent=0
    _
  %s14 = ssub.s32 1, %s12
  %s15 = scalar_select 0, %s14, %s12
  $region1: #{_lambda_.1} parent=0
    #allocation2 [shape = 'u8[512]{0}', space=smem, size = 0x200, scoped, tag = 'input window, operand 10, single buffered']
    #allocation3 [shape = 's32[2]{0}', space=sflag, size = 0x8, scoped, tag = 'scoped memory for _lambda_.1']
    %16 = vsyncpa [#allocation3], 0
    loop: start=0, step=1, limit=4
    $region2: #{_lambda_.1} parent=1 // loop_pre_header
      _
    $region3: #{_lambda_.1} parent=1 // loop_header
      %s18 = sphi 0, %s22
      %p19 = scmp.ge.s32.totalorder %s18, 4
      %s26 = sphi 0, %s26
      %s28 = sphi 0, %s26
      %s29 = sphi 0, %s28
      %s43 = sphi 0, %s29
      %s49 = sphi 0, %s51
      %s52 = sphi 0, %s49
      %s53 = sphi 0, %s52
      %s69 = sphi 0, %s53
      %s73 = sphi 0, %s73
      %s75 = sphi 0, %s73
      %s76 = sphi 0, %s75
      %s90 = sphi 0, %s76
      %s94 = sphi 0, %s94
      %s96 = sphi 0, %s94
      %s97 = sphi 0, %s96
      %s111 = sphi 0, %s97
      %s115 = sphi 0, %s115
      %s117 = sphi 0, %s115
      %s118 = sphi 0, %s117
      %s132 = sphi 0, %s118
      %s136 = sphi 0, %s136
      %s138 = sphi 0, %s136
      %s139 = sphi 0, %s138
      %s153 = sphi 0, %s139
      %s157 = sphi 0, %s157
      %s159 = sphi 0, %s157
      %s160 = sphi 0, %s159
      %s174 = sphi 0, %s160
      %s178 = sphi 0, %s178
      %s180 = sphi 0, %s178
      %s181 = sphi 0, %s180
      %s195 = sphi 0, %s181
      %s199 = sphi 0, %s199
      %s201 = sphi 0, %s199
      %s202 = sphi 0, %s201
      %s216 = sphi 0, %s202
      %s220 = sphi 0, %s220
      %s222 = sphi 0, %s220
      %s223 = sphi 0, %s222
      %s237 = sphi 0, %s223
      %s241 = sphi 0, %s241
      %s243 = sphi 0, %s241
      %s244 = sphi 0, %s243
      %s258 = sphi 0, %s244
      %s264 = sphi 0, %s266
      %s267 = sphi 0, %s264
      %s268 = sphi 0, %s267
      %s284 = sphi 0, %s268
    $region4: #{_lambda_.1} parent=1 // loop_header_branch
      %21 = sbr.rel (%p19) target = $region8
    $region5: #{_lambda_.1} parent=1 // loop_body
      %s23 = ssub.s32 %s18, 1
      %s24 = ssub.s32 %s18, 2
      %s25 = sadd.s32 %s18, 1
      %s27 = sadd.s32 %s26, 1
      %p30 = scmp.eq.s32.totalorder %s18, 1
      %p31 = scmp.ne.s32.totalorder %s26, %s28
      %p32 = scmp.eq.s32.totalorder %s18, 0
      %p33 = por %p31, %p32
      %p34 = scmp.ne.s32.totalorder %s26, %s28
      %p35 = scmp.eq.s32.totalorder %s23, 1
      %p36 = por %p34, %p35
      %p37 = scmp.ne.s32.totalorder %s28, %s29
      %p38 = scmp.eq.s32.totalorder %s23, 0
      %p39 = por %p37, %p38
      %p40 = scmp.ne.s32.totalorder %s28, %s29
      %p41 = scmp.eq.s32.totalorder %s24, 1
      %p42 = por %p40, %p41
      %p44 = scmp.ne.s32.totalorder %s29, %s43
      %p45 = scmp.eq.s32.totalorder %s24, 0
      %p46 = por %p44, %p45
      %s47 = ssub.s32 %s18, %s25
      %p48 = scmp.eq.s32.totalorder %s47, 0
      %s50 = sadd.s32 %s49, 1
      %s51 = scalar_select %p48, %s49, %s50
      %p54 = pneg %p48
      %p55 = scmp.eq.s32.totalorder %s18, 1
      %p56 = por %p54, %p55
      %p57 = scmp.ne.s32.totalorder %s49, %s52
      %p58 = scmp.eq.s32.totalorder %s18, 0
      %p59 = por %p57, %p58
      %p60 = scmp.ne.s32.totalorder %s49, %s52
      %p61 = scmp.eq.s32.totalorder %s23, 1
      %p62 = por %p60, %p61
      %p63 = scmp.ne.s32.totalorder %s52, %s53
      %p64 = scmp.eq.s32.totalorder %s23, 0
      %p65 = por %p63, %p64
      %p66 = scmp.ne.s32.totalorder %s52, %s53
      %p67 = scmp.eq.s32.totalorder %s24, 1
      %p68 = por %p66, %p67
      %p70 = scmp.ne.s32.totalorder %s53, %s69
      %p71 = scmp.eq.s32.totalorder %s24, 0
      %p72 = por %p70, %p71
      %s74 = sadd.s32 %s73, 1
      %p77 = scmp.eq.s32.totalorder %s18, 1
      %p78 = scmp.ne.s32.totalorder %s73, %s75
      %p79 = scmp.eq.s32.totalorder %s18, 0
      %p80 = por %p78, %p79
      %p81 = scmp.ne.s32.totalorder %s73, %s75
      %p82 = scmp.eq.s32.totalorder %s23, 1
      %p83 = por %p81, %p82
      %p84 = scmp.ne.s32.totalorder %s75, %s76
      %p85 = scmp.eq.s32.totalorder %s23, 0
      %p86 = por %p84, %p85
      %p87 = scmp.ne.s32.totalorder %s75, %s76
      %p88 = scmp.eq.s32.totalorder %s24, 1
      %p89 = por %p87, %p88
      %p91 = scmp.ne.s32.totalorder %s76, %s90
      %p92 = scmp.eq.s32.totalorder %s24, 0
      %p93 = por %p91, %p92
      %s95 = sadd.s32 %s94, 1
      %p98 = scmp.eq.s32.totalorder %s18, 1
      %p99 = scmp.ne.s32.totalorder %s94, %s96
      %p100 = scmp.eq.s32.totalorder %s18, 0
      %p101 = por %p99, %p100
      %p102 = scmp.ne.s32.totalorder %s94, %s96
      %p103 = scmp.eq.s32.totalorder %s23, 1
      %p104 = por %p102, %p103
      %p105 = scmp.ne.s32.totalorder %s96, %s97
      %p106 = scmp.eq.s32.totalorder %s23, 0
      %p107 = por %p105, %p106
      %p108 = scmp.ne.s32.totalorder %s96, %s97
      %p109 = scmp.eq.s32.totalorder %s24, 1
      %p110 = por %p108, %p109
      %p112 = scmp.ne.s32.totalorder %s97, %s111
      %p113 = scmp.eq.s32.totalorder %s24, 0
      %p114 = por %p112, %p113
      %s116 = sadd.s32 %s115, 1
      %p119 = scmp.eq.s32.totalorder %s18, 1
      %p120 = scmp.ne.s32.totalorder %s115, %s117
      %p121 = scmp.eq.s32.totalorder %s18, 0
      %p122 = por %p120, %p121
      %p123 = scmp.ne.s32.totalorder %s115, %s117
      %p124 = scmp.eq.s32.totalorder %s23, 1
      %p125 = por %p123, %p124
      %p126 = scmp.ne.s32.totalorder %s117, %s118
      %p127 = scmp.eq.s32.totalorder %s23, 0
      %p128 = por %p126, %p127
      %p129 = scmp.ne.s32.totalorder %s117, %s118
      %p130 = scmp.eq.s32.totalorder %s24, 1
      %p131 = por %p129, %p130
      %p133 = scmp.ne.s32.totalorder %s118, %s132
      %p134 = scmp.eq.s32.totalorder %s24, 0
      %p135 = por %p133, %p134
      %s137 = sadd.s32 %s136, 1
      %p140 = scmp.eq.s32.totalorder %s18, 1
      %p141 = scmp.ne.s32.totalorder %s136, %s138
      %p142 = scmp.eq.s32.totalorder %s18, 0
      %p143 = por %p141, %p142
      %p144 = scmp.ne.s32.totalorder %s136, %s138
      %p145 = scmp.eq.s32.totalorder %s23, 1
      %p146 = por %p144, %p145
      %p147 = scmp.ne.s32.totalorder %s138, %s139
      %p148 = scmp.eq.s32.totalorder %s23, 0
      %p149 = por %p147, %p148
      %p150 = scmp.ne.s32.totalorder %s138, %s139
      %p151 = scmp.eq.s32.totalorder %s24, 1
      %p152 = por %p150, %p151
      %p154 = scmp.ne.s32.totalorder %s139, %s153
      %p155 = scmp.eq.s32.totalorder %s24, 0
      %p156 = por %p154, %p155
      %s158 = sadd.s32 %s157, 1
      %p161 = scmp.eq.s32.totalorder %s18, 1
      %p162 = scmp.ne.s32.totalorder %s157, %s159
      %p163 = scmp.eq.s32.totalorder %s18, 0
      %p164 = por %p162, %p163
      %p165 = scmp.ne.s32.totalorder %s157, %s159
      %p166 = scmp.eq.s32.totalorder %s23, 1
      %p167 = por %p165, %p166
      %p168 = scmp.ne.s32.totalorder %s159, %s160
      %p169 = scmp.eq.s32.totalorder %s23, 0
      %p170 = por %p168, %p169
      %p171 = scmp.ne.s32.totalorder %s159, %s160
      %p172 = scmp.eq.s32.totalorder %s24, 1
      %p173 = por %p171, %p172
      %p175 = scmp.ne.s32.totalorder %s160, %s174
      %p176 = scmp.eq.s32.totalorder %s24, 0
      %p177 = por %p175, %p176
      %s179 = sadd.s32 %s178, 1
      %p182 = scmp.eq.s32.totalorder %s18, 1
      %p183 = scmp.ne.s32.totalorder %s178, %s180
      %p184 = scmp.eq.s32.totalorder %s18, 0
      %p185 = por %p183, %p184
      %p186 = scmp.ne.s32.totalorder %s178, %s180
      %p187 = scmp.eq.s32.totalorder %s23, 1
      %p188 = por %p186, %p187
      %p189 = scmp.ne.s32.totalorder %s180, %s181
      %p190 = scmp.eq.s32.totalorder %s23, 0
      %p191 = por %p189, %p190
      %p192 = scmp.ne.s32.totalorder %s180, %s181
      %p193 = scmp.eq.s32.totalorder %s24, 1
      %p194 = por %p192, %p193
      %p196 = scmp.ne.s32.totalorder %s181, %s195
      %p197 = scmp.eq.s32.totalorder %s24, 0
      %p198 = por %p196, %p197
      %s200 = sadd.s32 %s199, 1
      %p203 = scmp.eq.s32.totalorder %s18, 1
      %p204 = scmp.ne.s32.totalorder %s199, %s201
      %p205 = scmp.eq.s32.totalorder %s18, 0
      %p206 = por %p204, %p205
      %p207 = scmp.ne.s32.totalorder %s199, %s201
      %p208 = scmp.eq.s32.totalorder %s23, 1
      %p209 = por %p207, %p208
      %p210 = scmp.ne.s32.totalorder %s201, %s202
      %p211 = scmp.eq.s32.totalorder %s23, 0
      %p212 = por %p210, %p211
      %p213 = scmp.ne.s32.totalorder %s201, %s202
      %p214 = scmp.eq.s32.totalorder %s24, 1
      %p215 = por %p213, %p214
      %p217 = scmp.ne.s32.totalorder %s202, %s216
      %p218 = scmp.eq.s32.totalorder %s24, 0
      %p219 = por %p217, %p218
      %s221 = sadd.s32 %s220, 1
      %p224 = scmp.eq.s32.totalorder %s18, 1
      %p225 = scmp.ne.s32.totalorder %s220, %s222
      %p226 = scmp.eq.s32.totalorder %s18, 0
      %p227 = por %p225, %p226
      %p228 = scmp.ne.s32.totalorder %s220, %s222
      %p229 = scmp.eq.s32.totalorder %s23, 1
      %p230 = por %p228, %p229
      %p231 = scmp.ne.s32.totalorder %s222, %s223
      %p232 = scmp.eq.s32.totalorder %s23, 0
      %p233 = por %p231, %p232
      %p234 = scmp.ne.s32.totalorder %s222, %s223
      %p235 = scmp.eq.s32.totalorder %s24, 1
      %p236 = por %p234, %p235
      %p238 = scmp.ne.s32.totalorder %s223, %s237
      %p239 = scmp.eq.s32.totalorder %s24, 0
      %p240 = por %p238, %p239
      %s242 = sadd.s32 %s241, 1
      %p245 = scmp.eq.s32.totalorder %s18, 1
      %p246 = scmp.ne.s32.totalorder %s241, %s243
      %p247 = scmp.eq.s32.totalorder %s18, 0
      %p248 = por %p246, %p247
      %p249 = scmp.ne.s32.totalorder %s241, %s243
      %p250 = scmp.eq.s32.totalorder %s23, 1
      %p251 = por %p249, %p250
      %p252 = scmp.ne.s32.totalorder %s243, %s244
      %p253 = scmp.eq.s32.totalorder %s23, 0
      %p254 = por %p252, %p253
      %p255 = scmp.ne.s32.totalorder %s243, %s244
      %p256 = scmp.eq.s32.totalorder %s24, 1
      %p257 = por %p255, %p256
      %p259 = scmp.ne.s32.totalorder %s244, %s258
      %p260 = scmp.eq.s32.totalorder %s24, 0
      %p261 = por %p259, %p260
      %s262 = ssub.s32 %s18, %s25
      %p263 = scmp.eq.s32.totalorder %s262, 0
      %s265 = sadd.s32 %s264, 1
      %s266 = scalar_select %p263, %s264, %s265
      %p269 = pneg %p263
      %p270 = scmp.eq.s32.totalorder %s18, 1
      %p271 = por %p269, %p270
      %p272 = scmp.ne.s32.totalorder %s264, %s267
      %p273 = scmp.eq.s32.totalorder %s18, 0
      %p274 = por %p272, %p273
      %p275 = scmp.ne.s32.totalorder %s264, %s267
      %p276 = scmp.eq.s32.totalorder %s23, 1
      %p277 = por %p275, %p276
      %p278 = scmp.ne.s32.totalorder %s267, %s268
      %p279 = scmp.eq.s32.totalorder %s23, 0
      %p280 = por %p278, %p279
      %p281 = scmp.ne.s32.totalorder %s267, %s268
      %p282 = scmp.eq.s32.totalorder %s24, 1
      %p283 = por %p281, %p282
      %p285 = scmp.ne.s32.totalorder %s268, %s284
      %p286 = scmp.eq.s32.totalorder %s24, 0
      %p287 = por %p285, %p286
      %p288 = scmp.le.s32.totalorder 1, %s18
      %p289 = scmp.lt.s32.totalorder %s18, 3
      %p290 = pnand %p288, %p289
      %p291 = pneg %p290
      // Predicated region
      $region9: #{_lambda_.1} parent=5 // pred_check
        _
      $region10: #{_lambda_.1} parent=5 // pred_check_branch
        %293 = sbr.rel (%p290) target = $region12
      $region11: #{_lambda_.1} parent=5 // pred_region
        %s294 = ssub.s32 %s18, 1
        // Predicated region
        $region13: #{_lambda_.1} parent=11 // pred_check
          %p295 = pneg %p39
        $region14: #{_lambda_.1} parent=11 // pred_check_branch
          %297 = sbr.rel (%p295) target = $region16
        $region15: #{_lambda_.1} parent=11 // pred_region
          _
        $region16: #{_lambda_.1} parent=11 // pred_fallthru
          _
        // Predicated region
        $region17: #{_lambda_.1} parent=11 // pred_check
          %p298 = pneg %p86
        $region18: #{_lambda_.1} parent=11 // pred_check_branch
          %300 = sbr.rel (%p298) target = $region20
        $region19: #{_lambda_.1} parent=11 // pred_region
          _
        $region20: #{_lambda_.1} parent=11 // pred_fallthru
          _
        // Predicated region
        $region21: #{_lambda_.1} parent=11 // pred_check
          %p301 = pneg %p107
        $region22: #{_lambda_.1} parent=11 // pred_check_branch
          %303 = sbr.rel (%p301) target = $region24
        $region23: #{_lambda_.1} parent=11 // pred_region
          _
        $region24: #{_lambda_.1} parent=11 // pred_fallthru
          _
        // Predicated region
        $region25: #{_lambda_.1} parent=11 // pred_check
          %p304 = pneg %p128
        $region26: #{_lambda_.1} parent=11 // pred_check_branch
          %306 = sbr.rel (%p304) target = $region28
        $region27: #{_lambda_.1} parent=11 // pred_region
          _
        $region28: #{_lambda_.1} parent=11 // pred_fallthru
          _
        // Predicated region
        $region29: #{_lambda_.1} parent=11 // pred_check
          %p307 = pneg %p149
        $region30: #{_lambda_.1} parent=11 // pred_check_branch
          %309 = sbr.rel (%p307) target = $region32
        $region31: #{_lambda_.1} parent=11 // pred_region
          _
        $region32: #{_lambda_.1} parent=11 // pred_fallthru
          _
        // Predicated region
        $region33: #{_lambda_.1} parent=11 // pred_check
          %p310 = pneg %p170
        $region34: #{_lambda_.1} parent=11 // pred_check_branch
          %312 = sbr.rel (%p310) target = $region36
        $region35: #{_lambda_.1} parent=11 // pred_region
          _
        $region36: #{_lambda_.1} parent=11 // pred_fallthru
          _
        // Predicated region
        $region37: #{_lambda_.1} parent=11 // pred_check
          %p313 = pneg %p191
        $region38: #{_lambda_.1} parent=11 // pred_check_branch
          %315 = sbr.rel (%p313) target = $region40
        $region39: #{_lambda_.1} parent=11 // pred_region
          _
        $region40: #{_lambda_.1} parent=11 // pred_fallthru
          _
        // Predicated region
        $region41: #{_lambda_.1} parent=11 // pred_check
          %p316 = pneg %p212
        $region42: #{_lambda_.1} parent=11 // pred_check_branch
          %318 = sbr.rel (%p316) target = $region44
        $region43: #{_lambda_.1} parent=11 // pred_region
          _
        $region44: #{_lambda_.1} parent=11 // pred_fallthru
          _
        // Predicated region
        $region45: #{_lambda_.1} parent=11 // pred_check
          %p319 = pneg %p233
        $region46: #{_lambda_.1} parent=11 // pred_check_branch
          %321 = sbr.rel (%p319) target = $region48
        $region47: #{_lambda_.1} parent=11 // pred_region
          _
        $region48: #{_lambda_.1} parent=11 // pred_fallthru
          _
        // Predicated region
        $region49: #{_lambda_.1} parent=11 // pred_check
          %p322 = pneg %p254
        $region50: #{_lambda_.1} parent=11 // pred_check_branch
          %324 = sbr.rel (%p322) target = $region52
        $region51: #{_lambda_.1} parent=11 // pred_region
          %326 = vsyncadd [#allocation3], 0
          %s328 = sshll.u32 %s10, 4
          %s329 = int_to_ptr.vmem [resolvable:$true] %s328
          %331 = dma.vmem_to_smem %s329, 16, [#allocation2], [#allocation3]
        $region52: #{_lambda_.1} parent=11 // pred_fallthru
          _
      $region12: #{_lambda_.1} parent=5 // pred_fallthru
        _
      %p332 = scmp.lt.s32.totalorder %s18, 2
      // Predicated region
      $region53: #{_lambda_.1} parent=5 // pred_check
        %p333 = pneg %p332
      $region54: #{_lambda_.1} parent=5 // pred_check_branch
        %335 = sbr.rel (%p333) target = $region56
      $region55: #{_lambda_.1} parent=5 // pred_region
        // Predicated region
        $region57: #{_lambda_.1} parent=55 // pred_check
          %p336 = pneg %p59
        $region58: #{_lambda_.1} parent=55 // pred_check_branch
          %338 = sbr.rel (%p336) target = $region60
        $region59: #{_lambda_.1} parent=55 // pred_region
          %p339 = scmp.lt.s32.totalorder %s18, 1
          %s340 = scalar_select %p339, %s18, 1
          %s341 = smul.addr %s340, 5
          %s342 = smul.addr %s341, 4
          %s343 = scalar_lea.vmem %s1, %s342
        $region60: #{_lambda_.1} parent=55 // pred_fallthru
          _
      $region56: #{_lambda_.1} parent=5 // pred_fallthru
        _
      %p344 = scmp.le.s32.totalorder 1, %s18
      %p345 = scmp.lt.s32.totalorder %s18, 3
      %p346 = pnand %p344, %p345
      %p347 = pneg %p346
      // Predicated region
      $region61: #{_lambda_.1} parent=5 // pred_check
        _
      $region62: #{_lambda_.1} parent=5 // pred_check_branch
        %349 = sbr.rel (%p346) target = $region64
      $region63: #{_lambda_.1} parent=5 // pred_region
        %s350 = ssub.s32 %s18, 1
        // Predicated region
        $region65: #{_lambda_.1} parent=63 // pred_check
          %p351 = pneg %p254
        $region66: #{_lambda_.1} parent=63 // pred_check_branch
          %353 = sbr.rel (%p351) target = $region68
        $region67: #{_lambda_.1} parent=63 // pred_region
          %355 = dma.done [#allocation3], 16
        $region68: #{_lambda_.1} parent=63 // pred_fallthru
          _
        %356 = sfence
        %p357 = pneg %p39
        %p358 = pneg %p36
        %p359 = scmp.lt.s32.totalorder %s23, 1
        %s360 = scalar_select %p359, %s23, 1
        %s361 = smul.addr %s360, 5
        %s362 = smul.addr %s361, 4
        %s363 = scalar_lea.vmem %s1, %s362
        %p364 = pneg %p65
        %p365 = pneg %p62
        %p366 = pneg %p86
        %p367 = pneg %p83
        %p368 = pneg %p107
        %p369 = pneg %p104
        %p370 = pneg %p128
        %p371 = pneg %p125
        %p372 = pneg %p149
        %p373 = pneg %p146
        %p374 = pneg %p170
        %p375 = pneg %p167
        %p376 = pneg %p191
        %p377 = pneg %p188
        %p378 = pneg %p212
        %p379 = pneg %p209
        %p380 = pneg %p233
        %p381 = pneg %p230
        %p382 = pneg %p254
        %p383 = pneg %p251
        %p384 = pneg %p280
        %p385 = pneg %p277
        %p386 = scmp.lt.s32.totalorder %s23, 1
        %s387 = scalar_select %p386, %s23, 1
        %s388 = smul.addr %s387, 5
        %s389 = smul.addr %s388, 8
        %s390 = scalar_lea.vmem %s11, %s389
        %p391 = scmp.lt.s32.totalorder %s23, 1
        %s392 = scalar_select %p391, %s23, 1
        %s393 = smul.addr %s392, 5
        %s394 = smul.addr %s393, 4
        %s395 = scalar_lea.vmem %s1, %s394
        %p396 = scmp.lt.s32.totalorder %s23, 1
        %s397 = scalar_select %p396, %s23, 1
        %s398 = smul.addr %s397, 5
        %s399 = smul.addr %s398, 8
        %s400 = scalar_lea.vmem %s11, %s399
        %v402 = vld [vmem:[%s0] sm:$0xff]
        %v403 = vld [vmem:[%s0 + $0x8] sm:$0xff]
        %v404 = vld [vmem:[%s0 + $0x10] sm:$0xff]
        %v405 = vld [vmem:[%s0 + $0x18] sm:$0xff]
        %v406 = vld [vmem:[%s0 + $0x20] sm:$0xf]
        %v407 = vld [vmem:[%s395] sm:$0xf]
        %v408 = vld [vmem:[%s395 + $0x4] sm:$0xf]
        %v409 = vld [vmem:[%s395 + $0x8] sm:$0xf]
        %v410 = vld [vmem:[%s395 + $0xc] sm:$0xf]
        %v411 = vld [vmem:[%s395 + $0x10] sm:$0x3]
        %v412 = vld [vmem:[%s2] sm:$0xf]
        %v413 = vld [vmem:[%s2 + $0x4] sm:$0xf]
        %v414 = vld [vmem:[%s2 + $0x8] sm:$0xf]
        %v415 = vld [vmem:[%s2 + $0xc] sm:$0xf]
        %v416 = vld [vmem:[%s2 + $0x10] sm:$0xf]
        %v417 = vld [vmem:[%s2 + $0x14] sm:$0xf]
        %v418 = vld [vmem:[%s2 + $0x18] sm:$0xf]
        %v419 = vld [vmem:[%s2 + $0x1c] sm:$0xf]
        %v420 = vld [vmem:[%s2 + $0x20] sm:$0xf]
        %v421 = vld [vmem:[%s2 + $0x24] sm:$0xf]
        %v422 = vld [vmem:[%s2 + $0x28] sm:$0xf]
        %v423 = vld [vmem:[%s2 + $0x2c] sm:$0xf]
        %v424 = vld [vmem:[%s2 + $0x30] sm:$0xf]
        %v425 = vld [vmem:[%s2 + $0x34] sm:$0xf]
        %v426 = vld [vmem:[%s2 + $0x38] sm:$0xf]
        %v427 = vld [vmem:[%s2 + $0x3c] sm:$0xf]
        %v428 = vld [vmem:[%s3] sm:$0x1]
        %v430 = vperm.slane %v428, 0
        %v437 = vunpack.c.l.b16 %v407
        %v438 = vunpack.c.l.b16 %v408
        %v439 = vunpack.c.l.b16 %v409
        %v440 = vunpack.c.l.b16 %v410
        %v441 = vunpack.c.l.b16 %v411
        %v442 = vpack.c.b16 %v438, %v437
        %v443 = vpack.c.b16 %v440, %v439
        %v444 = vpack.c.b16 %v441, %v441
        %v464 = vunpack.c.l.b16 %v412
        %v465 = vunpack.c.l.b16 %v413
        %v466 = vunpack.c.l.b16 %v414
        %v467 = vunpack.c.l.b16 %v415
        %v468 = vunpack.c.l.b16 %v416
        %v469 = vunpack.c.l.b16 %v417
        %v470 = vunpack.c.l.b16 %v418
        %v471 = vunpack.c.l.b16 %v419
        %v472 = vunpack.c.l.b16 %v420
        %v473 = vunpack.c.l.b16 %v421
        %v474 = vunpack.c.l.b16 %v422
        %v475 = vunpack.c.l.b16 %v423
        %v476 = vunpack.c.l.b16 %v424
        %v477 = vunpack.c.l.b16 %v425
        %v478 = vunpack.c.l.b16 %v426
        %v479 = vunpack.c.l.b16 %v427
        %v480 = vpack.c.b16 %v465, %v464
        %v481 = vpack.c.b16 %v467, %v466
        %v482 = vpack.c.b16 %v469, %v468
        %v483 = vpack.c.b16 %v471, %v470
        %v484 = vpack.c.b16 %v473, %v472
        %v485 = vpack.c.b16 %v475, %v474
        %v486 = vpack.c.b16 %v477, %v476
        %v487 = vpack.c.b16 %v479, %v478
        %496 = vmatpush.bf16.msra.mxu0 %v487
        %497 = vmatpush.bf16.msra.mxu0 %v486
        %498 = vmatpush.bf16.msra.mxu0 %v485
        %499 = vmatpush.bf16.msra.mxu0 %v484
        %500 = vmatpush.bf16.msra.mxu0 %v483
        %501 = vmatpush.bf16.msra.mxu0 %v482
        %502 = vmatpush.bf16.msra.mxu0 %v481
        %503 = vmatpush.bf16.msra.mxu0 %v480
        %504 = vmatmul.bf16.gmra.mxu0 %v442
        %v505 = vpop.f32.mrf.mxu0
        %v506 = vadd.f32 %v430, %v505
        %v507 = vpop.f32.mrf.mxu0
        %v508 = vadd.f32 %v430, %v507
        %509 = vmatmul.bf16.gmra.mxu0 %v443
        %v510 = vpop.f32.mrf.mxu0
        %v511 = vadd.f32 %v430, %v510
        %v512 = vpop.f32.mrf.mxu0
        %v513 = vadd.f32 %v430, %v512
        %514 = vmatmul.bf16.gmra.mxu0 %v444
        %v515 = vpop.f32.mrf.mxu0
        %v516 = vadd.f32 %v430, %v515
        %v517 = vpop.f32.mrf.mxu0
        %518 = vdwg.mxu0
        %vm519 = vcmp.ge.f32.partialorder %v506, 0.0
        %vm520 = vcmp.ge.f32.partialorder %v508, 0.0
        %vm521 = vcmp.ge.f32.partialorder %v511, 0.0
        %vm522 = vcmp.ge.f32.partialorder %v513, 0.0
        %vm523 = vcmp.ge.f32.partialorder %v516, 0.0
        %s524 = sld [smem:[#allocation2]]
        %v525 = vstv %s524
        %v526 = vmul.f32 %v525, %v506
        %v527 = vmul.f32 %v525, %v508
        %v528 = vmul.f32 %v525, %v511
        %v529 = vmul.f32 %v525, %v513
        %v530 = vmul.f32 %v525, %v516
        %v531 = vsel %vm519, %v506, %v526
        %v532 = vsel %vm520, %v508, %v527
        %v533 = vsel %vm521, %v511, %v528
        %v534 = vsel %vm522, %v513, %v529
        %v535 = vsel %vm523, %v516, %v530
        %537 = vset.pattern.permute.xlu0 0
        %538 = vperm.xlu0 %537, %v402
        %v539 = vpop.permute.xlu0 %538
        %542 = vset.pattern.permute.xlu0 0
        %543 = vperm.xlu0 %542, %v403
        %v544 = vpop.permute.xlu0 %543
        %547 = vset.pattern.permute.xlu0 0
        %548 = vperm.xlu0 %547, %v404
        %v549 = vpop.permute.xlu0 %548
        %552 = vset.pattern.permute.xlu0 0
        %553 = vperm.xlu0 %552, %v405
        %v554 = vpop.permute.xlu0 %553
        %557 = vset.pattern.permute.xlu0 0
        %558 = vperm.xlu0 %557, %v406
        %v559 = vpop.permute.xlu0 %558
        %v561 = vmul.f32 %v531, %v539
        %v562 = vmul.f32 %v532, %v544
        %v563 = vmul.f32 %v533, %v549
        %v564 = vmul.f32 %v534, %v554
        %v565 = vmul.f32 %v535, %v559
        %v566 = vld [vmem:[%s5] sm:$0x1]
        %s567 = sld [smem:[#allocation2 + $0x1]]
        %vm572 = vcmask 1046528
        %v573 = vrot.slane %v561, 1
        %v574 = vrot.slane %v562, 1
        %v575 = vsel %vm572, %v573, %v574
        %v576 = vrot.slane %v563, 1
        %v577 = vsel %vm572, %v574, %v576
        %v578 = vrot.slane %v564, 1
        %v579 = vsel %vm572, %v576, %v578
        %v585 = vsel %vm572, 0.0, %v573
        %v586 = vpack.c.bf16 %v575, %v585
        %v587 = vpack.c.bf16 %v579, %v577
        %v588 = vpack.c.bf16 %v578, %v578
        %v589 = vld [vmem:[%s4] sm:$0xf]
        %v590 = vld [vmem:[%s4 + $0x4] sm:$0xf]
        %v591 = vld [vmem:[%s4 + $0x8] sm:$0xf]
        %v592 = vld [vmem:[%s4 + $0xc] sm:$0xf]
        %v593 = vld [vmem:[%s4 + $0x10] sm:$0xf]
        %v594 = vld [vmem:[%s4 + $0x14] sm:$0xf]
        %v595 = vld [vmem:[%s4 + $0x18] sm:$0xf]
        %v596 = vld [vmem:[%s4 + $0x1c] sm:$0xf]
        %v597 = vld [vmem:[%s4 + $0x20] sm:$0xf]
        %v598 = vld [vmem:[%s4 + $0x24] sm:$0xf]
        %v599 = vld [vmem:[%s4 + $0x28] sm:$0xf]
        %v600 = vld [vmem:[%s4 + $0x2c] sm:$0xf]
        %v601 = vld [vmem:[%s4 + $0x30] sm:$0xf]
        %v602 = vld [vmem:[%s4 + $0x34] sm:$0xf]
        %v603 = vld [vmem:[%s4 + $0x38] sm:$0xf]
        %v604 = vld [vmem:[%s4 + $0x3c] sm:$0xf]
        %vm605 = vcmask 1045504
        %v606 = vrot.slane %v561, 2
        %v607 = vrot.slane %v562, 2
        %v608 = vsel %vm605, %v606, %v607
        %v609 = vrot.slane %v563, 2
        %v610 = vsel %vm605, %v607, %v609
        %v611 = vrot.slane %v564, 2
        %v612 = vsel %vm605, %v609, %v611
        %v618 = vsel %vm605, 0.0, %v606
        %v619 = vpack.c.bf16 %v608, %v618
        %v620 = vpack.c.bf16 %v612, %v610
        %v621 = vpack.c.bf16 %v611, %v611
        %v622 = vld [vmem:[%s4 + $0x40] sm:$0xf]
        %v623 = vld [vmem:[%s4 + $0x44] sm:$0xf]
        %v624 = vld [vmem:[%s4 + $0x48] sm:$0xf]
        %v625 = vld [vmem:[%s4 + $0x4c] sm:$0xf]
        %v626 = vld [vmem:[%s4 + $0x50] sm:$0xf]
        %v627 = vld [vmem:[%s4 + $0x54] sm:$0xf]
        %v628 = vld [vmem:[%s4 + $0x58] sm:$0xf]
        %v629 = vld [vmem:[%s4 + $0x5c] sm:$0xf]
        %v630 = vld [vmem:[%s4 + $0x60] sm:$0xf]
        %v631 = vld [vmem:[%s4 + $0x64] sm:$0xf]
        %v632 = vld [vmem:[%s4 + $0x68] sm:$0xf]
        %v633 = vld [vmem:[%s4 + $0x6c] sm:$0xf]
        %v634 = vld [vmem:[%s4 + $0x70] sm:$0xf]
        %v635 = vld [vmem:[%s4 + $0x74] sm:$0xf]
        %v636 = vld [vmem:[%s4 + $0x78] sm:$0xf]
        %v637 = vld [vmem:[%s4 + $0x7c] sm:$0xf]
        %v654 = vunpack.c.l.b16 %v622
        %v655 = vunpack.c.l.b16 %v623
        %v656 = vunpack.c.l.b16 %v624
        %v657 = vunpack.c.l.b16 %v625
        %v658 = vunpack.c.l.b16 %v626
        %v659 = vunpack.c.l.b16 %v627
        %v660 = vunpack.c.l.b16 %v628
        %v661 = vunpack.c.l.b16 %v629
        %v662 = vunpack.c.l.b16 %v630
        %v663 = vunpack.c.l.b16 %v631
        %v664 = vunpack.c.l.b16 %v632
        %v665 = vunpack.c.l.b16 %v633
        %v666 = vunpack.c.l.b16 %v634
        %v667 = vunpack.c.l.b16 %v635
        %v668 = vunpack.c.l.b16 %v636
        %v669 = vunpack.c.l.b16 %v637
        %v670 = vpack.c.b16 %v655, %v654
        %v671 = vpack.c.b16 %v657, %v656
        %v672 = vpack.c.b16 %v659, %v658
        %v673 = vpack.c.b16 %v661, %v660
        %v674 = vpack.c.b16 %v663, %v662
        %v675 = vpack.c.b16 %v665, %v664
        %v676 = vpack.c.b16 %v667, %v666
        %v677 = vpack.c.b16 %v669, %v668
        %686 = vmatpush.bf16.msra.mxu0 %v677
        %687 = vmatpush.bf16.msra.mxu0 %v676
        %688 = vmatpush.bf16.msra.mxu0 %v675
        %689 = vmatpush.bf16.msra.mxu0 %v674
        %690 = vmatpush.bf16.msra.mxu0 %v673
        %691 = vmatpush.bf16.msra.mxu0 %v672
        %692 = vmatpush.bf16.msra.mxu0 %v671
        %693 = vmatpush.bf16.msra.mxu0 %v670
        %694 = vmatmul.bf16.gmra.mxu0 %v619
        %v695 = vpop.f32.mrf.mxu0
        %v696 = vadd.f32 0.0, %v695
        %v697 = vpop.f32.mrf.mxu0
        %v698 = vadd.f32 0.0, %v697
        %699 = vmatmul.bf16.gmra.mxu0 %v620
        %v700 = vpop.f32.mrf.mxu0
        %v701 = vadd.f32 0.0, %v700
        %v702 = vpop.f32.mrf.mxu0
        %v703 = vadd.f32 0.0, %v702
        %704 = vmatmul.bf16.gmra.mxu0 %v621
        %v705 = vpop.f32.mrf.mxu0
        %v706 = vadd.f32 0.0, %v705
        %v707 = vpop.f32.mrf.mxu0
        %708 = vdwg.mxu0
        %v725 = vunpack.c.l.b16 %v589
        %v726 = vunpack.c.l.b16 %v590
        %v727 = vunpack.c.l.b16 %v591
        %v728 = vunpack.c.l.b16 %v592
        %v729 = vunpack.c.l.b16 %v593
        %v730 = vunpack.c.l.b16 %v594
        %v731 = vunpack.c.l.b16 %v595
        %v732 = vunpack.c.l.b16 %v596
        %v733 = vunpack.c.l.b16 %v597
        %v734 = vunpack.c.l.b16 %v598
        %v735 = vunpack.c.l.b16 %v599
        %v736 = vunpack.c.l.b16 %v600
        %v737 = vunpack.c.l.b16 %v601
        %v738 = vunpack.c.l.b16 %v602
        %v739 = vunpack.c.l.b16 %v603
        %v740 = vunpack.c.l.b16 %v604
        %v741 = vpack.c.b16 %v726, %v725
        %v742 = vpack.c.b16 %v728, %v727
        %v743 = vpack.c.b16 %v730, %v729
        %v744 = vpack.c.b16 %v732, %v731
        %v745 = vpack.c.b16 %v734, %v733
        %v746 = vpack.c.b16 %v736, %v735
        %v747 = vpack.c.b16 %v738, %v737
        %v748 = vpack.c.b16 %v740, %v739
        %757 = vmatpush.bf16.msra.mxu0 %v748
        %758 = vmatpush.bf16.msra.mxu0 %v747
        %759 = vmatpush.bf16.msra.mxu0 %v746
        %760 = vmatpush.bf16.msra.mxu0 %v745
        %761 = vmatpush.bf16.msra.mxu0 %v744
        %762 = vmatpush.bf16.msra.mxu0 %v743
        %763 = vmatpush.bf16.msra.mxu0 %v742
        %764 = vmatpush.bf16.msra.mxu0 %v741
        %765 = vmatmul.bf16.gmra.mxu0 %v586
        %v766 = vpop.f32.mrf.mxu0
        %v767 = vadd.f32 %v696, %v766
        %v768 = vpop.f32.mrf.mxu0
        %v769 = vadd.f32 %v698, %v768
        %770 = vmatmul.bf16.gmra.mxu0 %v587
        %v771 = vpop.f32.mrf.mxu0
        %v772 = vadd.f32 %v701, %v771
        %v773 = vpop.f32.mrf.mxu0
        %v774 = vadd.f32 %v703, %v773
        %775 = vmatmul.bf16.gmra.mxu0 %v588
        %v776 = vpop.f32.mrf.mxu0
        %v777 = vadd.f32 %v706, %v776
        %v778 = vpop.f32.mrf.mxu0
        %779 = vdwg.mxu0
        %vm780 = vcmask 1044480
        %v781 = vrot.slane %v561, 3
        %v782 = vrot.slane %v562, 3
        %v783 = vsel %vm780, %v781, %v782
        %v784 = vrot.slane %v563, 3
        %v785 = vsel %vm780, %v782, %v784
        %v786 = vrot.slane %v564, 3
        %v787 = vsel %vm780, %v784, %v786
        %v793 = vsel %vm780, 0.0, %v781
        %v794 = vpack.c.bf16 %v783, %v793
        %v795 = vpack.c.bf16 %v787, %v785
        %v796 = vpack.c.bf16 %v786, %v786
        %v797 = vld [vmem:[%s4 + $0x80] sm:$0xf]
        %v798 = vld [vmem:[%s4 + $0x84] sm:$0xf]
        %v799 = vld [vmem:[%s4 + $0x88] sm:$0xf]
        %v800 = vld [vmem:[%s4 + $0x8c] sm:$0xf]
        %v801 = vld [vmem:[%s4 + $0x90] sm:$0xf]
        %v802 = vld [vmem:[%s4 + $0x94] sm:$0xf]
        %v803 = vld [vmem:[%s4 + $0x98] sm:$0xf]
        %v804 = vld [vmem:[%s4 + $0x9c] sm:$0xf]
        %v805 = vld [vmem:[%s4 + $0xa0] sm:$0xf]
        %v806 = vld [vmem:[%s4 + $0xa4] sm:$0xf]
        %v807 = vld [vmem:[%s4 + $0xa8] sm:$0xf]
        %v808 = vld [vmem:[%s4 + $0xac] sm:$0xf]
        %v809 = vld [vmem:[%s4 + $0xb0] sm:$0xf]
        %v810 = vld [vmem:[%s4 + $0xb4] sm:$0xf]
        %v811 = vld [vmem:[%s4 + $0xb8] sm:$0xf]
        %v812 = vld [vmem:[%s4 + $0xbc] sm:$0xf]
        %v829 = vunpack.c.l.b16 %v797
        %v830 = vunpack.c.l.b16 %v798
        %v831 = vunpack.c.l.b16 %v799
        %v832 = vunpack.c.l.b16 %v800
        %v833 = vunpack.c.l.b16 %v801
        %v834 = vunpack.c.l.b16 %v802
        %v835 = vunpack.c.l.b16 %v803
        %v836 = vunpack.c.l.b16 %v804
        %v837 = vunpack.c.l.b16 %v805
        %v838 = vunpack.c.l.b16 %v806
        %v839 = vunpack.c.l.b16 %v807
        %v840 = vunpack.c.l.b16 %v808
        %v841 = vunpack.c.l.b16 %v809
        %v842 = vunpack.c.l.b16 %v810
        %v843 = vunpack.c.l.b16 %v811
        %v844 = vunpack.c.l.b16 %v812
        %v845 = vpack.c.b16 %v830, %v829
        %v846 = vpack.c.b16 %v832, %v831
        %v847 = vpack.c.b16 %v834, %v833
        %v848 = vpack.c.b16 %v836, %v835
        %v849 = vpack.c.b16 %v838, %v837
        %v850 = vpack.c.b16 %v840, %v839
        %v851 = vpack.c.b16 %v842, %v841
        %v852 = vpack.c.b16 %v844, %v843
        %861 = vmatpush.bf16.msra.mxu0 %v852
        %862 = vmatpush.bf16.msra.mxu0 %v851
        %863 = vmatpush.bf16.msra.mxu0 %v850
        %864 = vmatpush.bf16.msra.mxu0 %v849
        %865 = vmatpush.bf16.msra.mxu0 %v848
        %866 = vmatpush.bf16.msra.mxu0 %v847
        %867 = vmatpush.bf16.msra.mxu0 %v846
        %868 = vmatpush.bf16.msra.mxu0 %v845
        %869 = vmatmul.bf16.gmra.mxu0 %v794
        %v870 = vpop.f32.mrf.mxu0
        %v871 = vadd.f32 0.0, %v870
        %v872 = vpop.f32.mrf.mxu0
        %v873 = vadd.f32 0.0, %v872
        %874 = vmatmul.bf16.gmra.mxu0 %v795
        %v875 = vpop.f32.mrf.mxu0
        %v876 = vadd.f32 0.0, %v875
        %v877 = vpop.f32.mrf.mxu0
        %v878 = vadd.f32 0.0, %v877
        %879 = vmatmul.bf16.gmra.mxu0 %v796
        %v880 = vpop.f32.mrf.mxu0
        %v881 = vadd.f32 0.0, %v880
        %v882 = vpop.f32.mrf.mxu0
        %883 = vdwg.mxu0
        %v884 = vadd.f32 %v767, %v871
        %v885 = vadd.f32 %v769, %v873
        %v886 = vadd.f32 %v772, %v876
        %v887 = vadd.f32 %v774, %v878
        %v888 = vadd.f32 %v777, %v881
        %vm890 = vcmask 1040384
        %v891 = vrot.slane %v561, 7
        %v892 = vrot.slane %v562, 7
        %v893 = vsel %vm890, %v891, %v892
        %v894 = vrot.slane %v563, 7
        %v895 = vsel %vm890, %v892, %v894
        %v896 = vrot.slane %v564, 7
        %v897 = vsel %vm890, %v894, %v896
        %v898 = vrot.slane %v565, 7
        %v899 = vsel %vm890, %v896, %v898
        %v905 = vsel %vm890, 0.0, %v891
        %v906 = vpack.c.bf16 %v893, %v905
        %v907 = vpack.c.bf16 %v897, %v895
        %v908 = vpack.c.bf16 %v899, %v899
        %v909 = vld [vmem:[%s4 + $0xc0] sm:$0xf]
        %v910 = vld [vmem:[%s4 + $0xc4] sm:$0xf]
        %v911 = vld [vmem:[%s4 + $0xc8] sm:$0xf]
        %v912 = vld [vmem:[%s4 + $0xcc] sm:$0xf]
        %v913 = vld [vmem:[%s4 + $0xd0] sm:$0xf]
        %v914 = vld [vmem:[%s4 + $0xd4] sm:$0xf]
        %v915 = vld [vmem:[%s4 + $0xd8] sm:$0xf]
        %v916 = vld [vmem:[%s4 + $0xdc] sm:$0xf]
        %v917 = vld [vmem:[%s4 + $0xe0] sm:$0xf]
        %v918 = vld [vmem:[%s4 + $0xe4] sm:$0xf]
        %v919 = vld [vmem:[%s4 + $0xe8] sm:$0xf]
        %v920 = vld [vmem:[%s4 + $0xec] sm:$0xf]
        %v921 = vld [vmem:[%s4 + $0xf0] sm:$0xf]
        %v922 = vld [vmem:[%s4 + $0xf4] sm:$0xf]
        %v923 = vld [vmem:[%s4 + $0xf8] sm:$0xf]
        %v924 = vld [vmem:[%s4 + $0xfc] sm:$0xf]
        %v941 = vunpack.c.l.b16 %v909
        %v942 = vunpack.c.l.b16 %v910
        %v943 = vunpack.c.l.b16 %v911
        %v944 = vunpack.c.l.b16 %v912
        %v945 = vunpack.c.l.b16 %v913
        %v946 = vunpack.c.l.b16 %v914
        %v947 = vunpack.c.l.b16 %v915
        %v948 = vunpack.c.l.b16 %v916
        %v949 = vunpack.c.l.b16 %v917
        %v950 = vunpack.c.l.b16 %v918
        %v951 = vunpack.c.l.b16 %v919
        %v952 = vunpack.c.l.b16 %v920
        %v953 = vunpack.c.l.b16 %v921
        %v954 = vunpack.c.l.b16 %v922
        %v955 = vunpack.c.l.b16 %v923
        %v956 = vunpack.c.l.b16 %v924
        %v957 = vpack.c.b16 %v942, %v941
        %v958 = vpack.c.b16 %v944, %v943
        %v959 = vpack.c.b16 %v946, %v945
        %v960 = vpack.c.b16 %v948, %v947
        %v961 = vpack.c.b16 %v950, %v949
        %v962 = vpack.c.b16 %v952, %v951
        %v963 = vpack.c.b16 %v954, %v953
        %v964 = vpack.c.b16 %v956, %v955
        %973 = vmatpush.bf16.msra.mxu0 %v964
        %974 = vmatpush.bf16.msra.mxu0 %v963
        %975 = vmatpush.bf16.msra.mxu0 %v962
        %976 = vmatpush.bf16.msra.mxu0 %v961
        %977 = vmatpush.bf16.msra.mxu0 %v960
        %978 = vmatpush.bf16.msra.mxu0 %v959
        %979 = vmatpush.bf16.msra.mxu0 %v958
        %980 = vmatpush.bf16.msra.mxu0 %v957
        %981 = vmatmul.bf16.gmra.mxu0 %v906
        %v982 = vpop.f32.mrf.mxu0
        %v983 = vadd.f32 0.0, %v982
        %v984 = vpop.f32.mrf.mxu0
        %v985 = vadd.f32 0.0, %v984
        %986 = vmatmul.bf16.gmra.mxu0 %v907
        %v987 = vpop.f32.mrf.mxu0
        %v988 = vadd.f32 0.0, %v987
        %v989 = vpop.f32.mrf.mxu0
        %v990 = vadd.f32 0.0, %v989
        %991 = vmatmul.bf16.gmra.mxu0 %v908
        %v992 = vpop.f32.mrf.mxu0
        %v993 = vadd.f32 0.0, %v992
        %v994 = vpop.f32.mrf.mxu0
        %995 = vdwg.mxu0
        %v996 = vadd.f32 %v884, %v983
        %v997 = vadd.f32 %v885, %v985
        %v998 = vadd.f32 %v886, %v988
        %v999 = vadd.f32 %v887, %v990
        %v1000 = vadd.f32 %v888, %v993
        %v1001 = vpack.c.bf16 %v562, %v561
        %v1002 = vpack.c.bf16 %v564, %v563
        %v1003 = vpack.c.bf16 %v565, %v565
        %v1004 = vld [vmem:[%s4 + $0x100] sm:$0xf]
        %v1005 = vld [vmem:[%s4 + $0x104] sm:$0xf]
        %v1006 = vld [vmem:[%s4 + $0x108] sm:$0xf]
        %v1007 = vld [vmem:[%s4 + $0x10c] sm:$0xf]
        %v1008 = vld [vmem:[%s4 + $0x110] sm:$0xf]
        %v1009 = vld [vmem:[%s4 + $0x114] sm:$0xf]
        %v1010 = vld [vmem:[%s4 + $0x118] sm:$0xf]
        %v1011 = vld [vmem:[%s4 + $0x11c] sm:$0xf]
        %v1012 = vld [vmem:[%s4 + $0x120] sm:$0xf]
        %v1013 = vld [vmem:[%s4 + $0x124] sm:$0xf]
        %v1014 = vld [vmem:[%s4 + $0x128] sm:$0xf]
        %v1015 = vld [vmem:[%s4 + $0x12c] sm:$0xf]
        %v1016 = vld [vmem:[%s4 + $0x130] sm:$0xf]
        %v1017 = vld [vmem:[%s4 + $0x134] sm:$0xf]
        %v1018 = vld [vmem:[%s4 + $0x138] sm:$0xf]
        %v1019 = vld [vmem:[%s4 + $0x13c] sm:$0xf]
        %v1036 = vunpack.c.l.b16 %v1004
        %v1037 = vunpack.c.l.b16 %v1005
        %v1038 = vunpack.c.l.b16 %v1006
        %v1039 = vunpack.c.l.b16 %v1007
        %v1040 = vunpack.c.l.b16 %v1008
        %v1041 = vunpack.c.l.b16 %v1009
        %v1042 = vunpack.c.l.b16 %v1010
        %v1043 = vunpack.c.l.b16 %v1011
        %v1044 = vunpack.c.l.b16 %v1012
        %v1045 = vunpack.c.l.b16 %v1013
        %v1046 = vunpack.c.l.b16 %v1014
        %v1047 = vunpack.c.l.b16 %v1015
        %v1048 = vunpack.c.l.b16 %v1016
        %v1049 = vunpack.c.l.b16 %v1017
        %v1050 = vunpack.c.l.b16 %v1018
        %v1051 = vunpack.c.l.b16 %v1019
        %v1052 = vpack.c.b16 %v1037, %v1036
        %v1053 = vpack.c.b16 %v1039, %v1038
        %v1054 = vpack.c.b16 %v1041, %v1040
        %v1055 = vpack.c.b16 %v1043, %v1042
        %v1056 = vpack.c.b16 %v1045, %v1044
        %v1057 = vpack.c.b16 %v1047, %v1046
        %v1058 = vpack.c.b16 %v1049, %v1048
        %v1059 = vpack.c.b16 %v1051, %v1050
        %1068 = vmatpush.bf16.msra.mxu0 %v1059
        %1069 = vmatpush.bf16.msra.mxu0 %v1058
        %1070 = vmatpush.bf16.msra.mxu0 %v1057
        %1071 = vmatpush.bf16.msra.mxu0 %v1056
        %1072 = vmatpush.bf16.msra.mxu0 %v1055
        %1073 = vmatpush.bf16.msra.mxu0 %v1054
        %1074 = vmatpush.bf16.msra.mxu0 %v1053
        %1075 = vmatpush.bf16.msra.mxu0 %v1052
        %1076 = vmatmul.bf16.gmra.mxu0 %v1001
        %v1077 = vpop.f32.mrf.mxu0
        %v1078 = vadd.f32 0.0, %v1077
        %v1079 = vpop.f32.mrf.mxu0
        %v1080 = vadd.f32 0.0, %v1079
        %1081 = vmatmul.bf16.gmra.mxu0 %v1002
        %v1082 = vpop.f32.mrf.mxu0
        %v1083 = vadd.f32 0.0, %v1082
        %v1084 = vpop.f32.mrf.mxu0
        %v1085 = vadd.f32 0.0, %v1084
        %1086 = vmatmul.bf16.gmra.mxu0 %v1003
        %v1087 = vpop.f32.mrf.mxu0
        %v1088 = vadd.f32 0.0, %v1087
        %v1089 = vpop.f32.mrf.mxu0
        %1090 = vdwg.mxu0
        %v1091 = vadd.f32 %v996, %v1078
        %v1092 = vadd.f32 %v997, %v1080
        %v1093 = vadd.f32 %v998, %v1083
        %v1094 = vadd.f32 %v999, %v1085
        %v1095 = vadd.f32 %v1000, %v1088
        %v1096 = vrot.slane %v565, 1
        %v1097 = vsel %vm572, %v578, %v1096
        %vm1100 = vcmask 1042432
        %v1101 = vsel %vm1100, %v1096, 0.0
        %v1102 = vpack.c.bf16 %v577, %v575
        %v1103 = vpack.c.bf16 %v1097, %v579
        %v1104 = vpack.c.bf16 %v1101, %v1101
        %v1105 = vld [vmem:[%s4 + $0x140] sm:$0xf]
        %v1106 = vld [vmem:[%s4 + $0x144] sm:$0xf]
        %v1107 = vld [vmem:[%s4 + $0x148] sm:$0xf]
        %v1108 = vld [vmem:[%s4 + $0x14c] sm:$0xf]
        %v1109 = vld [vmem:[%s4 + $0x150] sm:$0xf]
        %v1110 = vld [vmem:[%s4 + $0x154] sm:$0xf]
        %v1111 = vld [vmem:[%s4 + $0x158] sm:$0xf]
        %v1112 = vld [vmem:[%s4 + $0x15c] sm:$0xf]
        %v1113 = vld [vmem:[%s4 + $0x160] sm:$0xf]
        %v1114 = vld [vmem:[%s4 + $0x164] sm:$0xf]
        %v1115 = vld [vmem:[%s4 + $0x168] sm:$0xf]
        %v1116 = vld [vmem:[%s4 + $0x16c] sm:$0xf]
        %v1117 = vld [vmem:[%s4 + $0x170] sm:$0xf]
        %v1118 = vld [vmem:[%s4 + $0x174] sm:$0xf]
        %v1119 = vld [vmem:[%s4 + $0x178] sm:$0xf]
        %v1120 = vld [vmem:[%s4 + $0x17c] sm:$0xf]
        %v1137 = vunpack.c.l.b16 %v1105
        %v1138 = vunpack.c.l.b16 %v1106
        %v1139 = vunpack.c.l.b16 %v1107
        %v1140 = vunpack.c.l.b16 %v1108
        %v1141 = vunpack.c.l.b16 %v1109
        %v1142 = vunpack.c.l.b16 %v1110
        %v1143 = vunpack.c.l.b16 %v1111
        %v1144 = vunpack.c.l.b16 %v1112
        %v1145 = vunpack.c.l.b16 %v1113
        %v1146 = vunpack.c.l.b16 %v1114
        %v1147 = vunpack.c.l.b16 %v1115
        %v1148 = vunpack.c.l.b16 %v1116
        %v1149 = vunpack.c.l.b16 %v1117
        %v1150 = vunpack.c.l.b16 %v1118
        %v1151 = vunpack.c.l.b16 %v1119
        %v1152 = vunpack.c.l.b16 %v1120
        %v1153 = vpack.c.b16 %v1138, %v1137
        %v1154 = vpack.c.b16 %v1140, %v1139
        %v1155 = vpack.c.b16 %v1142, %v1141
        %v1156 = vpack.c.b16 %v1144, %v1143
        %v1157 = vpack.c.b16 %v1146, %v1145
        %v1158 = vpack.c.b16 %v1148, %v1147
        %v1159 = vpack.c.b16 %v1150, %v1149
        %v1160 = vpack.c.b16 %v1152, %v1151
        %1169 = vmatpush.bf16.msra.mxu0 %v1160
        %1170 = vmatpush.bf16.msra.mxu0 %v1159
        %1171 = vmatpush.bf16.msra.mxu0 %v1158
        %1172 = vmatpush.bf16.msra.mxu0 %v1157
        %1173 = vmatpush.bf16.msra.mxu0 %v1156
        %1174 = vmatpush.bf16.msra.mxu0 %v1155
        %1175 = vmatpush.bf16.msra.mxu0 %v1154
        %1176 = vmatpush.bf16.msra.mxu0 %v1153
        %1177 = vmatmul.bf16.gmra.mxu0 %v1102
        %v1178 = vpop.f32.mrf.mxu0
        %v1179 = vadd.f32 0.0, %v1178
        %v1180 = vpop.f32.mrf.mxu0
        %v1181 = vadd.f32 0.0, %v1180
        %1182 = vmatmul.bf16.gmra.mxu0 %v1103
        %v1183 = vpop.f32.mrf.mxu0
        %v1184 = vadd.f32 0.0, %v1183
        %v1185 = vpop.f32.mrf.mxu0
        %v1186 = vadd.f32 0.0, %v1185
        %1187 = vmatmul.bf16.gmra.mxu0 %v1104
        %v1188 = vpop.f32.mrf.mxu0
        %v1189 = vadd.f32 0.0, %v1188
        %v1190 = vpop.f32.mrf.mxu0
        %1191 = vdwg.mxu0
        %v1192 = vadd.f32 %v1091, %v1179
        %v1193 = vadd.f32 %v1092, %v1181
        %v1194 = vadd.f32 %v1093, %v1184
        %v1195 = vadd.f32 %v1094, %v1186
        %v1196 = vadd.f32 %v1095, %v1189
        %v1197 = vrot.slane %v561, 5
        %v1198 = vrot.slane %v562, 5
        %v1199 = vsel %vm1100, %v1197, %v1198
        %v1200 = vrot.slane %v563, 5
        %v1201 = vsel %vm1100, %v1198, %v1200
        %v1202 = vrot.slane %v564, 5
        %v1203 = vsel %vm1100, %v1200, %v1202
        %v1204 = vrot.slane %v565, 5
        %v1205 = vsel %vm1100, %v1202, %v1204
        %v1210 = vsel %vm572, %v1205, 0.0
        %v1211 = vpack.c.bf16 %v1201, %v1199
        %v1212 = vpack.c.bf16 %v1210, %v1203
        %v1213 = vpack.c.bf16 0.0, 0.0
        %v1214 = vld [vmem:[%s4 + $0x180] sm:$0xf]
        %v1215 = vld [vmem:[%s4 + $0x184] sm:$0xf]
        %v1216 = vld [vmem:[%s4 + $0x188] sm:$0xf]
        %v1217 = vld [vmem:[%s4 + $0x18c] sm:$0xf]
        %v1218 = vld [vmem:[%s4 + $0x190] sm:$0xf]
        %v1219 = vld [vmem:[%s4 + $0x194] sm:$0xf]
        %v1220 = vld [vmem:[%s4 + $0x198] sm:$0xf]
        %v1221 = vld [vmem:[%s4 + $0x19c] sm:$0xf]
        %v1222 = vld [vmem:[%s4 + $0x1a0] sm:$0xf]
        %v1223 = vld [vmem:[%s4 + $0x1a4] sm:$0xf]
        %v1224 = vld [vmem:[%s4 + $0x1a8] sm:$0xf]
        %v1225 = vld [vmem:[%s4 + $0x1ac] sm:$0xf]
        %v1226 = vld [vmem:[%s4 + $0x1b0] sm:$0xf]
        %v1227 = vld [vmem:[%s4 + $0x1b4] sm:$0xf]
        %v1228 = vld [vmem:[%s4 + $0x1b8] sm:$0xf]
        %v1229 = vld [vmem:[%s4 + $0x1bc] sm:$0xf]
        %v1246 = vunpack.c.l.b16 %v1214
        %v1247 = vunpack.c.l.b16 %v1215
        %v1248 = vunpack.c.l.b16 %v1216
        %v1249 = vunpack.c.l.b16 %v1217
        %v1250 = vunpack.c.l.b16 %v1218
        %v1251 = vunpack.c.l.b16 %v1219
        %v1252 = vunpack.c.l.b16 %v1220
        %v1253 = vunpack.c.l.b16 %v1221
        %v1254 = vunpack.c.l.b16 %v1222
        %v1255 = vunpack.c.l.b16 %v1223
        %v1256 = vunpack.c.l.b16 %v1224
        %v1257 = vunpack.c.l.b16 %v1225
        %v1258 = vunpack.c.l.b16 %v1226
        %v1259 = vunpack.c.l.b16 %v1227
        %v1260 = vunpack.c.l.b16 %v1228
        %v1261 = vunpack.c.l.b16 %v1229
        %v1262 = vpack.c.b16 %v1247, %v1246
        %v1263 = vpack.c.b16 %v1249, %v1248
        %v1264 = vpack.c.b16 %v1251, %v1250
        %v1265 = vpack.c.b16 %v1253, %v1252
        %v1266 = vpack.c.b16 %v1255, %v1254
        %v1267 = vpack.c.b16 %v1257, %v1256
        %v1268 = vpack.c.b16 %v1259, %v1258
        %v1269 = vpack.c.b16 %v1261, %v1260
        %1278 = vmatpush.bf16.msra.mxu0 %v1269
        %1279 = vmatpush.bf16.msra.mxu0 %v1268
        %1280 = vmatpush.bf16.msra.mxu0 %v1267
        %1281 = vmatpush.bf16.msra.mxu0 %v1266
        %1282 = vmatpush.bf16.msra.mxu0 %v1265
        %1283 = vmatpush.bf16.msra.mxu0 %v1264
        %1284 = vmatpush.bf16.msra.mxu0 %v1263
        %1285 = vmatpush.bf16.msra.mxu0 %v1262
        %1286 = vmatmul.bf16.gmra.mxu0 %v1211
        %v1287 = vpop.f32.mrf.mxu0
        %v1288 = vadd.f32 0.0, %v1287
        %v1289 = vpop.f32.mrf.mxu0
        %v1290 = vadd.f32 0.0, %v1289
        %1291 = vmatmul.bf16.gmra.mxu0 %v1212
        %v1292 = vpop.f32.mrf.mxu0
        %v1293 = vadd.f32 0.0, %v1292
        %v1294 = vpop.f32.mrf.mxu0
        %v1295 = vadd.f32 0.0, %v1294
        %1296 = vmatmul.bf16.gmra.mxu0 %v1213
        %v1297 = vpop.f32.mrf.mxu0
        %v1298 = vadd.f32 0.0, %v1297
        %v1299 = vpop.f32.mrf.mxu0
        %1300 = vdwg.mxu0
        %v1301 = vadd.f32 %v1192, %v1288
        %v1302 = vadd.f32 %v1193, %v1290
        %v1303 = vadd.f32 %v1194, %v1293
        %v1304 = vadd.f32 %v1195, %v1295
        %v1305 = vadd.f32 %v1196, %v1298
        %vm1306 = vcmask 1041408
        %v1307 = vrot.slane %v561, 6
        %v1308 = vrot.slane %v562, 6
        %v1309 = vsel %vm1306, %v1307, %v1308
        %v1310 = vrot.slane %v563, 6
        %v1311 = vsel %vm1306, %v1308, %v1310
        %v1312 = vrot.slane %v564, 6
        %v1313 = vsel %vm1306, %v1310, %v1312
        %v1314 = vrot.slane %v565, 6
        %v1315 = vsel %vm1306, %v1312, %v1314
        %v1320 = vsel %vm605, %v1315, 0.0
        %v1321 = vpack.c.bf16 %v1311, %v1309
        %v1322 = vpack.c.bf16 %v1320, %v1313
        %v1323 = vld [vmem:[%s4 + $0x1c0] sm:$0xf]
        %v1324 = vld [vmem:[%s4 + $0x1c4] sm:$0xf]
        %v1325 = vld [vmem:[%s4 + $0x1c8] sm:$0xf]
        %v1326 = vld [vmem:[%s4 + $0x1cc] sm:$0xf]
        %v1327 = vld [vmem:[%s4 + $0x1d0] sm:$0xf]
        %v1328 = vld [vmem:[%s4 + $0x1d4] sm:$0xf]
        %v1329 = vld [vmem:[%s4 + $0x1d8] sm:$0xf]
        %v1330 = vld [vmem:[%s4 + $0x1dc] sm:$0xf]
        %v1331 = vld [vmem:[%s4 + $0x1e0] sm:$0xf]
        %v1332 = vld [vmem:[%s4 + $0x1e4] sm:$0xf]
        %v1333 = vld [vmem:[%s4 + $0x1e8] sm:$0xf]
        %v1334 = vld [vmem:[%s4 + $0x1ec] sm:$0xf]
        %v1335 = vld [vmem:[%s4 + $0x1f0] sm:$0xf]
        %v1336 = vld [vmem:[%s4 + $0x1f4] sm:$0xf]
        %v1337 = vld [vmem:[%s4 + $0x1f8] sm:$0xf]
        %v1338 = vld [vmem:[%s4 + $0x1fc] sm:$0xf]
        %v1355 = vunpack.c.l.b16 %v1323
        %v1356 = vunpack.c.l.b16 %v1324
        %v1357 = vunpack.c.l.b16 %v1325
        %v1358 = vunpack.c.l.b16 %v1326
        %v1359 = vunpack.c.l.b16 %v1327
        %v1360 = vunpack.c.l.b16 %v1328
        %v1361 = vunpack.c.l.b16 %v1329
        %v1362 = vunpack.c.l.b16 %v1330
        %v1363 = vunpack.c.l.b16 %v1331
        %v1364 = vunpack.c.l.b16 %v1332
        %v1365 = vunpack.c.l.b16 %v1333
        %v1366 = vunpack.c.l.b16 %v1334
        %v1367 = vunpack.c.l.b16 %v1335
        %v1368 = vunpack.c.l.b16 %v1336
        %v1369 = vunpack.c.l.b16 %v1337
        %v1370 = vunpack.c.l.b16 %v1338
        %v1371 = vpack.c.b16 %v1356, %v1355
        %v1372 = vpack.c.b16 %v1358, %v1357
        %v1373 = vpack.c.b16 %v1360, %v1359
        %v1374 = vpack.c.b16 %v1362, %v1361
        %v1375 = vpack.c.b16 %v1364, %v1363
        %v1376 = vpack.c.b16 %v1366, %v1365
        %v1377 = vpack.c.b16 %v1368, %v1367
        %v1378 = vpack.c.b16 %v1370, %v1369
        %1387 = vmatpush.bf16.msra.mxu0 %v1378
        %1388 = vmatpush.bf16.msra.mxu0 %v1377
        %1389 = vmatpush.bf16.msra.mxu0 %v1376
        %1390 = vmatpush.bf16.msra.mxu0 %v1375
        %1391 = vmatpush.bf16.msra.mxu0 %v1374
        %1392 = vmatpush.bf16.msra.mxu0 %v1373
        %1393 = vmatpush.bf16.msra.mxu0 %v1372
        %1394 = vmatpush.bf16.msra.mxu0 %v1371
        %1395 = vmatmul.bf16.gmra.mxu0 %v1321
        %v1396 = vpop.f32.mrf.mxu0
        %v1397 = vadd.f32 0.0, %v1396
        %v1398 = vpop.f32.mrf.mxu0
        %v1399 = vadd.f32 0.0, %v1398
        %1400 = vmatmul.bf16.gmra.mxu0 %v1322
        %v1401 = vpop.f32.mrf.mxu0
        %v1402 = vadd.f32 0.0, %v1401
        %v1403 = vpop.f32.mrf.mxu0
        %v1404 = vadd.f32 0.0, %v1403
        %1405 = vmatmul.bf16.gmra.mxu0 %v1213
        %v1406 = vpop.f32.mrf.mxu0
        %v1407 = vadd.f32 0.0, %v1406
        %v1408 = vpop.f32.mrf.mxu0
        %1409 = vdwg.mxu0
        %v1410 = vadd.f32 %v1301, %v1397
        %v1411 = vadd.f32 %v1302, %v1399
        %v1412 = vadd.f32 %v1303, %v1402
        %v1413 = vadd.f32 %v1304, %v1404
        %v1414 = vadd.f32 %v1305, %v1407
        %v1415 = vsel %vm780, %v899, 0.0
        %v1416 = vpack.c.bf16 %v895, %v893
        %v1417 = vpack.c.bf16 %v1415, %v897
        %v1418 = vld [vmem:[%s4 + $0x200] sm:$0xf]
        %v1419 = vld [vmem:[%s4 + $0x204] sm:$0xf]
        %v1420 = vld [vmem:[%s4 + $0x208] sm:$0xf]
        %v1421 = vld [vmem:[%s4 + $0x20c] sm:$0xf]
        %v1422 = vld [vmem:[%s4 + $0x210] sm:$0xf]
        %v1423 = vld [vmem:[%s4 + $0x214] sm:$0xf]
        %v1424 = vld [vmem:[%s4 + $0x218] sm:$0xf]
        %v1425 = vld [vmem:[%s4 + $0x21c] sm:$0xf]
        %v1426 = vld [vmem:[%s4 + $0x220] sm:$0xf]
        %v1427 = vld [vmem:[%s4 + $0x224] sm:$0xf]
        %v1428 = vld [vmem:[%s4 + $0x228] sm:$0xf]
        %v1429 = vld [vmem:[%s4 + $0x22c] sm:$0xf]
        %v1430 = vld [vmem:[%s4 + $0x230] sm:$0xf]
        %v1431 = vld [vmem:[%s4 + $0x234] sm:$0xf]
        %v1432 = vld [vmem:[%s4 + $0x238] sm:$0xf]
        %v1433 = vld [vmem:[%s4 + $0x23c] sm:$0xf]
        %v1450 = vunpack.c.l.b16 %v1418
        %v1451 = vunpack.c.l.b16 %v1419
        %v1452 = vunpack.c.l.b16 %v1420
        %v1453 = vunpack.c.l.b16 %v1421
        %v1454 = vunpack.c.l.b16 %v1422
        %v1455 = vunpack.c.l.b16 %v1423
        %v1456 = vunpack.c.l.b16 %v1424
        %v1457 = vunpack.c.l.b16 %v1425
        %v1458 = vunpack.c.l.b16 %v1426
        %v1459 = vunpack.c.l.b16 %v1427
        %v1460 = vunpack.c.l.b16 %v1428
        %v1461 = vunpack.c.l.b16 %v1429
        %v1462 = vunpack.c.l.b16 %v1430
        %v1463 = vunpack.c.l.b16 %v1431
        %v1464 = vunpack.c.l.b16 %v1432
        %v1465 = vunpack.c.l.b16 %v1433
        %v1466 = vpack.c.b16 %v1451, %v1450
        %v1467 = vpack.c.b16 %v1453, %v1452
        %v1468 = vpack.c.b16 %v1455, %v1454
        %v1469 = vpack.c.b16 %v1457, %v1456
        %v1470 = vpack.c.b16 %v1459, %v1458
        %v1471 = vpack.c.b16 %v1461, %v1460
        %v1472 = vpack.c.b16 %v1463, %v1462
        %v1473 = vpack.c.b16 %v1465, %v1464
        %1482 = vmatpush.bf16.msra.mxu0 %v1473
        %1483 = vmatpush.bf16.msra.mxu0 %v1472
        %1484 = vmatpush.bf16.msra.mxu0 %v1471
        %1485 = vmatpush.bf16.msra.mxu0 %v1470
        %1486 = vmatpush.bf16.msra.mxu0 %v1469
        %1487 = vmatpush.bf16.msra.mxu0 %v1468
        %1488 = vmatpush.bf16.msra.mxu0 %v1467
        %1489 = vmatpush.bf16.msra.mxu0 %v1466
        %1490 = vmatmul.bf16.gmra.mxu0 %v1416
        %v1491 = vpop.f32.mrf.mxu0
        %v1492 = vadd.f32 0.0, %v1491
        %v1493 = vpop.f32.mrf.mxu0
        %v1494 = vadd.f32 0.0, %v1493
        %1495 = vmatmul.bf16.gmra.mxu0 %v1417
        %v1496 = vpop.f32.mrf.mxu0
        %v1497 = vadd.f32 0.0, %v1496
        %v1498 = vpop.f32.mrf.mxu0
        %v1499 = vadd.f32 0.0, %v1498
        %1500 = vmatmul.bf16.gmra.mxu0 %v1213
        %v1501 = vpop.f32.mrf.mxu0
        %v1502 = vadd.f32 0.0, %v1501
        %v1503 = vpop.f32.mrf.mxu0
        %1504 = vdwg.mxu0
        %v1505 = vadd.f32 %v1410, %v1492
        %v1506 = vadd.f32 %v1411, %v1494
        %v1507 = vadd.f32 %v1412, %v1497
        %v1508 = vadd.f32 %v1413, %v1499
        %v1509 = vadd.f32 %v1414, %v1502
        %v1511 = vperm.slane %v566, 0
        %v1513 = vadd.f32 %v1505, %v1511
        %v1514 = vadd.f32 %v1506, %v1511
        %v1515 = vadd.f32 %v1507, %v1511
        %v1516 = vadd.f32 %v1508, %v1511
        %v1517 = vadd.f32 %v1509, %v1511
        %vm1518 = vcmp.ge.f32.partialorder %v1513, 0.0
        %vm1519 = vcmp.ge.f32.partialorder %v1514, 0.0
        %vm1520 = vcmp.ge.f32.partialorder %v1515, 0.0
        %vm1521 = vcmp.ge.f32.partialorder %v1516, 0.0
        %vm1522 = vcmp.ge.f32.partialorder %v1517, 0.0
        %v1523 = vstv %s567
        %v1524 = vmul.f32 %v1523, %v1513
        %v1525 = vmul.f32 %v1523, %v1514
        %v1526 = vmul.f32 %v1523, %v1515
        %v1527 = vmul.f32 %v1523, %v1516
        %v1528 = vmul.f32 %v1523, %v1517
        %v1529 = vsel %vm1518, %v1513, %v1524
        %v1530 = vsel %vm1519, %v1514, %v1525
        %v1531 = vsel %vm1520, %v1515, %v1526
        %v1532 = vsel %vm1521, %v1516, %v1527
        %v1533 = vsel %vm1522, %v1517, %v1528
        %v1534 = vmul.f32 %v1529, %v539
        %v1535 = vmul.f32 %v1530, %v544
        %v1536 = vmul.f32 %v1531, %v549
        %v1537 = vmul.f32 %v1532, %v554
        %v1538 = vmul.f32 %v1533, %v559
        %v1539 = vld [vmem:[%s7] sm:$0x1]
        %s1540 = sld [smem:[#allocation2 + $0x2]]
        %v1545 = vrot.slane %v1534, 1
        %v1546 = vrot.slane %v1535, 1
        %v1547 = vsel %vm572, %v1545, %v1546
        %v1548 = vrot.slane %v1536, 1
        %v1549 = vsel %vm572, %v1546, %v1548
        %v1550 = vrot.slane %v1537, 1
        %v1551 = vsel %vm572, %v1548, %v1550
        %v1557 = vsel %vm572, 0.0, %v1545
        %v1558 = vpack.c.bf16 %v1547, %v1557
        %v1559 = vpack.c.bf16 %v1551, %v1549
        %v1560 = vpack.c.bf16 %v1550, %v1550
        %v1561 = vld [vmem:[%s6] sm:$0xf]
        %v1562 = vrot.slane %v1534, 2
        %v1563 = vrot.slane %v1535, 2
        %v1564 = vsel %vm605, %v1562, %v1563
        %v1565 = vrot.slane %v1536, 2
        %v1566 = vsel %vm605, %v1563, %v1565
        %v1567 = vrot.slane %v1537, 2
        %v1568 = vsel %vm605, %v1565, %v1567
        %v1574 = vsel %vm605, 0.0, %v1562
        %v1575 = vpack.c.bf16 %v1564, %v1574
        %v1576 = vpack.c.bf16 %v1568, %v1566
        %v1577 = vpack.c.bf16 %v1567, %v1567
        %v1578 = vld [vmem:[%s6 + $0x4] sm:$0xf]
        %vm1579 = vcmask 64512
        %v1581 = vsel %vm1579, %v1575, 0
        %v1584 = vsel %vm1579, %v1576, 0
        %v1587 = vsel %vm1579, %v1577, 0
        %vm1589 = vcmask 1043456
        %v1591 = vsel %vm1589, %v1578, 0
        %1593 = vmatpush.bf16.msra.mxu0 0
        %1594 = vmatpush.bf16.msra.mxu0 0
        %1595 = vmatpush.bf16.msra.mxu0 0
        %1596 = vmatpush.bf16.msra.mxu0 0
        %1597 = vmatpush.bf16.msra.mxu0 0
        %1598 = vmatpush.bf16.msra.mxu0 0
        %1599 = vmatpush.bf16.msra.mxu0 0
        %1600 = vmatpush.bf16.msra.mxu0 %v1591
        %1601 = vmatmul.bf16.gmra.mxu0 %v1581
        %v1602 = vpop.f32.mrf.mxu0
        %v1603 = vadd.f32 0.0, %v1602
        %v1604 = vpop.f32.mrf.mxu0
        %v1605 = vadd.f32 0.0, %v1604
        %1606 = vmatmul.bf16.gmra.mxu0 %v1584
        %v1607 = vpop.f32.mrf.mxu0
        %v1608 = vadd.f32 0.0, %v1607
        %v1609 = vpop.f32.mrf.mxu0
        %v1610 = vadd.f32 0.0, %v1609
        %1611 = vmatmul.bf16.gmra.mxu0 %v1587
        %v1612 = vpop.f32.mrf.mxu0
        %v1613 = vadd.f32 0.0, %v1612
        %v1614 = vpop.f32.mrf.mxu0
        %1615 = vdwg.mxu0
        %v1617 = vsel %vm1579, %v1558, 0
        %v1620 = vsel %vm1579, %v1559, 0
        %v1623 = vsel %vm1579, %v1560, 0
        %v1626 = vsel %vm1589, %v1561, 0
        %1628 = vmatpush.bf16.msra.mxu0 0
        %1629 = vmatpush.bf16.msra.mxu0 0
        %1630 = vmatpush.bf16.msra.mxu0 0
        %1631 = vmatpush.bf16.msra.mxu0 0
        %1632 = vmatpush.bf16.msra.mxu0 0
        %1633 = vmatpush.bf16.msra.mxu0 0
        %1634 = vmatpush.bf16.msra.mxu0 0
        %1635 = vmatpush.bf16.msra.mxu0 %v1626
        %1636 = vmatmul.bf16.gmra.mxu0 %v1617
        %v1637 = vpop.f32.mrf.mxu0
        %v1638 = vadd.f32 %v1603, %v1637
        %v1639 = vpop.f32.mrf.mxu0
        %v1640 = vadd.f32 %v1605, %v1639
        %1641 = vmatmul.bf16.gmra.mxu0 %v1620
        %v1642 = vpop.f32.mrf.mxu0
        %v1643 = vadd.f32 %v1608, %v1642
        %v1644 = vpop.f32.mrf.mxu0
        %v1645 = vadd.f32 %v1610, %v1644
        %1646 = vmatmul.bf16.gmra.mxu0 %v1623
        %v1647 = vpop.f32.mrf.mxu0
        %v1648 = vadd.f32 %v1613, %v1647
        %v1649 = vpop.f32.mrf.mxu0
        %1650 = vdwg.mxu0
        %v1651 = vrot.slane %v1534, 3
        %v1652 = vrot.slane %v1535, 3
        %v1653 = vsel %vm780, %v1651, %v1652
        %v1654 = vrot.slane %v1536, 3
        %v1655 = vsel %vm780, %v1652, %v1654
        %v1656 = vrot.slane %v1537, 3
        %v1657 = vsel %vm780, %v1654, %v1656
        %v1663 = vsel %vm780, 0.0, %v1651
        %v1664 = vpack.c.bf16 %v1653, %v1663
        %v1665 = vpack.c.bf16 %v1657, %v1655
        %v1666 = vpack.c.bf16 %v1656, %v1656
        %v1667 = vld [vmem:[%s6 + $0x8] sm:$0xf]
        %v1669 = vsel %vm1579, %v1664, 0
        %v1672 = vsel %vm1579, %v1665, 0
        %v1675 = vsel %vm1579, %v1666, 0
        %v1678 = vsel %vm1589, %v1667, 0
        %1680 = vmatpush.bf16.msra.mxu0 0
        %1681 = vmatpush.bf16.msra.mxu0 0
        %1682 = vmatpush.bf16.msra.mxu0 0
        %1683 = vmatpush.bf16.msra.mxu0 0
        %1684 = vmatpush.bf16.msra.mxu0 0
        %1685 = vmatpush.bf16.msra.mxu0 0
        %1686 = vmatpush.bf16.msra.mxu0 0
        %1687 = vmatpush.bf16.msra.mxu0 %v1678
        %1688 = vmatmul.bf16.gmra.mxu0 %v1669
        %v1689 = vpop.f32.mrf.mxu0
        %v1690 = vadd.f32 0.0, %v1689
        %v1691 = vpop.f32.mrf.mxu0
        %v1692 = vadd.f32 0.0, %v1691
        %1693 = vmatmul.bf16.gmra.mxu0 %v1672
        %v1694 = vpop.f32.mrf.mxu0
        %v1695 = vadd.f32 0.0, %v1694
        %v1696 = vpop.f32.mrf.mxu0
        %v1697 = vadd.f32 0.0, %v1696
        %1698 = vmatmul.bf16.gmra.mxu0 %v1675
        %v1699 = vpop.f32.mrf.mxu0
        %v1700 = vadd.f32 0.0, %v1699
        %v1701 = vpop.f32.mrf.mxu0
        %1702 = vdwg.mxu0
        %v1703 = vadd.f32 %v1638, %v1690
        %v1704 = vadd.f32 %v1640, %v1692
        %v1705 = vadd.f32 %v1643, %v1695
        %v1706 = vadd.f32 %v1645, %v1697
        %v1707 = vadd.f32 %v1648, %v1700
        %v1709 = vrot.slane %v1534, 7
        %v1710 = vrot.slane %v1535, 7
        %v1711 = vsel %vm890, %v1709, %v1710
        %v1712 = vrot.slane %v1536, 7
        %v1713 = vsel %vm890, %v1710, %v1712
        %v1714 = vrot.slane %v1537, 7
        %v1715 = vsel %vm890, %v1712, %v1714
        %v1716 = vrot.slane %v1538, 7
        %v1717 = vsel %vm890, %v1714, %v1716
        %v1723 = vsel %vm890, 0.0, %v1709
        %v1724 = vpack.c.bf16 %v1711, %v1723
        %v1725 = vpack.c.bf16 %v1715, %v1713
        %v1726 = vpack.c.bf16 %v1717, %v1717
        %v1727 = vld [vmem:[%s6 + $0xc] sm:$0xf]
        %v1729 = vsel %vm1579, %v1724, 0
        %v1732 = vsel %vm1579, %v1725, 0
        %v1735 = vsel %vm1579, %v1726, 0
        %v1738 = vsel %vm1589, %v1727, 0
        %1740 = vmatpush.bf16.msra.mxu0 0
        %1741 = vmatpush.bf16.msra.mxu0 0
        %1742 = vmatpush.bf16.msra.mxu0 0
        %1743 = vmatpush.bf16.msra.mxu0 0
        %1744 = vmatpush.bf16.msra.mxu0 0
        %1745 = vmatpush.bf16.msra.mxu0 0
        %1746 = vmatpush.bf16.msra.mxu0 0
        %1747 = vmatpush.bf16.msra.mxu0 %v1738
        %1748 = vmatmul.bf16.gmra.mxu0 %v1729
        %v1749 = vpop.f32.mrf.mxu0
        %v1750 = vadd.f32 0.0, %v1749
        %v1751 = vpop.f32.mrf.mxu0
        %v1752 = vadd.f32 0.0, %v1751
        %1753 = vmatmul.bf16.gmra.mxu0 %v1732
        %v1754 = vpop.f32.mrf.mxu0
        %v1755 = vadd.f32 0.0, %v1754
        %v1756 = vpop.f32.mrf.mxu0
        %v1757 = vadd.f32 0.0, %v1756
        %1758 = vmatmul.bf16.gmra.mxu0 %v1735
        %v1759 = vpop.f32.mrf.mxu0
        %v1760 = vadd.f32 0.0, %v1759
        %v1761 = vpop.f32.mrf.mxu0
        %1762 = vdwg.mxu0
        %v1763 = vadd.f32 %v1703, %v1750
        %v1764 = vadd.f32 %v1704, %v1752
        %v1765 = vadd.f32 %v1705, %v1755
        %v1766 = vadd.f32 %v1706, %v1757
        %v1767 = vadd.f32 %v1707, %v1760
        %v1768 = vpack.c.bf16 %v1535, %v1534
        %v1769 = vpack.c.bf16 %v1537, %v1536
        %v1770 = vpack.c.bf16 %v1538, %v1538
        %v1771 = vld [vmem:[%s6 + $0x10] sm:$0xf]
        %v1773 = vsel %vm1579, %v1768, 0
        %v1776 = vsel %vm1579, %v1769, 0
        %v1779 = vsel %vm1579, %v1770, 0
        %v1782 = vsel %vm1589, %v1771, 0
        %1784 = vmatpush.bf16.msra.mxu0 0
        %1785 = vmatpush.bf16.msra.mxu0 0
        %1786 = vmatpush.bf16.msra.mxu0 0
        %1787 = vmatpush.bf16.msra.mxu0 0
        %1788 = vmatpush.bf16.msra.mxu0 0
        %1789 = vmatpush.bf16.msra.mxu0 0
        %1790 = vmatpush.bf16.msra.mxu0 0
        %1791 = vmatpush.bf16.msra.mxu0 %v1782
        %1792 = vmatmul.bf16.gmra.mxu0 %v1773
        %v1793 = vpop.f32.mrf.mxu0
        %v1794 = vadd.f32 0.0, %v1793
        %v1795 = vpop.f32.mrf.mxu0
        %v1796 = vadd.f32 0.0, %v1795
        %1797 = vmatmul.bf16.gmra.mxu0 %v1776
        %v1798 = vpop.f32.mrf.mxu0
        %v1799 = vadd.f32 0.0, %v1798
        %v1800 = vpop.f32.mrf.mxu0
        %v1801 = vadd.f32 0.0, %v1800
        %1802 = vmatmul.bf16.gmra.mxu0 %v1779
        %v1803 = vpop.f32.mrf.mxu0
        %v1804 = vadd.f32 0.0, %v1803
        %v1805 = vpop.f32.mrf.mxu0
        %1806 = vdwg.mxu0
        %v1807 = vadd.f32 %v1763, %v1794
        %v1808 = vadd.f32 %v1764, %v1796
        %v1809 = vadd.f32 %v1765, %v1799
        %v1810 = vadd.f32 %v1766, %v1801
        %v1811 = vadd.f32 %v1767, %v1804
        %v1812 = vrot.slane %v1538, 1
        %v1813 = vsel %vm572, %v1550, %v1812
        %v1816 = vsel %vm1100, %v1812, 0.0
        %v1817 = vpack.c.bf16 %v1549, %v1547
        %v1818 = vpack.c.bf16 %v1813, %v1551
        %v1819 = vpack.c.bf16 %v1816, %v1816
        %v1820 = vld [vmem:[%s6 + $0x14] sm:$0xf]
        %v1822 = vsel %vm1579, %v1817, 0
        %v1825 = vsel %vm1579, %v1818, 0
        %v1828 = vsel %vm1579, %v1819, 0
        %v1831 = vsel %vm1589, %v1820, 0
        %1833 = vmatpush.bf16.msra.mxu0 0
        %1834 = vmatpush.bf16.msra.mxu0 0
        %1835 = vmatpush.bf16.msra.mxu0 0
        %1836 = vmatpush.bf16.msra.mxu0 0
        %1837 = vmatpush.bf16.msra.mxu0 0
        %1838 = vmatpush.bf16.msra.mxu0 0
        %1839 = vmatpush.bf16.msra.mxu0 0
        %1840 = vmatpush.bf16.msra.mxu0 %v1831
        %1841 = vmatmul.bf16.gmra.mxu0 %v1822
        %v1842 = vpop.f32.mrf.mxu0
        %v1843 = vadd.f32 0.0, %v1842
        %v1844 = vpop.f32.mrf.mxu0
        %v1845 = vadd.f32 0.0, %v1844
        %1846 = vmatmul.bf16.gmra.mxu0 %v1825
        %v1847 = vpop.f32.mrf.mxu0
        %v1848 = vadd.f32 0.0, %v1847
        %v1849 = vpop.f32.mrf.mxu0
        %v1850 = vadd.f32 0.0, %v1849
        %1851 = vmatmul.bf16.gmra.mxu0 %v1828
        %v1852 = vpop.f32.mrf.mxu0
        %v1853 = vadd.f32 0.0, %v1852
        %v1854 = vpop.f32.mrf.mxu0
        %1855 = vdwg.mxu0
        %v1856 = vadd.f32 %v1807, %v1843
        %v1857 = vadd.f32 %v1808, %v1845
        %v1858 = vadd.f32 %v1809, %v1848
        %v1859 = vadd.f32 %v1810, %v1850
        %v1860 = vadd.f32 %v1811, %v1853
        %v1861 = vrot.slane %v1534, 5
        %v1862 = vrot.slane %v1535, 5
        %v1863 = vsel %vm1100, %v1861, %v1862
        %v1864 = vrot.slane %v1536, 5
        %v1865 = vsel %vm1100, %v1862, %v1864
        %v1866 = vrot.slane %v1537, 5
        %v1867 = vsel %vm1100, %v1864, %v1866
        %v1868 = vrot.slane %v1538, 5
        %v1869 = vsel %vm1100, %v1866, %v1868
        %v1874 = vsel %vm572, %v1869, 0.0
        %v1875 = vpack.c.bf16 %v1865, %v1863
        %v1876 = vpack.c.bf16 %v1874, %v1867
        %v1877 = vld [vmem:[%s6 + $0x18] sm:$0xf]
        %v1879 = vsel %vm1579, %v1875, 0
        %v1882 = vsel %vm1579, %v1876, 0
        %v1885 = vsel %vm1579, %v1213, 0
        %v1888 = vsel %vm1589, %v1877, 0
        %1890 = vmatpush.bf16.msra.mxu0 0
        %1891 = vmatpush.bf16.msra.mxu0 0
        %1892 = vmatpush.bf16.msra.mxu0 0
        %1893 = vmatpush.bf16.msra.mxu0 0
        %1894 = vmatpush.bf16.msra.mxu0 0
        %1895 = vmatpush.bf16.msra.mxu0 0
        %1896 = vmatpush.bf16.msra.mxu0 0
        %1897 = vmatpush.bf16.msra.mxu0 %v1888
        %1898 = vmatmul.bf16.gmra.mxu0 %v1879
        %v1899 = vpop.f32.mrf.mxu0
        %v1900 = vadd.f32 0.0, %v1899
        %v1901 = vpop.f32.mrf.mxu0
        %v1902 = vadd.f32 0.0, %v1901
        %1903 = vmatmul.bf16.gmra.mxu0 %v1882
        %v1904 = vpop.f32.mrf.mxu0
        %v1905 = vadd.f32 0.0, %v1904
        %v1906 = vpop.f32.mrf.mxu0
        %v1907 = vadd.f32 0.0, %v1906
        %1908 = vmatmul.bf16.gmra.mxu0 %v1885
        %v1909 = vpop.f32.mrf.mxu0
        %v1910 = vadd.f32 0.0, %v1909
        %v1911 = vpop.f32.mrf.mxu0
        %1912 = vdwg.mxu0
        %v1913 = vadd.f32 %v1856, %v1900
        %v1914 = vadd.f32 %v1857, %v1902
        %v1915 = vadd.f32 %v1858, %v1905
        %v1916 = vadd.f32 %v1859, %v1907
        %v1917 = vadd.f32 %v1860, %v1910
        %v1918 = vrot.slane %v1534, 6
        %v1919 = vrot.slane %v1535, 6
        %v1920 = vsel %vm1306, %v1918, %v1919
        %v1921 = vrot.slane %v1536, 6
        %v1922 = vsel %vm1306, %v1919, %v1921
        %v1923 = vrot.slane %v1537, 6
        %v1924 = vsel %vm1306, %v1921, %v1923
        %v1925 = vrot.slane %v1538, 6
        %v1926 = vsel %vm1306, %v1923, %v1925
        %v1931 = vsel %vm605, %v1926, 0.0
        %v1932 = vpack.c.bf16 %v1922, %v1920
        %v1933 = vpack.c.bf16 %v1931, %v1924
        %v1934 = vld [vmem:[%s6 + $0x1c] sm:$0xf]
        %v1936 = vsel %vm1579, %v1932, 0
        %v1939 = vsel %vm1579, %v1933, 0
        %v1942 = vsel %vm1589, %v1934, 0
        %1944 = vmatpush.bf16.msra.mxu0 0
        %1945 = vmatpush.bf16.msra.mxu0 0
        %1946 = vmatpush.bf16.msra.mxu0 0
        %1947 = vmatpush.bf16.msra.mxu0 0
        %1948 = vmatpush.bf16.msra.mxu0 0
        %1949 = vmatpush.bf16.msra.mxu0 0
        %1950 = vmatpush.bf16.msra.mxu0 0
        %1951 = vmatpush.bf16.msra.mxu0 %v1942
        %1952 = vmatmul.bf16.gmra.mxu0 %v1936
        %v1953 = vpop.f32.mrf.mxu0
        %v1954 = vadd.f32 0.0, %v1953
        %v1955 = vpop.f32.mrf.mxu0
        %v1956 = vadd.f32 0.0, %v1955
        %1957 = vmatmul.bf16.gmra.mxu0 %v1939
        %v1958 = vpop.f32.mrf.mxu0
        %v1959 = vadd.f32 0.0, %v1958
        %v1960 = vpop.f32.mrf.mxu0
        %v1961 = vadd.f32 0.0, %v1960
        %1962 = vmatmul.bf16.gmra.mxu0 %v1885
        %v1963 = vpop.f32.mrf.mxu0
        %v1964 = vadd.f32 0.0, %v1963
        %v1965 = vpop.f32.mrf.mxu0
        %1966 = vdwg.mxu0
        %v1967 = vadd.f32 %v1913, %v1954
        %v1968 = vadd.f32 %v1914, %v1956
        %v1969 = vadd.f32 %v1915, %v1959
        %v1970 = vadd.f32 %v1916, %v1961
        %v1971 = vadd.f32 %v1917, %v1964
        %v1972 = vsel %vm780, %v1717, 0.0
        %v1973 = vpack.c.bf16 %v1713, %v1711
        %v1974 = vpack.c.bf16 %v1972, %v1715
        %v1975 = vld [vmem:[%s6 + $0x20] sm:$0xf]
        %v1977 = vsel %vm1579, %v1973, 0
        %v1980 = vsel %vm1579, %v1974, 0
        %v1983 = vsel %vm1589, %v1975, 0
        %1985 = vmatpush.bf16.msra.mxu0 0
        %1986 = vmatpush.bf16.msra.mxu0 0
        %1987 = vmatpush.bf16.msra.mxu0 0
        %1988 = vmatpush.bf16.msra.mxu0 0
        %1989 = vmatpush.bf16.msra.mxu0 0
        %1990 = vmatpush.bf16.msra.mxu0 0
        %1991 = vmatpush.bf16.msra.mxu0 0
        %1992 = vmatpush.bf16.msra.mxu0 %v1983
        %1993 = vmatmul.bf16.gmra.mxu0 %v1977
        %v1994 = vpop.f32.mrf.mxu0
        %v1995 = vadd.f32 0.0, %v1994
        %v1996 = vpop.f32.mrf.mxu0
        %v1997 = vadd.f32 0.0, %v1996
        %1998 = vmatmul.bf16.gmra.mxu0 %v1980
        %v1999 = vpop.f32.mrf.mxu0
        %v2000 = vadd.f32 0.0, %v1999
        %v2001 = vpop.f32.mrf.mxu0
        %v2002 = vadd.f32 0.0, %v2001
        %2003 = vmatmul.bf16.gmra.mxu0 %v1885
        %v2004 = vpop.f32.mrf.mxu0
        %v2005 = vadd.f32 0.0, %v2004
        %v2006 = vpop.f32.mrf.mxu0
        %2007 = vdwg.mxu0
        %v2008 = vadd.f32 %v1967, %v1995
        %v2009 = vadd.f32 %v1968, %v1997
        %v2010 = vadd.f32 %v1969, %v2000
        %v2011 = vadd.f32 %v1970, %v2002
        %v2012 = vadd.f32 %v1971, %v2005
        %v2014 = vperm.slane %v1539, 0
        %v2016 = vadd.f32 %v2008, %v2014
        %v2017 = vadd.f32 %v2009, %v2014
        %v2018 = vadd.f32 %v2010, %v2014
        %v2019 = vadd.f32 %v2011, %v2014
        %v2020 = vadd.f32 %v2012, %v2014
        %vm2021 = vcmp.ge.f32.partialorder %v2016, 0.0
        %vm2022 = vcmp.ge.f32.partialorder %v2017, 0.0
        %vm2023 = vcmp.ge.f32.partialorder %v2018, 0.0
        %vm2024 = vcmp.ge.f32.partialorder %v2019, 0.0
        %vm2025 = vcmp.ge.f32.partialorder %v2020, 0.0
        %v2026 = vstv %s1540
        %v2027 = vmul.f32 %v2026, %v2016
        %v2028 = vmul.f32 %v2026, %v2017
        %v2029 = vmul.f32 %v2026, %v2018
        %v2030 = vmul.f32 %v2026, %v2019
        %v2031 = vmul.f32 %v2026, %v2020
        %v2032 = vsel %vm2021, %v2016, %v2027
        %v2033 = vsel %vm2022, %v2017, %v2028
        %v2034 = vsel %vm2023, %v2018, %v2029
        %v2035 = vsel %vm2024, %v2019, %v2030
        %v2036 = vsel %vm2025, %v2020, %v2031
        %v2037 = vsub.f32 %v2032, %v561
        %v2038 = vsub.f32 %v2033, %v562
        %v2039 = vsub.f32 %v2034, %v563
        %v2040 = vsub.f32 %v2035, %v564
        %v2041 = vsub.f32 %v2036, %v565
        %v2042 = vmul.f32 %v2037, %v539
        %v2043 = vmul.f32 %v2038, %v544
        %v2044 = vmul.f32 %v2039, %v549
        %v2045 = vmul.f32 %v2040, %v554
        %v2046 = vmul.f32 %v2041, %v559
        %v2047 = vld [vmem:[%s9] sm:$0x1]
        %s2048 = sld [smem:[#allocation2 + $0x3]]
        %v2053 = vrot.slane %v2042, 1
        %v2054 = vrot.slane %v2043, 1
        %v2055 = vsel %vm572, %v2053, %v2054
        %v2056 = vrot.slane %v2044, 1
        %v2057 = vsel %vm572, %v2054, %v2056
        %v2058 = vrot.slane %v2045, 1
        %v2059 = vsel %vm572, %v2056, %v2058
        %v2065 = vsel %vm572, 0.0, %v2053
        %v2066 = vpack.c.bf16 %v2055, %v2065
        %v2067 = vpack.c.bf16 %v2059, %v2057
        %v2068 = vpack.c.bf16 %v2058, %v2058
        %v2069 = vld [vmem:[%s8] sm:$0xf]
        %v2070 = vld [vmem:[%s8 + $0x4] sm:$0xf]
        %v2071 = vld [vmem:[%s8 + $0x8] sm:$0xf]
        %v2072 = vld [vmem:[%s8 + $0xc] sm:$0xf]
        %v2073 = vld [vmem:[%s8 + $0x10] sm:$0xf]
        %v2074 = vld [vmem:[%s8 + $0x14] sm:$0xf]
        %v2075 = vld [vmem:[%s8 + $0x18] sm:$0xf]
        %v2076 = vld [vmem:[%s8 + $0x1c] sm:$0xf]
        %v2077 = vld [vmem:[%s8 + $0x20] sm:$0xf]
        %v2078 = vld [vmem:[%s8 + $0x24] sm:$0xf]
        %v2079 = vld [vmem:[%s8 + $0x28] sm:$0xf]
        %v2080 = vld [vmem:[%s8 + $0x2c] sm:$0xf]
        %v2081 = vld [vmem:[%s8 + $0x30] sm:$0xf]
        %v2082 = vld [vmem:[%s8 + $0x34] sm:$0xf]
        %v2083 = vld [vmem:[%s8 + $0x38] sm:$0xf]
        %v2084 = vld [vmem:[%s8 + $0x3c] sm:$0xf]
        %v2085 = vrot.slane %v2042, 2
        %v2086 = vrot.slane %v2043, 2
        %v2087 = vsel %vm605, %v2085, %v2086
        %v2088 = vrot.slane %v2044, 2
        %v2089 = vsel %vm605, %v2086, %v2088
        %v2090 = vrot.slane %v2045, 2
        %v2091 = vsel %vm605, %v2088, %v2090
        %v2097 = vsel %vm605, 0.0, %v2085
        %v2098 = vpack.c.bf16 %v2087, %v2097
        %v2099 = vpack.c.bf16 %v2091, %v2089
        %v2100 = vpack.c.bf16 %v2090, %v2090
        %v2101 = vld [vmem:[%s8 + $0x40] sm:$0xf]
        %v2102 = vld [vmem:[%s8 + $0x44] sm:$0xf]
        %v2103 = vld [vmem:[%s8 + $0x48] sm:$0xf]
        %v2104 = vld [vmem:[%s8 + $0x4c] sm:$0xf]
        %v2105 = vld [vmem:[%s8 + $0x50] sm:$0xf]
        %v2106 = vld [vmem:[%s8 + $0x54] sm:$0xf]
        %v2107 = vld [vmem:[%s8 + $0x58] sm:$0xf]
        %v2108 = vld [vmem:[%s8 + $0x5c] sm:$0xf]
        %v2109 = vld [vmem:[%s8 + $0x60] sm:$0xf]
        %v2110 = vld [vmem:[%s8 + $0x64] sm:$0xf]
        %v2111 = vld [vmem:[%s8 + $0x68] sm:$0xf]
        %v2112 = vld [vmem:[%s8 + $0x6c] sm:$0xf]
        %v2113 = vld [vmem:[%s8 + $0x70] sm:$0xf]
        %v2114 = vld [vmem:[%s8 + $0x74] sm:$0xf]
        %v2115 = vld [vmem:[%s8 + $0x78] sm:$0xf]
        %v2116 = vld [vmem:[%s8 + $0x7c] sm:$0xf]
        %v2133 = vunpack.c.l.b16 %v2101
        %v2134 = vunpack.c.l.b16 %v2102
        %v2135 = vunpack.c.l.b16 %v2103
        %v2136 = vunpack.c.l.b16 %v2104
        %v2137 = vunpack.c.l.b16 %v2105
        %v2138 = vunpack.c.l.b16 %v2106
        %v2139 = vunpack.c.l.b16 %v2107
        %v2140 = vunpack.c.l.b16 %v2108
        %v2141 = vunpack.c.l.b16 %v2109
        %v2142 = vunpack.c.l.b16 %v2110
        %v2143 = vunpack.c.l.b16 %v2111
        %v2144 = vunpack.c.l.b16 %v2112
        %v2145 = vunpack.c.l.b16 %v2113
        %v2146 = vunpack.c.l.b16 %v2114
        %v2147 = vunpack.c.l.b16 %v2115
        %v2148 = vunpack.c.l.b16 %v2116
        %v2149 = vpack.c.b16 %v2134, %v2133
        %v2150 = vpack.c.b16 %v2136, %v2135
        %v2151 = vpack.c.b16 %v2138, %v2137
        %v2152 = vpack.c.b16 %v2140, %v2139
        %v2153 = vpack.c.b16 %v2142, %v2141
        %v2154 = vpack.c.b16 %v2144, %v2143
        %v2155 = vpack.c.b16 %v2146, %v2145
        %v2156 = vpack.c.b16 %v2148, %v2147
        %2165 = vmatpush.bf16.msra.mxu0 %v2156
        %2166 = vmatpush.bf16.msra.mxu0 %v2155
        %2167 = vmatpush.bf16.msra.mxu0 %v2154
        %2168 = vmatpush.bf16.msra.mxu0 %v2153
        %2169 = vmatpush.bf16.msra.mxu0 %v2152
        %2170 = vmatpush.bf16.msra.mxu0 %v2151
        %2171 = vmatpush.bf16.msra.mxu0 %v2150
        %2172 = vmatpush.bf16.msra.mxu0 %v2149
        %2173 = vmatmul.bf16.gmra.mxu0 %v2098
        %v2174 = vpop.f32.mrf.mxu0
        %v2175 = vadd.f32 0.0, %v2174
        %v2176 = vpop.f32.mrf.mxu0
        %v2177 = vadd.f32 0.0, %v2176
        %2178 = vmatmul.bf16.gmra.mxu0 %v2099
        %v2179 = vpop.f32.mrf.mxu0
        %v2180 = vadd.f32 0.0, %v2179
        %v2181 = vpop.f32.mrf.mxu0
        %v2182 = vadd.f32 0.0, %v2181
        %2183 = vmatmul.bf16.gmra.mxu0 %v2100
        %v2184 = vpop.f32.mrf.mxu0
        %v2185 = vadd.f32 0.0, %v2184
        %v2186 = vpop.f32.mrf.mxu0
        %2187 = vdwg.mxu0
        %v2204 = vunpack.c.l.b16 %v2069
        %v2205 = vunpack.c.l.b16 %v2070
        %v2206 = vunpack.c.l.b16 %v2071
        %v2207 = vunpack.c.l.b16 %v2072
        %v2208 = vunpack.c.l.b16 %v2073
        %v2209 = vunpack.c.l.b16 %v2074
        %v2210 = vunpack.c.l.b16 %v2075
        %v2211 = vunpack.c.l.b16 %v2076
        %v2212 = vunpack.c.l.b16 %v2077
        %v2213 = vunpack.c.l.b16 %v2078
        %v2214 = vunpack.c.l.b16 %v2079
        %v2215 = vunpack.c.l.b16 %v2080
        %v2216 = vunpack.c.l.b16 %v2081
        %v2217 = vunpack.c.l.b16 %v2082
        %v2218 = vunpack.c.l.b16 %v2083
        %v2219 = vunpack.c.l.b16 %v2084
        %v2220 = vpack.c.b16 %v2205, %v2204
        %v2221 = vpack.c.b16 %v2207, %v2206
        %v2222 = vpack.c.b16 %v2209, %v2208
        %v2223 = vpack.c.b16 %v2211, %v2210
        %v2224 = vpack.c.b16 %v2213, %v2212
        %v2225 = vpack.c.b16 %v2215, %v2214
        %v2226 = vpack.c.b16 %v2217, %v2216
        %v2227 = vpack.c.b16 %v2219, %v2218
        %2236 = vmatpush.bf16.msra.mxu0 %v2227
        %2237 = vmatpush.bf16.msra.mxu0 %v2226
        %2238 = vmatpush.bf16.msra.mxu0 %v2225
        %2239 = vmatpush.bf16.msra.mxu0 %v2224
        %2240 = vmatpush.bf16.msra.mxu0 %v2223
        %2241 = vmatpush.bf16.msra.mxu0 %v2222
        %2242 = vmatpush.bf16.msra.mxu0 %v2221
        %2243 = vmatpush.bf16.msra.mxu0 %v2220
        %2244 = vmatmul.bf16.gmra.mxu0 %v2066
        %v2245 = vpop.f32.mrf.mxu0
        %v2246 = vadd.f32 %v2175, %v2245
        %v2247 = vpop.f32.mrf.mxu0
        %v2248 = vadd.f32 %v2177, %v2247
        %2249 = vmatmul.bf16.gmra.mxu0 %v2067
        %v2250 = vpop.f32.mrf.mxu0
        %v2251 = vadd.f32 %v2180, %v2250
        %v2252 = vpop.f32.mrf.mxu0
        %v2253 = vadd.f32 %v2182, %v2252
        %2254 = vmatmul.bf16.gmra.mxu0 %v2068
        %v2255 = vpop.f32.mrf.mxu0
        %v2256 = vadd.f32 %v2185, %v2255
        %v2257 = vpop.f32.mrf.mxu0
        %2258 = vdwg.mxu0
        %v2259 = vrot.slane %v2042, 3
        %v2260 = vrot.slane %v2043, 3
        %v2261 = vsel %vm780, %v2259, %v2260
        %v2262 = vrot.slane %v2044, 3
        %v2263 = vsel %vm780, %v2260, %v2262
        %v2264 = vrot.slane %v2045, 3
        %v2265 = vsel %vm780, %v2262, %v2264
        %v2271 = vsel %vm780, 0.0, %v2259
        %v2272 = vpack.c.bf16 %v2261, %v2271
        %v2273 = vpack.c.bf16 %v2265, %v2263
        %v2274 = vpack.c.bf16 %v2264, %v2264
        %v2275 = vld [vmem:[%s8 + $0x80] sm:$0xf]
        %v2276 = vld [vmem:[%s8 + $0x84] sm:$0xf]
        %v2277 = vld [vmem:[%s8 + $0x88] sm:$0xf]
        %v2278 = vld [vmem:[%s8 + $0x8c] sm:$0xf]
        %v2279 = vld [vmem:[%s8 + $0x90] sm:$0xf]
        %v2280 = vld [vmem:[%s8 + $0x94] sm:$0xf]
        %v2281 = vld [vmem:[%s8 + $0x98] sm:$0xf]
        %v2282 = vld [vmem:[%s8 + $0x9c] sm:$0xf]
        %v2283 = vld [vmem:[%s8 + $0xa0] sm:$0xf]
        %v2284 = vld [vmem:[%s8 + $0xa4] sm:$0xf]
        %v2285 = vld [vmem:[%s8 + $0xa8] sm:$0xf]
        %v2286 = vld [vmem:[%s8 + $0xac] sm:$0xf]
        %v2287 = vld [vmem:[%s8 + $0xb0] sm:$0xf]
        %v2288 = vld [vmem:[%s8 + $0xb4] sm:$0xf]
        %v2289 = vld [vmem:[%s8 + $0xb8] sm:$0xf]
        %v2290 = vld [vmem:[%s8 + $0xbc] sm:$0xf]
        %v2307 = vunpack.c.l.b16 %v2275
        %v2308 = vunpack.c.l.b16 %v2276
        %v2309 = vunpack.c.l.b16 %v2277
        %v2310 = vunpack.c.l.b16 %v2278
        %v2311 = vunpack.c.l.b16 %v2279
        %v2312 = vunpack.c.l.b16 %v2280
        %v2313 = vunpack.c.l.b16 %v2281
        %v2314 = vunpack.c.l.b16 %v2282
        %v2315 = vunpack.c.l.b16 %v2283
        %v2316 = vunpack.c.l.b16 %v2284
        %v2317 = vunpack.c.l.b16 %v2285
        %v2318 = vunpack.c.l.b16 %v2286
        %v2319 = vunpack.c.l.b16 %v2287
        %v2320 = vunpack.c.l.b16 %v2288
        %v2321 = vunpack.c.l.b16 %v2289
        %v2322 = vunpack.c.l.b16 %v2290
        %v2323 = vpack.c.b16 %v2308, %v2307
        %v2324 = vpack.c.b16 %v2310, %v2309
        %v2325 = vpack.c.b16 %v2312, %v2311
        %v2326 = vpack.c.b16 %v2314, %v2313
        %v2327 = vpack.c.b16 %v2316, %v2315
        %v2328 = vpack.c.b16 %v2318, %v2317
        %v2329 = vpack.c.b16 %v2320, %v2319
        %v2330 = vpack.c.b16 %v2322, %v2321
        %2339 = vmatpush.bf16.msra.mxu0 %v2330
        %2340 = vmatpush.bf16.msra.mxu0 %v2329
        %2341 = vmatpush.bf16.msra.mxu0 %v2328
        %2342 = vmatpush.bf16.msra.mxu0 %v2327
        %2343 = vmatpush.bf16.msra.mxu0 %v2326
        %2344 = vmatpush.bf16.msra.mxu0 %v2325
        %2345 = vmatpush.bf16.msra.mxu0 %v2324
        %2346 = vmatpush.bf16.msra.mxu0 %v2323
        %2347 = vmatmul.bf16.gmra.mxu0 %v2272
        %v2348 = vpop.f32.mrf.mxu0
        %v2349 = vadd.f32 0.0, %v2348
        %v2350 = vpop.f32.mrf.mxu0
        %v2351 = vadd.f32 0.0, %v2350
        %2352 = vmatmul.bf16.gmra.mxu0 %v2273
        %v2353 = vpop.f32.mrf.mxu0
        %v2354 = vadd.f32 0.0, %v2353
        %v2355 = vpop.f32.mrf.mxu0
        %v2356 = vadd.f32 0.0, %v2355
        %2357 = vmatmul.bf16.gmra.mxu0 %v2274
        %v2358 = vpop.f32.mrf.mxu0
        %v2359 = vadd.f32 0.0, %v2358
        %v2360 = vpop.f32.mrf.mxu0
        %2361 = vdwg.mxu0
        %v2362 = vadd.f32 %v2246, %v2349
        %v2363 = vadd.f32 %v2248, %v2351
        %v2364 = vadd.f32 %v2251, %v2354
        %v2365 = vadd.f32 %v2253, %v2356
        %v2366 = vadd.f32 %v2256, %v2359
        %v2368 = vrot.slane %v2042, 7
        %v2369 = vrot.slane %v2043, 7
        %v2370 = vsel %vm890, %v2368, %v2369
        %v2371 = vrot.slane %v2044, 7
        %v2372 = vsel %vm890, %v2369, %v2371
        %v2373 = vrot.slane %v2045, 7
        %v2374 = vsel %vm890, %v2371, %v2373
        %v2375 = vrot.slane %v2046, 7
        %v2376 = vsel %vm890, %v2373, %v2375
        %v2382 = vsel %vm890, 0.0, %v2368
        %v2383 = vpack.c.bf16 %v2370, %v2382
        %v2384 = vpack.c.bf16 %v2374, %v2372
        %v2385 = vpack.c.bf16 %v2376, %v2376
        %v2386 = vld [vmem:[%s8 + $0xc0] sm:$0xf]
        %v2387 = vld [vmem:[%s8 + $0xc4] sm:$0xf]
        %v2388 = vld [vmem:[%s8 + $0xc8] sm:$0xf]
        %v2389 = vld [vmem:[%s8 + $0xcc] sm:$0xf]
        %v2390 = vld [vmem:[%s8 + $0xd0] sm:$0xf]
        %v2391 = vld [vmem:[%s8 + $0xd4] sm:$0xf]
        %v2392 = vld [vmem:[%s8 + $0xd8] sm:$0xf]
        %v2393 = vld [vmem:[%s8 + $0xdc] sm:$0xf]
        %v2394 = vld [vmem:[%s8 + $0xe0] sm:$0xf]
        %v2395 = vld [vmem:[%s8 + $0xe4] sm:$0xf]
        %v2396 = vld [vmem:[%s8 + $0xe8] sm:$0xf]
        %v2397 = vld [vmem:[%s8 + $0xec] sm:$0xf]
        %v2398 = vld [vmem:[%s8 + $0xf0] sm:$0xf]
        %v2399 = vld [vmem:[%s8 + $0xf4] sm:$0xf]
        %v2400 = vld [vmem:[%s8 + $0xf8] sm:$0xf]
        %v2401 = vld [vmem:[%s8 + $0xfc] sm:$0xf]
        %v2418 = vunpack.c.l.b16 %v2386
        %v2419 = vunpack.c.l.b16 %v2387
        %v2420 = vunpack.c.l.b16 %v2388
        %v2421 = vunpack.c.l.b16 %v2389
        %v2422 = vunpack.c.l.b16 %v2390
        %v2423 = vunpack.c.l.b16 %v2391
        %v2424 = vunpack.c.l.b16 %v2392
        %v2425 = vunpack.c.l.b16 %v2393
        %v2426 = vunpack.c.l.b16 %v2394
        %v2427 = vunpack.c.l.b16 %v2395
        %v2428 = vunpack.c.l.b16 %v2396
        %v2429 = vunpack.c.l.b16 %v2397
        %v2430 = vunpack.c.l.b16 %v2398
        %v2431 = vunpack.c.l.b16 %v2399
        %v2432 = vunpack.c.l.b16 %v2400
        %v2433 = vunpack.c.l.b16 %v2401
        %v2434 = vpack.c.b16 %v2419, %v2418
        %v2435 = vpack.c.b16 %v2421, %v2420
        %v2436 = vpack.c.b16 %v2423, %v2422
        %v2437 = vpack.c.b16 %v2425, %v2424
        %v2438 = vpack.c.b16 %v2427, %v2426
        %v2439 = vpack.c.b16 %v2429, %v2428
        %v2440 = vpack.c.b16 %v2431, %v2430
        %v2441 = vpack.c.b16 %v2433, %v2432
        %2450 = vmatpush.bf16.msra.mxu0 %v2441
        %2451 = vmatpush.bf16.msra.mxu0 %v2440
        %2452 = vmatpush.bf16.msra.mxu0 %v2439
        %2453 = vmatpush.bf16.msra.mxu0 %v2438
        %2454 = vmatpush.bf16.msra.mxu0 %v2437
        %2455 = vmatpush.bf16.msra.mxu0 %v2436
        %2456 = vmatpush.bf16.msra.mxu0 %v2435
        %2457 = vmatpush.bf16.msra.mxu0 %v2434
        %2458 = vmatmul.bf16.gmra.mxu0 %v2383
        %v2459 = vpop.f32.mrf.mxu0
        %v2460 = vadd.f32 0.0, %v2459
        %v2461 = vpop.f32.mrf.mxu0
        %v2462 = vadd.f32 0.0, %v2461
        %2463 = vmatmul.bf16.gmra.mxu0 %v2384
        %v2464 = vpop.f32.mrf.mxu0
        %v2465 = vadd.f32 0.0, %v2464
        %v2466 = vpop.f32.mrf.mxu0
        %v2467 = vadd.f32 0.0, %v2466
        %2468 = vmatmul.bf16.gmra.mxu0 %v2385
        %v2469 = vpop.f32.mrf.mxu0
        %v2470 = vadd.f32 0.0, %v2469
        %v2471 = vpop.f32.mrf.mxu0
        %2472 = vdwg.mxu0
        %v2473 = vadd.f32 %v2362, %v2460
        %v2474 = vadd.f32 %v2363, %v2462
        %v2475 = vadd.f32 %v2364, %v2465
        %v2476 = vadd.f32 %v2365, %v2467
        %v2477 = vadd.f32 %v2366, %v2470
        %v2478 = vpack.c.bf16 %v2043, %v2042
        %v2479 = vpack.c.bf16 %v2045, %v2044
        %v2480 = vpack.c.bf16 %v2046, %v2046
        %v2481 = vld [vmem:[%s8 + $0x100] sm:$0xf]
        %v2482 = vld [vmem:[%s8 + $0x104] sm:$0xf]
        %v2483 = vld [vmem:[%s8 + $0x108] sm:$0xf]
        %v2484 = vld [vmem:[%s8 + $0x10c] sm:$0xf]
        %v2485 = vld [vmem:[%s8 + $0x110] sm:$0xf]
        %v2486 = vld [vmem:[%s8 + $0x114] sm:$0xf]
        %v2487 = vld [vmem:[%s8 + $0x118] sm:$0xf]
        %v2488 = vld [vmem:[%s8 + $0x11c] sm:$0xf]
        %v2489 = vld [vmem:[%s8 + $0x120] sm:$0xf]
        %v2490 = vld [vmem:[%s8 + $0x124] sm:$0xf]
        %v2491 = vld [vmem:[%s8 + $0x128] sm:$0xf]
        %v2492 = vld [vmem:[%s8 + $0x12c] sm:$0xf]
        %v2493 = vld [vmem:[%s8 + $0x130] sm:$0xf]
        %v2494 = vld [vmem:[%s8 + $0x134] sm:$0xf]
        %v2495 = vld [vmem:[%s8 + $0x138] sm:$0xf]
        %v2496 = vld [vmem:[%s8 + $0x13c] sm:$0xf]
        %v2513 = vunpack.c.l.b16 %v2481
        %v2514 = vunpack.c.l.b16 %v2482
        %v2515 = vunpack.c.l.b16 %v2483
        %v2516 = vunpack.c.l.b16 %v2484
        %v2517 = vunpack.c.l.b16 %v2485
        %v2518 = vunpack.c.l.b16 %v2486
        %v2519 = vunpack.c.l.b16 %v2487
        %v2520 = vunpack.c.l.b16 %v2488
        %v2521 = vunpack.c.l.b16 %v2489
        %v2522 = vunpack.c.l.b16 %v2490
        %v2523 = vunpack.c.l.b16 %v2491
        %v2524 = vunpack.c.l.b16 %v2492
        %v2525 = vunpack.c.l.b16 %v2493
        %v2526 = vunpack.c.l.b16 %v2494
        %v2527 = vunpack.c.l.b16 %v2495
        %v2528 = vunpack.c.l.b16 %v2496
        %v2529 = vpack.c.b16 %v2514, %v2513
        %v2530 = vpack.c.b16 %v2516, %v2515
        %v2531 = vpack.c.b16 %v2518, %v2517
        %v2532 = vpack.c.b16 %v2520, %v2519
        %v2533 = vpack.c.b16 %v2522, %v2521
        %v2534 = vpack.c.b16 %v2524, %v2523
        %v2535 = vpack.c.b16 %v2526, %v2525
        %v2536 = vpack.c.b16 %v2528, %v2527
        %2545 = vmatpush.bf16.msra.mxu0 %v2536
        %2546 = vmatpush.bf16.msra.mxu0 %v2535
        %2547 = vmatpush.bf16.msra.mxu0 %v2534
        %2548 = vmatpush.bf16.msra.mxu0 %v2533
        %2549 = vmatpush.bf16.msra.mxu0 %v2532
        %2550 = vmatpush.bf16.msra.mxu0 %v2531
        %2551 = vmatpush.bf16.msra.mxu0 %v2530
        %2552 = vmatpush.bf16.msra.mxu0 %v2529
        %2553 = vmatmul.bf16.gmra.mxu0 %v2478
        %v2554 = vpop.f32.mrf.mxu0
        %v2555 = vadd.f32 0.0, %v2554
        %v2556 = vpop.f32.mrf.mxu0
        %v2557 = vadd.f32 0.0, %v2556
        %2558 = vmatmul.bf16.gmra.mxu0 %v2479
        %v2559 = vpop.f32.mrf.mxu0
        %v2560 = vadd.f32 0.0, %v2559
        %v2561 = vpop.f32.mrf.mxu0
        %v2562 = vadd.f32 0.0, %v2561
        %2563 = vmatmul.bf16.gmra.mxu0 %v2480
        %v2564 = vpop.f32.mrf.mxu0
        %v2565 = vadd.f32 0.0, %v2564
        %v2566 = vpop.f32.mrf.mxu0
        %2567 = vdwg.mxu0
        %v2568 = vadd.f32 %v2473, %v2555
        %v2569 = vadd.f32 %v2474, %v2557
        %v2570 = vadd.f32 %v2475, %v2560
        %v2571 = vadd.f32 %v2476, %v2562
        %v2572 = vadd.f32 %v2477, %v2565
        %v2573 = vrot.slane %v2046, 1
        %v2574 = vsel %vm572, %v2058, %v2573
        %v2577 = vsel %vm1100, %v2573, 0.0
        %v2578 = vpack.c.bf16 %v2057, %v2055
        %v2579 = vpack.c.bf16 %v2574, %v2059
        %v2580 = vpack.c.bf16 %v2577, %v2577
        %v2581 = vld [vmem:[%s8 + $0x140] sm:$0xf]
        %v2582 = vld [vmem:[%s8 + $0x144] sm:$0xf]
        %v2583 = vld [vmem:[%s8 + $0x148] sm:$0xf]
        %v2584 = vld [vmem:[%s8 + $0x14c] sm:$0xf]
        %v2585 = vld [vmem:[%s8 + $0x150] sm:$0xf]
        %v2586 = vld [vmem:[%s8 + $0x154] sm:$0xf]
        %v2587 = vld [vmem:[%s8 + $0x158] sm:$0xf]
        %v2588 = vld [vmem:[%s8 + $0x15c] sm:$0xf]
        %v2589 = vld [vmem:[%s8 + $0x160] sm:$0xf]
        %v2590 = vld [vmem:[%s8 + $0x164] sm:$0xf]
        %v2591 = vld [vmem:[%s8 + $0x168] sm:$0xf]
        %v2592 = vld [vmem:[%s8 + $0x16c] sm:$0xf]
        %v2593 = vld [vmem:[%s8 + $0x170] sm:$0xf]
        %v2594 = vld [vmem:[%s8 + $0x174] sm:$0xf]
        %v2595 = vld [vmem:[%s8 + $0x178] sm:$0xf]
        %v2596 = vld [vmem:[%s8 + $0x17c] sm:$0xf]
        %v2613 = vunpack.c.l.b16 %v2581
        %v2614 = vunpack.c.l.b16 %v2582
        %v2615 = vunpack.c.l.b16 %v2583
        %v2616 = vunpack.c.l.b16 %v2584
        %v2617 = vunpack.c.l.b16 %v2585
        %v2618 = vunpack.c.l.b16 %v2586
        %v2619 = vunpack.c.l.b16 %v2587
        %v2620 = vunpack.c.l.b16 %v2588
        %v2621 = vunpack.c.l.b16 %v2589
        %v2622 = vunpack.c.l.b16 %v2590
        %v2623 = vunpack.c.l.b16 %v2591
        %v2624 = vunpack.c.l.b16 %v2592
        %v2625 = vunpack.c.l.b16 %v2593
        %v2626 = vunpack.c.l.b16 %v2594
        %v2627 = vunpack.c.l.b16 %v2595
        %v2628 = vunpack.c.l.b16 %v2596
        %v2629 = vpack.c.b16 %v2614, %v2613
        %v2630 = vpack.c.b16 %v2616, %v2615
        %v2631 = vpack.c.b16 %v2618, %v2617
        %v2632 = vpack.c.b16 %v2620, %v2619
        %v2633 = vpack.c.b16 %v2622, %v2621
        %v2634 = vpack.c.b16 %v2624, %v2623
        %v2635 = vpack.c.b16 %v2626, %v2625
        %v2636 = vpack.c.b16 %v2628, %v2627
        %2645 = vmatpush.bf16.msra.mxu0 %v2636
        %2646 = vmatpush.bf16.msra.mxu0 %v2635
        %2647 = vmatpush.bf16.msra.mxu0 %v2634
        %2648 = vmatpush.bf16.msra.mxu0 %v2633
        %2649 = vmatpush.bf16.msra.mxu0 %v2632
        %2650 = vmatpush.bf16.msra.mxu0 %v2631
        %2651 = vmatpush.bf16.msra.mxu0 %v2630
        %2652 = vmatpush.bf16.msra.mxu0 %v2629
        %2653 = vmatmul.bf16.gmra.mxu0 %v2578
        %v2654 = vpop.f32.mrf.mxu0
        %v2655 = vadd.f32 0.0, %v2654
        %v2656 = vpop.f32.mrf.mxu0
        %v2657 = vadd.f32 0.0, %v2656
        %2658 = vmatmul.bf16.gmra.mxu0 %v2579
        %v2659 = vpop.f32.mrf.mxu0
        %v2660 = vadd.f32 0.0, %v2659
        %v2661 = vpop.f32.mrf.mxu0
        %v2662 = vadd.f32 0.0, %v2661
        %2663 = vmatmul.bf16.gmra.mxu0 %v2580
        %v2664 = vpop.f32.mrf.mxu0
        %v2665 = vadd.f32 0.0, %v2664
        %v2666 = vpop.f32.mrf.mxu0
        %2667 = vdwg.mxu0
        %v2668 = vadd.f32 %v2568, %v2655
        %v2669 = vadd.f32 %v2569, %v2657
        %v2670 = vadd.f32 %v2570, %v2660
        %v2671 = vadd.f32 %v2571, %v2662
        %v2672 = vadd.f32 %v2572, %v2665
        %v2673 = vrot.slane %v2042, 5
        %v2674 = vrot.slane %v2043, 5
        %v2675 = vsel %vm1100, %v2673, %v2674
        %v2676 = vrot.slane %v2044, 5
        %v2677 = vsel %vm1100, %v2674, %v2676
        %v2678 = vrot.slane %v2045, 5
        %v2679 = vsel %vm1100, %v2676, %v2678
        %v2680 = vrot.slane %v2046, 5
        %v2681 = vsel %vm1100, %v2678, %v2680
        %v2686 = vsel %vm572, %v2681, 0.0
        %v2687 = vpack.c.bf16 %v2677, %v2675
        %v2688 = vpack.c.bf16 %v2686, %v2679
        %v2689 = vld [vmem:[%s8 + $0x180] sm:$0xf]
        %v2690 = vld [vmem:[%s8 + $0x184] sm:$0xf]
        %v2691 = vld [vmem:[%s8 + $0x188] sm:$0xf]
        %v2692 = vld [vmem:[%s8 + $0x18c] sm:$0xf]
        %v2693 = vld [vmem:[%s8 + $0x190] sm:$0xf]
        %v2694 = vld [vmem:[%s8 + $0x194] sm:$0xf]
        %v2695 = vld [vmem:[%s8 + $0x198] sm:$0xf]
        %v2696 = vld [vmem:[%s8 + $0x19c] sm:$0xf]
        %v2697 = vld [vmem:[%s8 + $0x1a0] sm:$0xf]
        %v2698 = vld [vmem:[%s8 + $0x1a4] sm:$0xf]
        %v2699 = vld [vmem:[%s8 + $0x1a8] sm:$0xf]
        %v2700 = vld [vmem:[%s8 + $0x1ac] sm:$0xf]
        %v2701 = vld [vmem:[%s8 + $0x1b0] sm:$0xf]
        %v2702 = vld [vmem:[%s8 + $0x1b4] sm:$0xf]
        %v2703 = vld [vmem:[%s8 + $0x1b8] sm:$0xf]
        %v2704 = vld [vmem:[%s8 + $0x1bc] sm:$0xf]
        %v2721 = vunpack.c.l.b16 %v2689
        %v2722 = vunpack.c.l.b16 %v2690
        %v2723 = vunpack.c.l.b16 %v2691
        %v2724 = vunpack.c.l.b16 %v2692
        %v2725 = vunpack.c.l.b16 %v2693
        %v2726 = vunpack.c.l.b16 %v2694
        %v2727 = vunpack.c.l.b16 %v2695
        %v2728 = vunpack.c.l.b16 %v2696
        %v2729 = vunpack.c.l.b16 %v2697
        %v2730 = vunpack.c.l.b16 %v2698
        %v2731 = vunpack.c.l.b16 %v2699
        %v2732 = vunpack.c.l.b16 %v2700
        %v2733 = vunpack.c.l.b16 %v2701
        %v2734 = vunpack.c.l.b16 %v2702
        %v2735 = vunpack.c.l.b16 %v2703
        %v2736 = vunpack.c.l.b16 %v2704
        %v2737 = vpack.c.b16 %v2722, %v2721
        %v2738 = vpack.c.b16 %v2724, %v2723
        %v2739 = vpack.c.b16 %v2726, %v2725
        %v2740 = vpack.c.b16 %v2728, %v2727
        %v2741 = vpack.c.b16 %v2730, %v2729
        %v2742 = vpack.c.b16 %v2732, %v2731
        %v2743 = vpack.c.b16 %v2734, %v2733
        %v2744 = vpack.c.b16 %v2736, %v2735
        %2753 = vmatpush.bf16.msra.mxu0 %v2744
        %2754 = vmatpush.bf16.msra.mxu0 %v2743
        %2755 = vmatpush.bf16.msra.mxu0 %v2742
        %2756 = vmatpush.bf16.msra.mxu0 %v2741
        %2757 = vmatpush.bf16.msra.mxu0 %v2740
        %2758 = vmatpush.bf16.msra.mxu0 %v2739
        %2759 = vmatpush.bf16.msra.mxu0 %v2738
        %2760 = vmatpush.bf16.msra.mxu0 %v2737
        %2761 = vmatmul.bf16.gmra.mxu0 %v2687
        %v2762 = vpop.f32.mrf.mxu0
        %v2763 = vadd.f32 0.0, %v2762
        %v2764 = vpop.f32.mrf.mxu0
        %v2765 = vadd.f32 0.0, %v2764
        %2766 = vmatmul.bf16.gmra.mxu0 %v2688
        %v2767 = vpop.f32.mrf.mxu0
        %v2768 = vadd.f32 0.0, %v2767
        %v2769 = vpop.f32.mrf.mxu0
        %v2770 = vadd.f32 0.0, %v2769
        %2771 = vmatmul.bf16.gmra.mxu0 %v1213
        %v2772 = vpop.f32.mrf.mxu0
        %v2773 = vadd.f32 0.0, %v2772
        %v2774 = vpop.f32.mrf.mxu0
        %2775 = vdwg.mxu0
        %v2776 = vadd.f32 %v2668, %v2763
        %v2777 = vadd.f32 %v2669, %v2765
        %v2778 = vadd.f32 %v2670, %v2768
        %v2779 = vadd.f32 %v2671, %v2770
        %v2780 = vadd.f32 %v2672, %v2773
        %v2781 = vrot.slane %v2042, 6
        %v2782 = vrot.slane %v2043, 6
        %v2783 = vsel %vm1306, %v2781, %v2782
        %v2784 = vrot.slane %v2044, 6
        %v2785 = vsel %vm1306, %v2782, %v2784
        %v2786 = vrot.slane %v2045, 6
        %v2787 = vsel %vm1306, %v2784, %v2786
        %v2788 = vrot.slane %v2046, 6
        %v2789 = vsel %vm1306, %v2786, %v2788
        %v2794 = vsel %vm605, %v2789, 0.0
        %v2795 = vpack.c.bf16 %v2785, %v2783
        %v2796 = vpack.c.bf16 %v2794, %v2787
        %v2797 = vld [vmem:[%s8 + $0x1c0] sm:$0xf]
        %v2798 = vld [vmem:[%s8 + $0x1c4] sm:$0xf]
        %v2799 = vld [vmem:[%s8 + $0x1c8] sm:$0xf]
        %v2800 = vld [vmem:[%s8 + $0x1cc] sm:$0xf]
        %v2801 = vld [vmem:[%s8 + $0x1d0] sm:$0xf]
        %v2802 = vld [vmem:[%s8 + $0x1d4] sm:$0xf]
        %v2803 = vld [vmem:[%s8 + $0x1d8] sm:$0xf]
        %v2804 = vld [vmem:[%s8 + $0x1dc] sm:$0xf]
        %v2805 = vld [vmem:[%s8 + $0x1e0] sm:$0xf]
        %v2806 = vld [vmem:[%s8 + $0x1e4] sm:$0xf]
        %v2807 = vld [vmem:[%s8 + $0x1e8] sm:$0xf]
        %v2808 = vld [vmem:[%s8 + $0x1ec] sm:$0xf]
        %v2809 = vld [vmem:[%s8 + $0x1f0] sm:$0xf]
        %v2810 = vld [vmem:[%s8 + $0x1f4] sm:$0xf]
        %v2811 = vld [vmem:[%s8 + $0x1f8] sm:$0xf]
        %v2812 = vld [vmem:[%s8 + $0x1fc] sm:$0xf]
        %v2829 = vunpack.c.l.b16 %v2797
        %v2830 = vunpack.c.l.b16 %v2798
        %v2831 = vunpack.c.l.b16 %v2799
        %v2832 = vunpack.c.l.b16 %v2800
        %v2833 = vunpack.c.l.b16 %v2801
        %v2834 = vunpack.c.l.b16 %v2802
        %v2835 = vunpack.c.l.b16 %v2803
        %v2836 = vunpack.c.l.b16 %v2804
        %v2837 = vunpack.c.l.b16 %v2805
        %v2838 = vunpack.c.l.b16 %v2806
        %v2839 = vunpack.c.l.b16 %v2807
        %v2840 = vunpack.c.l.b16 %v2808
        %v2841 = vunpack.c.l.b16 %v2809
        %v2842 = vunpack.c.l.b16 %v2810
        %v2843 = vunpack.c.l.b16 %v2811
        %v2844 = vunpack.c.l.b16 %v2812
        %v2845 = vpack.c.b16 %v2830, %v2829
        %v2846 = vpack.c.b16 %v2832, %v2831
        %v2847 = vpack.c.b16 %v2834, %v2833
        %v2848 = vpack.c.b16 %v2836, %v2835
        %v2849 = vpack.c.b16 %v2838, %v2837
        %v2850 = vpack.c.b16 %v2840, %v2839
        %v2851 = vpack.c.b16 %v2842, %v2841
        %v2852 = vpack.c.b16 %v2844, %v2843
        %2861 = vmatpush.bf16.msra.mxu0 %v2852
        %2862 = vmatpush.bf16.msra.mxu0 %v2851
        %2863 = vmatpush.bf16.msra.mxu0 %v2850
        %2864 = vmatpush.bf16.msra.mxu0 %v2849
        %2865 = vmatpush.bf16.msra.mxu0 %v2848
        %2866 = vmatpush.bf16.msra.mxu0 %v2847
        %2867 = vmatpush.bf16.msra.mxu0 %v2846
        %2868 = vmatpush.bf16.msra.mxu0 %v2845
        %2869 = vmatmul.bf16.gmra.mxu0 %v2795
        %v2870 = vpop.f32.mrf.mxu0
        %v2871 = vadd.f32 0.0, %v2870
        %v2872 = vpop.f32.mrf.mxu0
        %v2873 = vadd.f32 0.0, %v2872
        %2874 = vmatmul.bf16.gmra.mxu0 %v2796
        %v2875 = vpop.f32.mrf.mxu0
        %v2876 = vadd.f32 0.0, %v2875
        %v2877 = vpop.f32.mrf.mxu0
        %v2878 = vadd.f32 0.0, %v2877
        %2879 = vmatmul.bf16.gmra.mxu0 %v1213
        %v2880 = vpop.f32.mrf.mxu0
        %v2881 = vadd.f32 0.0, %v2880
        %v2882 = vpop.f32.mrf.mxu0
        %2883 = vdwg.mxu0
        %v2884 = vadd.f32 %v2776, %v2871
        %v2885 = vadd.f32 %v2777, %v2873
        %v2886 = vadd.f32 %v2778, %v2876
        %v2887 = vadd.f32 %v2779, %v2878
        %v2888 = vadd.f32 %v2780, %v2881
        %v2889 = vsel %vm780, %v2376, 0.0
        %v2890 = vpack.c.bf16 %v2372, %v2370
        %v2891 = vpack.c.bf16 %v2889, %v2374
        %v2892 = vld [vmem:[%s8 + $0x200] sm:$0xf]
        %v2893 = vld [vmem:[%s8 + $0x204] sm:$0xf]
        %v2894 = vld [vmem:[%s8 + $0x208] sm:$0xf]
        %v2895 = vld [vmem:[%s8 + $0x20c] sm:$0xf]
        %v2896 = vld [vmem:[%s8 + $0x210] sm:$0xf]
        %v2897 = vld [vmem:[%s8 + $0x214] sm:$0xf]
        %v2898 = vld [vmem:[%s8 + $0x218] sm:$0xf]
        %v2899 = vld [vmem:[%s8 + $0x21c] sm:$0xf]
        %v2900 = vld [vmem:[%s8 + $0x220] sm:$0xf]
        %v2901 = vld [vmem:[%s8 + $0x224] sm:$0xf]
        %v2902 = vld [vmem:[%s8 + $0x228] sm:$0xf]
        %v2903 = vld [vmem:[%s8 + $0x22c] sm:$0xf]
        %v2904 = vld [vmem:[%s8 + $0x230] sm:$0xf]
        %v2905 = vld [vmem:[%s8 + $0x234] sm:$0xf]
        %v2906 = vld [vmem:[%s8 + $0x238] sm:$0xf]
        %v2907 = vld [vmem:[%s8 + $0x23c] sm:$0xf]
        %v2924 = vunpack.c.l.b16 %v2892
        %v2925 = vunpack.c.l.b16 %v2893
        %v2926 = vunpack.c.l.b16 %v2894
        %v2927 = vunpack.c.l.b16 %v2895
        %v2928 = vunpack.c.l.b16 %v2896
        %v2929 = vunpack.c.l.b16 %v2897
        %v2930 = vunpack.c.l.b16 %v2898
        %v2931 = vunpack.c.l.b16 %v2899
        %v2932 = vunpack.c.l.b16 %v2900
        %v2933 = vunpack.c.l.b16 %v2901
        %v2934 = vunpack.c.l.b16 %v2902
        %v2935 = vunpack.c.l.b16 %v2903
        %v2936 = vunpack.c.l.b16 %v2904
        %v2937 = vunpack.c.l.b16 %v2905
        %v2938 = vunpack.c.l.b16 %v2906
        %v2939 = vunpack.c.l.b16 %v2907
        %v2940 = vpack.c.b16 %v2925, %v2924
        %v2941 = vpack.c.b16 %v2927, %v2926
        %v2942 = vpack.c.b16 %v2929, %v2928
        %v2943 = vpack.c.b16 %v2931, %v2930
        %v2944 = vpack.c.b16 %v2933, %v2932
        %v2945 = vpack.c.b16 %v2935, %v2934
        %v2946 = vpack.c.b16 %v2937, %v2936
        %v2947 = vpack.c.b16 %v2939, %v2938
        %2956 = vmatpush.bf16.msra.mxu0 %v2947
        %2957 = vmatpush.bf16.msra.mxu0 %v2946
        %2958 = vmatpush.bf16.msra.mxu0 %v2945
        %2959 = vmatpush.bf16.msra.mxu0 %v2944
        %2960 = vmatpush.bf16.msra.mxu0 %v2943
        %2961 = vmatpush.bf16.msra.mxu0 %v2942
        %2962 = vmatpush.bf16.msra.mxu0 %v2941
        %2963 = vmatpush.bf16.msra.mxu0 %v2940
        %2964 = vmatmul.bf16.gmra.mxu0 %v2890
        %v2965 = vpop.f32.mrf.mxu0
        %v2966 = vadd.f32 0.0, %v2965
        %v2967 = vpop.f32.mrf.mxu0
        %v2968 = vadd.f32 0.0, %v2967
        %2969 = vmatmul.bf16.gmra.mxu0 %v2891
        %v2970 = vpop.f32.mrf.mxu0
        %v2971 = vadd.f32 0.0, %v2970
        %v2972 = vpop.f32.mrf.mxu0
        %v2973 = vadd.f32 0.0, %v2972
        %2974 = vmatmul.bf16.gmra.mxu0 %v1213
        %v2975 = vpop.f32.mrf.mxu0
        %v2976 = vadd.f32 0.0, %v2975
        %v2977 = vpop.f32.mrf.mxu0
        %2978 = vdwg.mxu0
        %v2979 = vadd.f32 %v2884, %v2966
        %v2980 = vadd.f32 %v2885, %v2968
        %v2981 = vadd.f32 %v2886, %v2971
        %v2982 = vadd.f32 %v2887, %v2973
        %v2983 = vadd.f32 %v2888, %v2976
        %v2985 = vperm.slane %v2047, 0
        %v2987 = vadd.f32 %v2979, %v2985
        %v2988 = vadd.f32 %v2980, %v2985
        %v2989 = vadd.f32 %v2981, %v2985
        %v2990 = vadd.f32 %v2982, %v2985
        %v2991 = vadd.f32 %v2983, %v2985
        %vm2992 = vcmp.ge.f32.partialorder %v2987, 0.0
        %vm2993 = vcmp.ge.f32.partialorder %v2988, 0.0
        %vm2994 = vcmp.ge.f32.partialorder %v2989, 0.0
        %vm2995 = vcmp.ge.f32.partialorder %v2990, 0.0
        %vm2996 = vcmp.ge.f32.partialorder %v2991, 0.0
        %v2997 = vstv %s2048
        %v2998 = vmul.f32 %v2997, %v2987
        %v2999 = vmul.f32 %v2997, %v2988
        %v3000 = vmul.f32 %v2997, %v2989
        %v3001 = vmul.f32 %v2997, %v2990
        %v3002 = vmul.f32 %v2997, %v2991
        %v3003 = vsel %vm2992, %v2987, %v2998
        %v3004 = vsel %vm2993, %v2988, %v2999
        %v3005 = vsel %vm2994, %v2989, %v3000
        %v3006 = vsel %vm2995, %v2990, %v3001
        %v3007 = vsel %vm2996, %v2991, %v3002
        %v3008 = vadd.f32 %v3003, %v1534
        %v3009 = vadd.f32 %v3004, %v1535
        %v3010 = vadd.f32 %v3005, %v1536
        %v3011 = vadd.f32 %v3006, %v1537
        %v3012 = vadd.f32 %v3007, %v1538
        %3013 = vst.msk [vmem:[%s400] sm:$0xff] %vm1579, %v3008
        %3014 = vst.msk [vmem:[%s400 + $0x8] sm:$0xff] %vm1579, %v3009
        %3015 = vst.msk [vmem:[%s400 + $0x10] sm:$0xff] %vm1579, %v3010
        %3016 = vst.msk [vmem:[%s400 + $0x18] sm:$0xff] %vm1579, %v3011
        %vm3017 = vcmask 60416
        %3018 = vst.msk [vmem:[%s400 + $0x20] sm:$0xf] %vm3017, %v3012
        %p3019 = scmp.lt.s32.totalorder %s23, 1
        %s3020 = scalar_select %p3019, %s23, 1
        %s3021 = smul.addr %s3020, 5
        %s3022 = smul.addr %s3021, 8
        %s3023 = scalar_lea.vmem %s11, %s3022
        // Predicated region
        $region69: #{_lambda_.1} parent=63 // pred_check
          %p3024 = pneg %p277
        $region70: #{_lambda_.1} parent=63 // pred_check_branch
          %3026 = sbr.rel (%p3024) target = $region72
        $region71: #{_lambda_.1} parent=63 // pred_region
          _
        $region72: #{_lambda_.1} parent=63 // pred_fallthru
          _
      $region64: #{_lambda_.1} parent=5 // pred_fallthru
        _
      %p3027 = scmp.le.s32.totalorder 2, %s18
      // Predicated region
      $region73: #{_lambda_.1} parent=5 // pred_check
        %p3028 = pneg %p3027
      $region74: #{_lambda_.1} parent=5 // pred_check_branch
        %3030 = sbr.rel (%p3028) target = $region76
      $region75: #{_lambda_.1} parent=5 // pred_region
        %s3031 = ssub.s32 %s18, 2
        // Predicated region
        $region77: #{_lambda_.1} parent=75 // pred_check
          %p3032 = pneg %p283
        $region78: #{_lambda_.1} parent=75 // pred_check_branch
          %3034 = sbr.rel (%p3032) target = $region80
        $region79: #{_lambda_.1} parent=75 // pred_region
          %p3035 = scmp.lt.s32.totalorder %s24, 1
          %s3036 = scalar_select %p3035, %s24, 1
          %s3037 = smul.addr %s3036, 5
          %s3038 = smul.addr %s3037, 8
          %s3039 = scalar_lea.vmem %s11, %s3038
        $region80: #{_lambda_.1} parent=75 // pred_fallthru
          _
      $region76: #{_lambda_.1} parent=5 // pred_fallthru
        _
    $region6: #{_lambda_.1} parent=1 // loop_footer
      %s22 = sadd.s32 1, %s18
    $region7: #{_lambda_.1} parent=1 // loop_footer_branch
      %17 = sbr.rel target = $region3
    $region8: #{_lambda_.1} parent=1 // loop_exit
      _
    %3040 = vsyncpa [#allocation3], 1
    %s3041 = scalar_lea.sflag [#allocation3], 1
    %3042 = vsyncpa %s3041, 1

</llo_original>
